<compile_context>
chip_gen: v7x
topology: tpu7x:2x2x1
jax: 0.10.0
libtpu: 0.0.40
codegen_flags: <defaults>
</compile_context>

<pallas_src>
import functools

import jax
import jax.numpy as jnp
from jax import lax
from jax.experimental import pallas as pl
from jax.experimental.pallas import tpu as pltpu


# ----------------------------------------------------------------------------
# In-kernel helpers (all f32 elementwise math)
# ----------------------------------------------------------------------------

def _layernorm(x, g, b, eps):
    mean = jnp.mean(x, axis=-1, keepdims=True)
    xc = x - mean
    var = jnp.mean(xc * xc, axis=-1, keepdims=True)
    return xc * lax.rsqrt(var + eps) * g + b


def _gelu(x):
    # tanh-approximation GELU.
    # TODO(synk): HF BertIntermediate default is the exact erf GELU; tanh approx here.
    c = jnp.float32(0.7978845608028654)  # sqrt(2/pi)
    return 0.5 * x * (1.0 + jnp.tanh(c * (x + 0.044715 * x * x * x)))


# ----------------------------------------------------------------------------
# The single fused forward kernel
#   embed-LN -> [QKV -> per-(batch,head) attention w/ in-kernel mask bias ->
#   out-proj accumulated per head + residual + LN -> FFN(gelu) + residual + LN] x L
#   -> pooler(tanh) -> dropout(eval identity) -> classifier (lane-dense padded)
# ----------------------------------------------------------------------------

def _bert_forward_kernel(emb_ref, mask_ref,
                         emb_ln_g_ref, emb_ln_b_ref,
                         qkv_w_ref, qkv_b_ref,
                         ao_w_ref, ao_b_ref, ln1_g_ref, ln1_b_ref,
                         w1_ref, b1_ref, w2_ref, b2_ref, ln2_g_ref, ln2_b_ref,
                         pool_w_ref, pool_b_ref, cls_w_ref, cls_b_ref,
                         logits_ref,
                         *, batch, seq, num_heads, head_dim, num_layers, eps):
    H = num_heads * head_dim
    S = seq
    B = batch

    # --- embedding LayerNorm on the flattened (B*S, H) slab ---
    h = _layernorm(emb_ref[...].astype(jnp.float32),
                   emb_ln_g_ref[...], emb_ln_b_ref[...], eps)          # (M, H) f32

    # --- additive attention bias built in-kernel from the (B, S) 0/1 mask ---
    bias_all = (1.0 - mask_ref[...]) * jnp.float32(-10000.0)            # (B, S)

    scale = jnp.float32(1.0 / (head_dim ** 0.5))

    for l in range(num_layers):                     # static (small) layer loop
        qkv_w = qkv_w_ref[l]                        # (H, 3H) bf16
        ao_w = ao_w_ref[l]                          # (H, H)  bf16
        w1 = w1_ref[l]                              # (H, I)  bf16
        w2 = w2_ref[l]                              # (I, H)  bf16

        # --- fused QKV projection on the whole batch (bf16 MXU, f32 acc) ---
        qkv = jnp.dot(h.astype(jnp.bfloat16), qkv_w,
                      preferred_element_type=jnp.float32) + qkv_b_ref[l]  # (M, 3H)
        q = qkv[:, 0:H]
        k = qkv[:, H:2 * H]
        v = qkv[:, 2 * H:3 * H]

        # --- attention per (batch, head); out-projection accumulated per head ---
        # TODO(synk): at real size (12 heads, head_dim=64, H=768) head slices should
        # be laid out on 128-lane boundaries (process head pairs jointly).
        attn_rows = []
        for b in range(B):
            rs = slice(b * S, (b + 1) * S)
            bias_b = bias_all[b:b + 1, :]                               # (1, S)
            acc = jnp.zeros((S, H), jnp.float32)
            for hd in range(num_heads):
                cs = slice(hd * head_dim, (hd + 1) * head_dim)
                qh = q[rs, cs].astype(jnp.bfloat16)                     # (S, D)
                kh = k[rs, cs].astype(jnp.bfloat16)                     # (S, D)
                vh = v[rs, cs].astype(jnp.bfloat16)                     # (S, D)
                # scores via contraction dims (no explicit transpose through XLU)
                s = lax.dot_general(qh, kh, (((1,), (1,)), ((), ())),
                                    preferred_element_type=jnp.float32) * scale
                s = s + bias_b                                          # (S, S)
                s_max = jnp.max(s, axis=-1, keepdims=True)
                p = jnp.exp(s - s_max)
                denom = jnp.sum(p, axis=-1, keepdims=True)
                p = p * pl.reciprocal(denom, approx=True)
                ctx = jnp.dot(p.astype(jnp.bfloat16), vh,
                              preferred_element_type=jnp.float32)       # (S, D)
                # fold the output projection into the head loop (no lane concat)
                acc = acc + jnp.dot(ctx.astype(jnp.bfloat16), ao_w[cs, :],
                                    preferred_element_type=jnp.float32)  # (S, H)
            attn_rows.append(acc)
        attn = jnp.concatenate(attn_rows, axis=0) + ao_b_ref[l]         # (M, H)

        # --- residual + LayerNorm ---
        h1 = _layernorm(attn + h, ln1_g_ref[l], ln1_b_ref[l], eps)

        # --- FFN: gelu(h1 @ w1 + b1) @ w2 + b2, residual + LayerNorm ---
        f = jnp.dot(h1.astype(jnp.bfloat16), w1,
                    preferred_element_type=jnp.float32) + b1_ref[l]
        f = _gelu(f)
        f2 = jnp.dot(f.astype(jnp.bfloat16), w2,
                     preferred_element_type=jnp.float32) + b2_ref[l]
        h = _layernorm(f2 + h1, ln2_g_ref[l], ln2_b_ref[l], eps)        # (M, H)

    # --- pooler on the [CLS] token of each sequence ---
    cls_rows = jnp.concatenate([h[b * S:b * S + 1, :] for b in range(B)], axis=0)  # (B, H)
    pooled = jnp.tanh(
        jnp.dot(cls_rows.astype(jnp.bfloat16), pool_w_ref[...],
                preferred_element_type=jnp.float32) + pool_b_ref[...])
    # TODO(synk): Dropout(p=0.3) is eval-mode identity here (no stochastic mask).
    logits = jnp.dot(pooled.astype(jnp.bfloat16), cls_w_ref[...],
                     preferred_element_type=jnp.float32) + cls_b_ref[...]
    logits_ref[...] = logits.astype(logits_ref.dtype)                   # (B, 128)


# ----------------------------------------------------------------------------
# Wrapper: embedding gather (XLA glue) -> single fused pallas_call
# ----------------------------------------------------------------------------

def _full_spec(a):
    nd = a.ndim
    return pl.BlockSpec(a.shape, lambda i, _nd=nd: (0,) * _nd)


def bert_class_forward(params, input_ids, attn_mask, token_type_ids, cfg):
    B, S = input_ids.shape
    H = cfg["hidden"]
    nH = cfg["heads"]
    D = H // nH
    L = cfg["layers"]
    NP = cfg["num_labels_padded"]

    # embeddings (gather is XLA glue); sum passed flattened to the fused kernel
    pos_ids = jnp.arange(S, dtype=jnp.int32)
    emb = (params["word_emb"][input_ids]
           + params["pos_emb"][pos_ids][None, :, :]
           + params["type_emb"][token_type_ids])                        # (B, S, H)
    emb = emb.reshape(B * S, H)
    mask_f32 = attn_mask.astype(jnp.float32)                            # (B, S) 0/1

    args = (emb, mask_f32,
            params["emb_ln_g"], params["emb_ln_b"],
            params["qkv_w"], params["qkv_b"],
            params["ao_w"], params["ao_b"], params["ln1_g"], params["ln1_b"],
            params["w1"], params["b1"], params["w2"], params["b2"],
            params["ln2_g"], params["ln2_b"],
            params["pool_w"], params["pool_b"], params["cls_w"], params["cls_b"])

    logits_pad = pl.pallas_call(
        functools.partial(_bert_forward_kernel, batch=B, seq=S, num_heads=nH,
                          head_dim=D, num_layers=L, eps=1e-12),
        out_shape=jax.ShapeDtypeStruct((B, NP), jnp.float32),
        grid=(1,),
        in_specs=[_full_spec(a) for a in args],
        out_specs=pl.BlockSpec((B, NP), lambda i: (0, 0)),
        compiler_params=pltpu.CompilerParams(dimension_semantics=("arbitrary",)),
    )(*args)
    return logits_pad[:, :cfg["num_labels"]]                            # (B, 30)


# ----------------------------------------------------------------------------
# Parameter init (deterministic, synthetic; per-layer weights stacked on dim 0)
# ----------------------------------------------------------------------------

def init_params(key, cfg):
    H, I, V, P, L = (cfg["hidden"], cfg["intermediate"], cfg["vocab"],
                     cfg["max_pos"], cfg["layers"])
    NL, NP = cfg["num_labels"], cfg["num_labels_padded"]
    std = 0.02

    def nrm(k, shape, dtype=jnp.float32):
        return (jax.random.normal(k, shape, jnp.float32) * std).astype(dtype)

    k = jax.random.split(key, 10)

    # classifier weight padded to lane-dense 128 columns; extra columns zero
    cls_w = jnp.zeros((H, NP), jnp.float32)
    cls_w = cls_w.at[:, :NL].set(jax.random.normal(k[8], (H, NL), jnp.float32) * std)

    return {
        "word_emb": nrm(k[0], (V, H)),
        "pos_emb": nrm(k[1], (P, H)),
        "type_emb": nrm(k[2], (2, H)),
        "emb_ln_g": jnp.ones((1, H), jnp.float32),
        "emb_ln_b": jnp.zeros((1, H), jnp.float32),
        "qkv_w": nrm(k[3], (L, H, 3 * H), jnp.bfloat16),   # fused Q|K|V, stacked on L
        "qkv_b": jnp.zeros((L, 1, 3 * H), jnp.float32),
        "ao_w": nrm(k[4], (L, H, H), jnp.bfloat16),
        "ao_b": jnp.zeros((L, 1, H), jnp.float32),
        "ln1_g": jnp.ones((L, 1, H), jnp.float32),
        "ln1_b": jnp.zeros((L, 1, H), jnp.float32),
        "w1": nrm(k[5], (L, H, I), jnp.bfloat16),
        "b1": jnp.zeros((L, 1, I), jnp.float32),
        "w2": nrm(k[6], (L, I, H), jnp.bfloat16),
        "b2": jnp.zeros((L, 1, H), jnp.float32),
        "ln2_g": jnp.ones((L, 1, H), jnp.float32),
        "ln2_b": jnp.zeros((L, 1, H), jnp.float32),
        "pool_w": nrm(k[7], (H, H), jnp.bfloat16),
        "pool_b": jnp.zeros((1, H), jnp.float32),
        "cls_w": cls_w.astype(jnp.bfloat16),
        "cls_b": jnp.zeros((1, NP), jnp.float32),
    }


# ----------------------------------------------------------------------------
# Main
# ----------------------------------------------------------------------------

if __name__ == "__main__":
    cfg = dict(vocab=100, hidden=128, heads=2, intermediate=512,
               layers=2, max_pos=16, num_labels=30, num_labels_padded=128)
    B, S = 2, 8

    root = jax.random.PRNGKey(0)
    kp, ki = jax.random.split(root, 2)

    params = init_params(kp, cfg)
    input_ids = jax.random.randint(ki, (B, S), 0, cfg["vocab"], dtype=jnp.int32)
    # deterministic mask: first sequence fully attended, second has last 3 masked
    attn_mask = jnp.array([[1, 1, 1, 1, 1, 1, 1, 1],
                           [1, 1, 1, 1, 1, 0, 0, 0]], dtype=jnp.int32)
    token_type_ids = jnp.array([[0, 0, 0, 0, 1, 1, 1, 1],
                                [0, 0, 0, 0, 0, 0, 0, 0]], dtype=jnp.int32)

    logits = bert_class_forward(params, input_ids, attn_mask, token_type_ids, cfg)
    logits = jax.block_until_ready(logits)
    assert logits.shape == (B, cfg["num_labels"])
    assert bool(jnp.all(jnp.isfinite(logits)))
    print("KERNEL_OK")
</pallas_src>

<mosaic_0001>
module attributes {stable_mosaic.version = 11 : i64} {
  func.func @_bert_forward_kernel(%arg0: i32, %arg1: memref<16x128xf32, #tpu.memory_space<vmem>>, %arg2: memref<2x8xf32, #tpu.memory_space<vmem>>, %arg3: memref<1x128xf32, #tpu.memory_space<vmem>>, %arg4: memref<1x128xf32, #tpu.memory_space<vmem>>, %arg5: memref<2x128x384xbf16, #tpu.memory_space<vmem>>, %arg6: memref<2x1x384xf32, #tpu.memory_space<vmem>>, %arg7: memref<2x128x128xbf16, #tpu.memory_space<vmem>>, %arg8: memref<2x1x128xf32, #tpu.memory_space<vmem>>, %arg9: memref<2x1x128xf32, #tpu.memory_space<vmem>>, %arg10: memref<2x1x128xf32, #tpu.memory_space<vmem>>, %arg11: memref<2x128x512xbf16, #tpu.memory_space<vmem>>, %arg12: memref<2x1x512xf32, #tpu.memory_space<vmem>>, %arg13: memref<2x512x128xbf16, #tpu.memory_space<vmem>>, %arg14: memref<2x1x128xf32, #tpu.memory_space<vmem>>, %arg15: memref<2x1x128xf32, #tpu.memory_space<vmem>>, %arg16: memref<2x1x128xf32, #tpu.memory_space<vmem>>, %arg17: memref<128x128xbf16, #tpu.memory_space<vmem>>, %arg18: memref<1x128xf32, #tpu.memory_space<vmem>>, %arg19: memref<128x128xbf16, #tpu.memory_space<vmem>>, %arg20: memref<1x128xf32, #tpu.memory_space<vmem>>, %arg21: memref<2x128xf32, #tpu.memory_space<vmem>>) attributes {dimension_semantics = [#tpu.dimension_semantics<arbitrary>], iteration_bounds = array<i64: 1>, scalar_prefetch = 0 : i64, scratch_operands = 0 : i64, tpu.core_type = #tpu.core_type<tc>, window_params = [{pipeline_mode = #tpu.pipeline_mode<synchronous>, transform_indices = @transform_0, window_bounds = array<i64: 16, 128>}, {pipeline_mode = #tpu.pipeline_mode<synchronous>, transform_indices = @transform_1, window_bounds = array<i64: 2, 8>}, {pipeline_mode = #tpu.pipeline_mode<synchronous>, transform_indices = @transform_2, window_bounds = array<i64: 1, 128>}, {pipeline_mode = #tpu.pipeline_mode<synchronous>, transform_indices = @transform_3, window_bounds = array<i64: 1, 128>}, {pipeline_mode = #tpu.pipeline_mode<synchronous>, transform_indices = @transform_4, window_bounds = array<i64: 2, 128, 384>}, {pipeline_mode = #tpu.pipeline_mode<synchronous>, transform_indices = @transform_5, window_bounds = array<i64: 2, 1, 384>}, {pipeline_mode = #tpu.pipeline_mode<synchronous>, transform_indices = @transform_6, window_bounds = array<i64: 2, 128, 128>}, {pipeline_mode = #tpu.pipeline_mode<synchronous>, transform_indices = @transform_7, window_bounds = array<i64: 2, 1, 128>}, {pipeline_mode = #tpu.pipeline_mode<synchronous>, transform_indices = @transform_8, window_bounds = array<i64: 2, 1, 128>}, {pipeline_mode = #tpu.pipeline_mode<synchronous>, transform_indices = @transform_9, window_bounds = array<i64: 2, 1, 128>}, {pipeline_mode = #tpu.pipeline_mode<synchronous>, transform_indices = @transform_10, window_bounds = array<i64: 2, 128, 512>}, {pipeline_mode = #tpu.pipeline_mode<synchronous>, transform_indices = @transform_11, window_bounds = array<i64: 2, 1, 512>}, {pipeline_mode = #tpu.pipeline_mode<synchronous>, transform_indices = @transform_12, window_bounds = array<i64: 2, 512, 128>}, {pipeline_mode = #tpu.pipeline_mode<synchronous>, transform_indices = @transform_13, window_bounds = array<i64: 2, 1, 128>}, {pipeline_mode = #tpu.pipeline_mode<synchronous>, transform_indices = @transform_14, window_bounds = array<i64: 2, 1, 128>}, {pipeline_mode = #tpu.pipeline_mode<synchronous>, transform_indices = @transform_15, window_bounds = array<i64: 2, 1, 128>}, {pipeline_mode = #tpu.pipeline_mode<synchronous>, transform_indices = @transform_16, window_bounds = array<i64: 128, 128>}, {pipeline_mode = #tpu.pipeline_mode<synchronous>, transform_indices = @transform_17, window_bounds = array<i64: 1, 128>}, {pipeline_mode = #tpu.pipeline_mode<synchronous>, transform_indices = @transform_18, window_bounds = array<i64: 128, 128>}, {pipeline_mode = #tpu.pipeline_mode<synchronous>, transform_indices = @transform_19, window_bounds = array<i64: 1, 128>}, {pipeline_mode = #tpu.pipeline_mode<synchronous>, transform_indices = @transform_20, window_bounds = array<i64: 2, 128>}]} {
    %c0 = arith.constant 0 : index
    %c0_0 = arith.constant 0 : index
    %0 = vector.load %arg1[%c0, %c0_0] : memref<16x128xf32, #tpu.memory_space<vmem>>, vector<16x128xf32>
    %c0_1 = arith.constant 0 : index
    %c0_2 = arith.constant 0 : index
    %1 = vector.load %arg3[%c0_1, %c0_2] : memref<1x128xf32, #tpu.memory_space<vmem>>, vector<1x128xf32>
    %c0_3 = arith.constant 0 : index
    %c0_4 = arith.constant 0 : index
    %2 = vector.load %arg4[%c0_3, %c0_4] : memref<1x128xf32, #tpu.memory_space<vmem>>, vector<1x128xf32>
    %cst = arith.constant dense<0.000000e+00> : vector<16xf32>
    %3 = vector.multi_reduction <add>, %0, %cst [1] : vector<16x128xf32> to vector<16xf32>
    %4 = vector.shape_cast %3 : vector<16xf32> to vector<16x1xf32>
    %cst_5 = arith.constant 1.280000e+02 : f32
    %5 = vector.broadcast %cst_5 : f32 to vector<16x1xf32>
    %6 = arith.divf %4, %5 : vector<16x1xf32>
    %7 = vector.broadcast %6 : vector<16x1xf32> to vector<16x128xf32>
    %8 = arith.subf %0, %7 : vector<16x128xf32>
    %9 = arith.mulf %8, %8 : vector<16x128xf32>
    %cst_6 = arith.constant dense<0.000000e+00> : vector<16xf32>
    %10 = vector.multi_reduction <add>, %9, %cst_6 [1] : vector<16x128xf32> to vector<16xf32>
    %11 = vector.shape_cast %10 : vector<16xf32> to vector<16x1xf32>
    %cst_7 = arith.constant 1.280000e+02 : f32
    %12 = vector.broadcast %cst_7 : f32 to vector<16x1xf32>
    %13 = arith.divf %11, %12 : vector<16x1xf32>
    %cst_8 = arith.constant 9.99999996E-13 : f32
    %14 = vector.broadcast %cst_8 : f32 to vector<16x1xf32>
    %15 = arith.addf %13, %14 : vector<16x1xf32>
    %16 = math.rsqrt %15 : vector<16x1xf32>
    %17 = vector.broadcast %16 : vector<16x1xf32> to vector<16x128xf32>
    %18 = arith.mulf %8, %17 : vector<16x128xf32>
    %19 = vector.broadcast %1 : vector<1x128xf32> to vector<16x128xf32>
    %20 = arith.mulf %18, %19 : vector<16x128xf32>
    %21 = vector.broadcast %2 : vector<1x128xf32> to vector<16x128xf32>
    %22 = arith.addf %20, %21 : vector<16x128xf32>
    %c0_9 = arith.constant 0 : index
    %c0_10 = arith.constant 0 : index
    %23 = vector.load %arg2[%c0_9, %c0_10] : memref<2x8xf32, #tpu.memory_space<vmem>>, vector<2x8xf32>
    %cst_11 = arith.constant 1.000000e+00 : f32
    %24 = vector.broadcast %cst_11 : f32 to vector<2x8xf32>
    %25 = arith.subf %24, %23 : vector<2x8xf32>
    %cst_12 = arith.constant -1.000000e+04 : f32
    %26 = vector.broadcast %cst_12 : f32 to vector<2x8xf32>
    %27 = arith.mulf %25, %26 : vector<2x8xf32>
    %c0_13 = arith.constant 0 : index
    %c0_14 = arith.constant 0 : index
    %c0_15 = arith.constant 0 : index
    %28 = vector.load %arg5[%c0_13, %c0_14, %c0_15] : memref<2x128x384xbf16, #tpu.memory_space<vmem>>, vector<1x128x384xbf16>
    %29 = vector.shape_cast %28 : vector<1x128x384xbf16> to vector<128x384xbf16>
    %c0_16 = arith.constant 0 : index
    %c0_17 = arith.constant 0 : index
    %c0_18 = arith.constant 0 : index
    %30 = vector.load %arg7[%c0_16, %c0_17, %c0_18] : memref<2x128x128xbf16, #tpu.memory_space<vmem>>, vector<1x128x128xbf16>
    %31 = vector.shape_cast %30 : vector<1x128x128xbf16> to vector<128x128xbf16>
    %c0_19 = arith.constant 0 : index
    %c0_20 = arith.constant 0 : index
    %c0_21 = arith.constant 0 : index
    %32 = vector.load %arg11[%c0_19, %c0_20, %c0_21] : memref<2x128x512xbf16, #tpu.memory_space<vmem>>, vector<1x128x512xbf16>
    %33 = vector.shape_cast %32 : vector<1x128x512xbf16> to vector<128x512xbf16>
    %c0_22 = arith.constant 0 : index
    %c0_23 = arith.constant 0 : index
    %c0_24 = arith.constant 0 : index
    %34 = vector.load %arg13[%c0_22, %c0_23, %c0_24] : memref<2x512x128xbf16, #tpu.memory_space<vmem>>, vector<1x512x128xbf16>
    %35 = vector.shape_cast %34 : vector<1x512x128xbf16> to vector<512x128xbf16>
    %36 = arith.truncf %22 : vector<16x128xf32> to vector<16x128xbf16>
    %cst_25 = arith.constant dense<0.000000e+00> : vector<16x384xf32>
    %37 = tpu.matmul %36, %29, %cst_25 {dimension_numbers = #tpu.dot_dimension_numbers<[1], [0], [0], [1], [0, 0, 1, 1], [], []>} : vector<16x128xbf16>, vector<128x384xbf16>, vector<16x384xf32> -> vector<16x384xf32>
    %c0_26 = arith.constant 0 : index
    %c0_27 = arith.constant 0 : index
    %c0_28 = arith.constant 0 : index
    %38 = vector.load %arg6[%c0_26, %c0_27, %c0_28] : memref<2x1x384xf32, #tpu.memory_space<vmem>>, vector<1x1x384xf32>
    %39 = vector.shape_cast %38 : vector<1x1x384xf32> to vector<1x384xf32>
    %40 = vector.broadcast %39 : vector<1x384xf32> to vector<16x384xf32>
    %41 = arith.addf %37, %40 : vector<16x384xf32>
    %42 = vector.extract_strided_slice %41 {offsets = [0, 0], sizes = [16, 128], strides = [1, 1]} : vector<16x384xf32> to vector<16x128xf32>
    %43 = vector.extract_strided_slice %41 {offsets = [0, 128], sizes = [16, 128], strides = [1, 1]} : vector<16x384xf32> to vector<16x128xf32>
    %44 = vector.extract_strided_slice %41 {offsets = [0, 256], sizes = [16, 128], strides = [1, 1]} : vector<16x384xf32> to vector<16x128xf32>
    %45 = vector.extract_strided_slice %27 {offsets = [0, 0], sizes = [1, 8], strides = [1, 1]} : vector<2x8xf32> to vector<1x8xf32>
    %cst_29 = arith.constant 0.000000e+00 : f32
    %46 = vector.broadcast %cst_29 : f32 to vector<8x128xf32>
    %47 = vector.extract_strided_slice %42 {offsets = [0, 0], sizes = [8, 64], strides = [1, 1]} : vector<16x128xf32> to vector<8x64xf32>
    %48 = arith.truncf %47 : vector<8x64xf32> to vector<8x64xbf16>
    %49 = vector.extract_strided_slice %43 {offsets = [0, 0], sizes = [8, 64], strides = [1, 1]} : vector<16x128xf32> to vector<8x64xf32>
    %50 = arith.truncf %49 : vector<8x64xf32> to vector<8x64xbf16>
    %51 = vector.extract_strided_slice %44 {offsets = [0, 0], sizes = [8, 64], strides = [1, 1]} : vector<16x128xf32> to vector<8x64xf32>
    %52 = arith.truncf %51 : vector<8x64xf32> to vector<8x64xbf16>
    %cst_30 = arith.constant dense<0.000000e+00> : vector<8x8xf32>
    %53 = tpu.matmul %48, %50, %cst_30 {dimension_numbers = #tpu.dot_dimension_numbers<[1], [1], [0], [0], [0, 0, 1, 0], [], []>} : vector<8x64xbf16>, vector<8x64xbf16>, vector<8x8xf32> -> vector<8x8xf32>
    %cst_31 = arith.constant 1.250000e-01 : f32
    %54 = vector.broadcast %cst_31 : f32 to vector<8x8xf32>
    %55 = arith.mulf %53, %54 : vector<8x8xf32>
    %56 = vector.broadcast %45 : vector<1x8xf32> to vector<8x8xf32>
    %57 = arith.addf %55, %56 : vector<8x8xf32>
    %cst_32 = arith.constant dense<0xFF800000> : vector<8xf32>
    %58 = vector.multi_reduction <maximumf>, %57, %cst_32 [1] : vector<8x8xf32> to vector<8xf32>
    %59 = vector.shape_cast %58 : vector<8xf32> to vector<8x1xf32>
    %60 = vector.broadcast %59 : vector<8x1xf32> to vector<8x8xf32>
    %61 = arith.subf %57, %60 : vector<8x8xf32>
    %62 = math.exp %61 : vector<8x8xf32>
    %cst_33 = arith.constant dense<0.000000e+00> : vector<8xf32>
    %63 = vector.multi_reduction <add>, %62, %cst_33 [1] : vector<8x8xf32> to vector<8xf32>
    %64 = vector.shape_cast %63 : vector<8xf32> to vector<8x1xf32>
    %65 = tpu.reciprocal %64 {approx = true} : vector<8x1xf32> -> vector<8x1xf32>
    %66 = vector.broadcast %65 : vector<8x1xf32> to vector<8x8xf32>
    %67 = arith.mulf %62, %66 : vector<8x8xf32>
    %68 = arith.truncf %67 : vector<8x8xf32> to vector<8x8xbf16>
    %cst_34 = arith.constant dense<0.000000e+00> : vector<8x64xf32>
    %69 = tpu.matmul %68, %52, %cst_34 {dimension_numbers = #tpu.dot_dimension_numbers<[1], [0], [0], [1], [0, 0, 1, 1], [], []>} : vector<8x8xbf16>, vector<8x64xbf16>, vector<8x64xf32> -> vector<8x64xf32>
    %70 = arith.truncf %69 : vector<8x64xf32> to vector<8x64xbf16>
    %71 = vector.extract_strided_slice %31 {offsets = [0, 0], sizes = [64, 128], strides = [1, 1]} : vector<128x128xbf16> to vector<64x128xbf16>
    %cst_35 = arith.constant dense<0.000000e+00> : vector<8x128xf32>
    %72 = tpu.matmul %70, %71, %cst_35 {dimension_numbers = #tpu.dot_dimension_numbers<[1], [0], [0], [1], [0, 0, 1, 1], [], []>} : vector<8x64xbf16>, vector<64x128xbf16>, vector<8x128xf32> -> vector<8x128xf32>
    %73 = arith.addf %46, %72 : vector<8x128xf32>
    %74 = vector.extract_strided_slice %42 {offsets = [0, 64], sizes = [8, 64], strides = [1, 1]} : vector<16x128xf32> to vector<8x64xf32>
    %75 = arith.truncf %74 : vector<8x64xf32> to vector<8x64xbf16>
    %76 = vector.extract_strided_slice %43 {offsets = [0, 64], sizes = [8, 64], strides = [1, 1]} : vector<16x128xf32> to vector<8x64xf32>
    %77 = arith.truncf %76 : vector<8x64xf32> to vector<8x64xbf16>
    %78 = vector.extract_strided_slice %44 {offsets = [0, 64], sizes = [8, 64], strides = [1, 1]} : vector<16x128xf32> to vector<8x64xf32>
    %79 = arith.truncf %78 : vector<8x64xf32> to vector<8x64xbf16>
    %cst_36 = arith.constant dense<0.000000e+00> : vector<8x8xf32>
    %80 = tpu.matmul %75, %77, %cst_36 {dimension_numbers = #tpu.dot_dimension_numbers<[1], [1], [0], [0], [0, 0, 1, 0], [], []>} : vector<8x64xbf16>, vector<8x64xbf16>, vector<8x8xf32> -> vector<8x8xf32>
    %cst_37 = arith.constant 1.250000e-01 : f32
    %81 = vector.broadcast %cst_37 : f32 to vector<8x8xf32>
    %82 = arith.mulf %80, %81 : vector<8x8xf32>
    %83 = vector.broadcast %45 : vector<1x8xf32> to vector<8x8xf32>
    %84 = arith.addf %82, %83 : vector<8x8xf32>
    %cst_38 = arith.constant dense<0xFF800000> : vector<8xf32>
    %85 = vector.multi_reduction <maximumf>, %84, %cst_38 [1] : vector<8x8xf32> to vector<8xf32>
    %86 = vector.shape_cast %85 : vector<8xf32> to vector<8x1xf32>
    %87 = vector.broadcast %86 : vector<8x1xf32> to vector<8x8xf32>
    %88 = arith.subf %84, %87 : vector<8x8xf32>
    %89 = math.exp %88 : vector<8x8xf32>
    %cst_39 = arith.constant dense<0.000000e+00> : vector<8xf32>
    %90 = vector.multi_reduction <add>, %89, %cst_39 [1] : vector<8x8xf32> to vector<8xf32>
    %91 = vector.shape_cast %90 : vector<8xf32> to vector<8x1xf32>
    %92 = tpu.reciprocal %91 {approx = true} : vector<8x1xf32> -> vector<8x1xf32>
    %93 = vector.broadcast %92 : vector<8x1xf32> to vector<8x8xf32>
    %94 = arith.mulf %89, %93 : vector<8x8xf32>
    %95 = arith.truncf %94 : vector<8x8xf32> to vector<8x8xbf16>
    %cst_40 = arith.constant dense<0.000000e+00> : vector<8x64xf32>
    %96 = tpu.matmul %95, %79, %cst_40 {dimension_numbers = #tpu.dot_dimension_numbers<[1], [0], [0], [1], [0, 0, 1, 1], [], []>} : vector<8x8xbf16>, vector<8x64xbf16>, vector<8x64xf32> -> vector<8x64xf32>
    %97 = arith.truncf %96 : vector<8x64xf32> to vector<8x64xbf16>
    %98 = vector.extract_strided_slice %31 {offsets = [64, 0], sizes = [64, 128], strides = [1, 1]} : vector<128x128xbf16> to vector<64x128xbf16>
    %cst_41 = arith.constant dense<0.000000e+00> : vector<8x128xf32>
    %99 = tpu.matmul %97, %98, %cst_41 {dimension_numbers = #tpu.dot_dimension_numbers<[1], [0], [0], [1], [0, 0, 1, 1], [], []>} : vector<8x64xbf16>, vector<64x128xbf16>, vector<8x128xf32> -> vector<8x128xf32>
    %100 = arith.addf %73, %99 : vector<8x128xf32>
    %101 = vector.extract_strided_slice %27 {offsets = [1, 0], sizes = [1, 8], strides = [1, 1]} : vector<2x8xf32> to vector<1x8xf32>
    %cst_42 = arith.constant 0.000000e+00 : f32
    %102 = vector.broadcast %cst_42 : f32 to vector<8x128xf32>
    %103 = vector.extract_strided_slice %42 {offsets = [8, 0], sizes = [8, 64], strides = [1, 1]} : vector<16x128xf32> to vector<8x64xf32>
    %104 = arith.truncf %103 : vector<8x64xf32> to vector<8x64xbf16>
    %105 = vector.extract_strided_slice %43 {offsets = [8, 0], sizes = [8, 64], strides = [1, 1]} : vector<16x128xf32> to vector<8x64xf32>
    %106 = arith.truncf %105 : vector<8x64xf32> to vector<8x64xbf16>
    %107 = vector.extract_strided_slice %44 {offsets = [8, 0], sizes = [8, 64], strides = [1, 1]} : vector<16x128xf32> to vector<8x64xf32>
    %108 = arith.truncf %107 : vector<8x64xf32> to vector<8x64xbf16>
    %cst_43 = arith.constant dense<0.000000e+00> : vector<8x8xf32>
    %109 = tpu.matmul %104, %106, %cst_43 {dimension_numbers = #tpu.dot_dimension_numbers<[1], [1], [0], [0], [0, 0, 1, 0], [], []>} : vector<8x64xbf16>, vector<8x64xbf16>, vector<8x8xf32> -> vector<8x8xf32>
    %cst_44 = arith.constant 1.250000e-01 : f32
    %110 = vector.broadcast %cst_44 : f32 to vector<8x8xf32>
    %111 = arith.mulf %109, %110 : vector<8x8xf32>
    %112 = vector.broadcast %101 : vector<1x8xf32> to vector<8x8xf32>
    %113 = arith.addf %111, %112 : vector<8x8xf32>
    %cst_45 = arith.constant dense<0xFF800000> : vector<8xf32>
    %114 = vector.multi_reduction <maximumf>, %113, %cst_45 [1] : vector<8x8xf32> to vector<8xf32>
    %115 = vector.shape_cast %114 : vector<8xf32> to vector<8x1xf32>
    %116 = vector.broadcast %115 : vector<8x1xf32> to vector<8x8xf32>
    %117 = arith.subf %113, %116 : vector<8x8xf32>
    %118 = math.exp %117 : vector<8x8xf32>
    %cst_46 = arith.constant dense<0.000000e+00> : vector<8xf32>
    %119 = vector.multi_reduction <add>, %118, %cst_46 [1] : vector<8x8xf32> to vector<8xf32>
    %120 = vector.shape_cast %119 : vector<8xf32> to vector<8x1xf32>
    %121 = tpu.reciprocal %120 {approx = true} : vector<8x1xf32> -> vector<8x1xf32>
    %122 = vector.broadcast %121 : vector<8x1xf32> to vector<8x8xf32>
    %123 = arith.mulf %118, %122 : vector<8x8xf32>
    %124 = arith.truncf %123 : vector<8x8xf32> to vector<8x8xbf16>
    %cst_47 = arith.constant dense<0.000000e+00> : vector<8x64xf32>
    %125 = tpu.matmul %124, %108, %cst_47 {dimension_numbers = #tpu.dot_dimension_numbers<[1], [0], [0], [1], [0, 0, 1, 1], [], []>} : vector<8x8xbf16>, vector<8x64xbf16>, vector<8x64xf32> -> vector<8x64xf32>
    %126 = arith.truncf %125 : vector<8x64xf32> to vector<8x64xbf16>
    %127 = vector.extract_strided_slice %31 {offsets = [0, 0], sizes = [64, 128], strides = [1, 1]} : vector<128x128xbf16> to vector<64x128xbf16>
    %cst_48 = arith.constant dense<0.000000e+00> : vector<8x128xf32>
    %128 = tpu.matmul %126, %127, %cst_48 {dimension_numbers = #tpu.dot_dimension_numbers<[1], [0], [0], [1], [0, 0, 1, 1], [], []>} : vector<8x64xbf16>, vector<64x128xbf16>, vector<8x128xf32> -> vector<8x128xf32>
    %129 = arith.addf %102, %128 : vector<8x128xf32>
    %130 = vector.extract_strided_slice %42 {offsets = [8, 64], sizes = [8, 64], strides = [1, 1]} : vector<16x128xf32> to vector<8x64xf32>
    %131 = arith.truncf %130 : vector<8x64xf32> to vector<8x64xbf16>
    %132 = vector.extract_strided_slice %43 {offsets = [8, 64], sizes = [8, 64], strides = [1, 1]} : vector<16x128xf32> to vector<8x64xf32>
    %133 = arith.truncf %132 : vector<8x64xf32> to vector<8x64xbf16>
    %134 = vector.extract_strided_slice %44 {offsets = [8, 64], sizes = [8, 64], strides = [1, 1]} : vector<16x128xf32> to vector<8x64xf32>
    %135 = arith.truncf %134 : vector<8x64xf32> to vector<8x64xbf16>
    %cst_49 = arith.constant dense<0.000000e+00> : vector<8x8xf32>
    %136 = tpu.matmul %131, %133, %cst_49 {dimension_numbers = #tpu.dot_dimension_numbers<[1], [1], [0], [0], [0, 0, 1, 0], [], []>} : vector<8x64xbf16>, vector<8x64xbf16>, vector<8x8xf32> -> vector<8x8xf32>
    %cst_50 = arith.constant 1.250000e-01 : f32
    %137 = vector.broadcast %cst_50 : f32 to vector<8x8xf32>
    %138 = arith.mulf %136, %137 : vector<8x8xf32>
    %139 = vector.broadcast %101 : vector<1x8xf32> to vector<8x8xf32>
    %140 = arith.addf %138, %139 : vector<8x8xf32>
    %cst_51 = arith.constant dense<0xFF800000> : vector<8xf32>
    %141 = vector.multi_reduction <maximumf>, %140, %cst_51 [1] : vector<8x8xf32> to vector<8xf32>
    %142 = vector.shape_cast %141 : vector<8xf32> to vector<8x1xf32>
    %143 = vector.broadcast %142 : vector<8x1xf32> to vector<8x8xf32>
    %144 = arith.subf %140, %143 : vector<8x8xf32>
    %145 = math.exp %144 : vector<8x8xf32>
    %cst_52 = arith.constant dense<0.000000e+00> : vector<8xf32>
    %146 = vector.multi_reduction <add>, %145, %cst_52 [1] : vector<8x8xf32> to vector<8xf32>
    %147 = vector.shape_cast %146 : vector<8xf32> to vector<8x1xf32>
    %148 = tpu.reciprocal %147 {approx = true} : vector<8x1xf32> -> vector<8x1xf32>
    %149 = vector.broadcast %148 : vector<8x1xf32> to vector<8x8xf32>
    %150 = arith.mulf %145, %149 : vector<8x8xf32>
    %151 = arith.truncf %150 : vector<8x8xf32> to vector<8x8xbf16>
    %cst_53 = arith.constant dense<0.000000e+00> : vector<8x64xf32>
    %152 = tpu.matmul %151, %135, %cst_53 {dimension_numbers = #tpu.dot_dimension_numbers<[1], [0], [0], [1], [0, 0, 1, 1], [], []>} : vector<8x8xbf16>, vector<8x64xbf16>, vector<8x64xf32> -> vector<8x64xf32>
    %153 = arith.truncf %152 : vector<8x64xf32> to vector<8x64xbf16>
    %154 = vector.extract_strided_slice %31 {offsets = [64, 0], sizes = [64, 128], strides = [1, 1]} : vector<128x128xbf16> to vector<64x128xbf16>
    %cst_54 = arith.constant dense<0.000000e+00> : vector<8x128xf32>
    %155 = tpu.matmul %153, %154, %cst_54 {dimension_numbers = #tpu.dot_dimension_numbers<[1], [0], [0], [1], [0, 0, 1, 1], [], []>} : vector<8x64xbf16>, vector<64x128xbf16>, vector<8x128xf32> -> vector<8x128xf32>
    %156 = arith.addf %129, %155 : vector<8x128xf32>
    %157 = tpu.concatenate %100, %156 in 0 : vector<8x128xf32>, vector<8x128xf32> -> vector<16x128xf32>
    %c0_55 = arith.constant 0 : index
    %c0_56 = arith.constant 0 : index
    %c0_57 = arith.constant 0 : index
    %158 = vector.load %arg8[%c0_55, %c0_56, %c0_57] : memref<2x1x128xf32, #tpu.memory_space<vmem>>, vector<1x1x128xf32>
    %159 = vector.shape_cast %158 : vector<1x1x128xf32> to vector<1x128xf32>
    %160 = vector.broadcast %159 : vector<1x128xf32> to vector<16x128xf32>
    %161 = arith.addf %157, %160 : vector<16x128xf32>
    %162 = arith.addf %161, %22 : vector<16x128xf32>
    %c0_58 = arith.constant 0 : index
    %c0_59 = arith.constant 0 : index
    %c0_60 = arith.constant 0 : index
    %163 = vector.load %arg9[%c0_58, %c0_59, %c0_60] : memref<2x1x128xf32, #tpu.memory_space<vmem>>, vector<1x1x128xf32>
    %164 = vector.shape_cast %163 : vector<1x1x128xf32> to vector<1x128xf32>
    %c0_61 = arith.constant 0 : index
    %c0_62 = arith.constant 0 : index
    %c0_63 = arith.constant 0 : index
    %165 = vector.load %arg10[%c0_61, %c0_62, %c0_63] : memref<2x1x128xf32, #tpu.memory_space<vmem>>, vector<1x1x128xf32>
    %166 = vector.shape_cast %165 : vector<1x1x128xf32> to vector<1x128xf32>
    %cst_64 = arith.constant dense<0.000000e+00> : vector<16xf32>
    %167 = vector.multi_reduction <add>, %162, %cst_64 [1] : vector<16x128xf32> to vector<16xf32>
    %168 = vector.shape_cast %167 : vector<16xf32> to vector<16x1xf32>
    %cst_65 = arith.constant 1.280000e+02 : f32
    %169 = vector.broadcast %cst_65 : f32 to vector<16x1xf32>
    %170 = arith.divf %168, %169 : vector<16x1xf32>
    %171 = vector.broadcast %170 : vector<16x1xf32> to vector<16x128xf32>
    %172 = arith.subf %162, %171 : vector<16x128xf32>
    %173 = arith.mulf %172, %172 : vector<16x128xf32>
    %cst_66 = arith.constant dense<0.000000e+00> : vector<16xf32>
    %174 = vector.multi_reduction <add>, %173, %cst_66 [1] : vector<16x128xf32> to vector<16xf32>
    %175 = vector.shape_cast %174 : vector<16xf32> to vector<16x1xf32>
    %cst_67 = arith.constant 1.280000e+02 : f32
    %176 = vector.broadcast %cst_67 : f32 to vector<16x1xf32>
    %177 = arith.divf %175, %176 : vector<16x1xf32>
    %cst_68 = arith.constant 9.99999996E-13 : f32
    %178 = vector.broadcast %cst_68 : f32 to vector<16x1xf32>
    %179 = arith.addf %177, %178 : vector<16x1xf32>
    %180 = math.rsqrt %179 : vector<16x1xf32>
    %181 = vector.broadcast %180 : vector<16x1xf32> to vector<16x128xf32>
    %182 = arith.mulf %172, %181 : vector<16x128xf32>
    %183 = vector.broadcast %164 : vector<1x128xf32> to vector<16x128xf32>
    %184 = arith.mulf %182, %183 : vector<16x128xf32>
    %185 = vector.broadcast %166 : vector<1x128xf32> to vector<16x128xf32>
    %186 = arith.addf %184, %185 : vector<16x128xf32>
    %187 = arith.truncf %186 : vector<16x128xf32> to vector<16x128xbf16>
    %cst_69 = arith.constant dense<0.000000e+00> : vector<16x512xf32>
    %188 = tpu.matmul %187, %33, %cst_69 {dimension_numbers = #tpu.dot_dimension_numbers<[1], [0], [0], [1], [0, 0, 1, 1], [], []>} : vector<16x128xbf16>, vector<128x512xbf16>, vector<16x512xf32> -> vector<16x512xf32>
    %c0_70 = arith.constant 0 : index
    %c0_71 = arith.constant 0 : index
    %c0_72 = arith.constant 0 : index
    %189 = vector.load %arg12[%c0_70, %c0_71, %c0_72] : memref<2x1x512xf32, #tpu.memory_space<vmem>>, vector<1x1x512xf32>
    %190 = vector.shape_cast %189 : vector<1x1x512xf32> to vector<1x512xf32>
    %191 = vector.broadcast %190 : vector<1x512xf32> to vector<16x512xf32>
    %192 = arith.addf %188, %191 : vector<16x512xf32>
    %cst_73 = arith.constant 5.000000e-01 : f32
    %193 = vector.broadcast %cst_73 : f32 to vector<16x512xf32>
    %194 = arith.mulf %193, %192 : vector<16x512xf32>
    %cst_74 = arith.constant 4.471500e-02 : f32
    %195 = vector.broadcast %cst_74 : f32 to vector<16x512xf32>
    %196 = arith.mulf %195, %192 : vector<16x512xf32>
    %197 = arith.mulf %196, %192 : vector<16x512xf32>
    %198 = arith.mulf %197, %192 : vector<16x512xf32>
    %199 = arith.addf %192, %198 : vector<16x512xf32>
    %cst_75 = arith.constant 0.797884583 : f32
    %200 = vector.broadcast %cst_75 : f32 to vector<16x512xf32>
    %201 = arith.mulf %200, %199 : vector<16x512xf32>
    %202 = math.tanh %201 : vector<16x512xf32>
    %cst_76 = arith.constant 1.000000e+00 : f32
    %203 = vector.broadcast %cst_76 : f32 to vector<16x512xf32>
    %204 = arith.addf %203, %202 : vector<16x512xf32>
    %205 = arith.mulf %194, %204 : vector<16x512xf32>
    %206 = arith.truncf %205 : vector<16x512xf32> to vector<16x512xbf16>
    %cst_77 = arith.constant dense<0.000000e+00> : vector<16x128xf32>
    %207 = tpu.matmul %206, %35, %cst_77 {dimension_numbers = #tpu.dot_dimension_numbers<[1], [0], [0], [1], [0, 0, 1, 1], [], []>} : vector<16x512xbf16>, vector<512x128xbf16>, vector<16x128xf32> -> vector<16x128xf32>
    %c0_78 = arith.constant 0 : index
    %c0_79 = arith.constant 0 : index
    %c0_80 = arith.constant 0 : index
    %208 = vector.load %arg14[%c0_78, %c0_79, %c0_80] : memref<2x1x128xf32, #tpu.memory_space<vmem>>, vector<1x1x128xf32>
    %209 = vector.shape_cast %208 : vector<1x1x128xf32> to vector<1x128xf32>
    %210 = vector.broadcast %209 : vector<1x128xf32> to vector<16x128xf32>
    %211 = arith.addf %207, %210 : vector<16x128xf32>
    %212 = arith.addf %211, %186 : vector<16x128xf32>
    %c0_81 = arith.constant 0 : index
    %c0_82 = arith.constant 0 : index
    %c0_83 = arith.constant 0 : index
    %213 = vector.load %arg15[%c0_81, %c0_82, %c0_83] : memref<2x1x128xf32, #tpu.memory_space<vmem>>, vector<1x1x128xf32>
    %214 = vector.shape_cast %213 : vector<1x1x128xf32> to vector<1x128xf32>
    %c0_84 = arith.constant 0 : index
    %c0_85 = arith.constant 0 : index
    %c0_86 = arith.constant 0 : index
    %215 = vector.load %arg16[%c0_84, %c0_85, %c0_86] : memref<2x1x128xf32, #tpu.memory_space<vmem>>, vector<1x1x128xf32>
    %216 = vector.shape_cast %215 : vector<1x1x128xf32> to vector<1x128xf32>
    %cst_87 = arith.constant dense<0.000000e+00> : vector<16xf32>
    %217 = vector.multi_reduction <add>, %212, %cst_87 [1] : vector<16x128xf32> to vector<16xf32>
    %218 = vector.shape_cast %217 : vector<16xf32> to vector<16x1xf32>
    %cst_88 = arith.constant 1.280000e+02 : f32
    %219 = vector.broadcast %cst_88 : f32 to vector<16x1xf32>
    %220 = arith.divf %218, %219 : vector<16x1xf32>
    %221 = vector.broadcast %220 : vector<16x1xf32> to vector<16x128xf32>
    %222 = arith.subf %212, %221 : vector<16x128xf32>
    %223 = arith.mulf %222, %222 : vector<16x128xf32>
    %cst_89 = arith.constant dense<0.000000e+00> : vector<16xf32>
    %224 = vector.multi_reduction <add>, %223, %cst_89 [1] : vector<16x128xf32> to vector<16xf32>
    %225 = vector.shape_cast %224 : vector<16xf32> to vector<16x1xf32>
    %cst_90 = arith.constant 1.280000e+02 : f32
    %226 = vector.broadcast %cst_90 : f32 to vector<16x1xf32>
    %227 = arith.divf %225, %226 : vector<16x1xf32>
    %cst_91 = arith.constant 9.99999996E-13 : f32
    %228 = vector.broadcast %cst_91 : f32 to vector<16x1xf32>
    %229 = arith.addf %227, %228 : vector<16x1xf32>
    %230 = math.rsqrt %229 : vector<16x1xf32>
    %231 = vector.broadcast %230 : vector<16x1xf32> to vector<16x128xf32>
    %232 = arith.mulf %222, %231 : vector<16x128xf32>
    %233 = vector.broadcast %214 : vector<1x128xf32> to vector<16x128xf32>
    %234 = arith.mulf %232, %233 : vector<16x128xf32>
    %235 = vector.broadcast %216 : vector<1x128xf32> to vector<16x128xf32>
    %236 = arith.addf %234, %235 : vector<16x128xf32>
    %c1 = arith.constant 1 : index
    %c0_92 = arith.constant 0 : index
    %c0_93 = arith.constant 0 : index
    %237 = vector.load %arg5[%c1, %c0_92, %c0_93] : memref<2x128x384xbf16, #tpu.memory_space<vmem>>, vector<1x128x384xbf16>
    %238 = vector.shape_cast %237 : vector<1x128x384xbf16> to vector<128x384xbf16>
    %c1_94 = arith.constant 1 : index
    %c0_95 = arith.constant 0 : index
    %c0_96 = arith.constant 0 : index
    %239 = vector.load %arg7[%c1_94, %c0_95, %c0_96] : memref<2x128x128xbf16, #tpu.memory_space<vmem>>, vector<1x128x128xbf16>
    %240 = vector.shape_cast %239 : vector<1x128x128xbf16> to vector<128x128xbf16>
    %c1_97 = arith.constant 1 : index
    %c0_98 = arith.constant 0 : index
    %c0_99 = arith.constant 0 : index
    %241 = vector.load %arg11[%c1_97, %c0_98, %c0_99] : memref<2x128x512xbf16, #tpu.memory_space<vmem>>, vector<1x128x512xbf16>
    %242 = vector.shape_cast %241 : vector<1x128x512xbf16> to vector<128x512xbf16>
    %c1_100 = arith.constant 1 : index
    %c0_101 = arith.constant 0 : index
    %c0_102 = arith.constant 0 : index
    %243 = vector.load %arg13[%c1_100, %c0_101, %c0_102] : memref<2x512x128xbf16, #tpu.memory_space<vmem>>, vector<1x512x128xbf16>
    %244 = vector.shape_cast %243 : vector<1x512x128xbf16> to vector<512x128xbf16>
    %245 = arith.truncf %236 : vector<16x128xf32> to vector<16x128xbf16>
    %cst_103 = arith.constant dense<0.000000e+00> : vector<16x384xf32>
    %246 = tpu.matmul %245, %238, %cst_103 {dimension_numbers = #tpu.dot_dimension_numbers<[1], [0], [0], [1], [0, 0, 1, 1], [], []>} : vector<16x128xbf16>, vector<128x384xbf16>, vector<16x384xf32> -> vector<16x384xf32>
    %c1_104 = arith.constant 1 : index
    %c0_105 = arith.constant 0 : index
    %c0_106 = arith.constant 0 : index
    %247 = vector.load %arg6[%c1_104, %c0_105, %c0_106] : memref<2x1x384xf32, #tpu.memory_space<vmem>>, vector<1x1x384xf32>
    %248 = vector.shape_cast %247 : vector<1x1x384xf32> to vector<1x384xf32>
    %249 = vector.broadcast %248 : vector<1x384xf32> to vector<16x384xf32>
    %250 = arith.addf %246, %249 : vector<16x384xf32>
    %251 = vector.extract_strided_slice %250 {offsets = [0, 0], sizes = [16, 128], strides = [1, 1]} : vector<16x384xf32> to vector<16x128xf32>
    %252 = vector.extract_strided_slice %250 {offsets = [0, 128], sizes = [16, 128], strides = [1, 1]} : vector<16x384xf32> to vector<16x128xf32>
    %253 = vector.extract_strided_slice %250 {offsets = [0, 256], sizes = [16, 128], strides = [1, 1]} : vector<16x384xf32> to vector<16x128xf32>
    %254 = vector.extract_strided_slice %27 {offsets = [0, 0], sizes = [1, 8], strides = [1, 1]} : vector<2x8xf32> to vector<1x8xf32>
    %cst_107 = arith.constant 0.000000e+00 : f32
    %255 = vector.broadcast %cst_107 : f32 to vector<8x128xf32>
    %256 = vector.extract_strided_slice %251 {offsets = [0, 0], sizes = [8, 64], strides = [1, 1]} : vector<16x128xf32> to vector<8x64xf32>
    %257 = arith.truncf %256 : vector<8x64xf32> to vector<8x64xbf16>
    %258 = vector.extract_strided_slice %252 {offsets = [0, 0], sizes = [8, 64], strides = [1, 1]} : vector<16x128xf32> to vector<8x64xf32>
    %259 = arith.truncf %258 : vector<8x64xf32> to vector<8x64xbf16>
    %260 = vector.extract_strided_slice %253 {offsets = [0, 0], sizes = [8, 64], strides = [1, 1]} : vector<16x128xf32> to vector<8x64xf32>
    %261 = arith.truncf %260 : vector<8x64xf32> to vector<8x64xbf16>
    %cst_108 = arith.constant dense<0.000000e+00> : vector<8x8xf32>
    %262 = tpu.matmul %257, %259, %cst_108 {dimension_numbers = #tpu.dot_dimension_numbers<[1], [1], [0], [0], [0, 0, 1, 0], [], []>} : vector<8x64xbf16>, vector<8x64xbf16>, vector<8x8xf32> -> vector<8x8xf32>
    %cst_109 = arith.constant 1.250000e-01 : f32
    %263 = vector.broadcast %cst_109 : f32 to vector<8x8xf32>
    %264 = arith.mulf %262, %263 : vector<8x8xf32>
    %265 = vector.broadcast %254 : vector<1x8xf32> to vector<8x8xf32>
    %266 = arith.addf %264, %265 : vector<8x8xf32>
    %cst_110 = arith.constant dense<0xFF800000> : vector<8xf32>
    %267 = vector.multi_reduction <maximumf>, %266, %cst_110 [1] : vector<8x8xf32> to vector<8xf32>
    %268 = vector.shape_cast %267 : vector<8xf32> to vector<8x1xf32>
    %269 = vector.broadcast %268 : vector<8x1xf32> to vector<8x8xf32>
    %270 = arith.subf %266, %269 : vector<8x8xf32>
    %271 = math.exp %270 : vector<8x8xf32>
    %cst_111 = arith.constant dense<0.000000e+00> : vector<8xf32>
    %272 = vector.multi_reduction <add>, %271, %cst_111 [1] : vector<8x8xf32> to vector<8xf32>
    %273 = vector.shape_cast %272 : vector<8xf32> to vector<8x1xf32>
    %274 = tpu.reciprocal %273 {approx = true} : vector<8x1xf32> -> vector<8x1xf32>
    %275 = vector.broadcast %274 : vector<8x1xf32> to vector<8x8xf32>
    %276 = arith.mulf %271, %275 : vector<8x8xf32>
    %277 = arith.truncf %276 : vector<8x8xf32> to vector<8x8xbf16>
    %cst_112 = arith.constant dense<0.000000e+00> : vector<8x64xf32>
    %278 = tpu.matmul %277, %261, %cst_112 {dimension_numbers = #tpu.dot_dimension_numbers<[1], [0], [0], [1], [0, 0, 1, 1], [], []>} : vector<8x8xbf16>, vector<8x64xbf16>, vector<8x64xf32> -> vector<8x64xf32>
    %279 = arith.truncf %278 : vector<8x64xf32> to vector<8x64xbf16>
    %280 = vector.extract_strided_slice %240 {offsets = [0, 0], sizes = [64, 128], strides = [1, 1]} : vector<128x128xbf16> to vector<64x128xbf16>
    %cst_113 = arith.constant dense<0.000000e+00> : vector<8x128xf32>
    %281 = tpu.matmul %279, %280, %cst_113 {dimension_numbers = #tpu.dot_dimension_numbers<[1], [0], [0], [1], [0, 0, 1, 1], [], []>} : vector<8x64xbf16>, vector<64x128xbf16>, vector<8x128xf32> -> vector<8x128xf32>
    %282 = arith.addf %255, %281 : vector<8x128xf32>
    %283 = vector.extract_strided_slice %251 {offsets = [0, 64], sizes = [8, 64], strides = [1, 1]} : vector<16x128xf32> to vector<8x64xf32>
    %284 = arith.truncf %283 : vector<8x64xf32> to vector<8x64xbf16>
    %285 = vector.extract_strided_slice %252 {offsets = [0, 64], sizes = [8, 64], strides = [1, 1]} : vector<16x128xf32> to vector<8x64xf32>
    %286 = arith.truncf %285 : vector<8x64xf32> to vector<8x64xbf16>
    %287 = vector.extract_strided_slice %253 {offsets = [0, 64], sizes = [8, 64], strides = [1, 1]} : vector<16x128xf32> to vector<8x64xf32>
    %288 = arith.truncf %287 : vector<8x64xf32> to vector<8x64xbf16>
    %cst_114 = arith.constant dense<0.000000e+00> : vector<8x8xf32>
    %289 = tpu.matmul %284, %286, %cst_114 {dimension_numbers = #tpu.dot_dimension_numbers<[1], [1], [0], [0], [0, 0, 1, 0], [], []>} : vector<8x64xbf16>, vector<8x64xbf16>, vector<8x8xf32> -> vector<8x8xf32>
    %cst_115 = arith.constant 1.250000e-01 : f32
    %290 = vector.broadcast %cst_115 : f32 to vector<8x8xf32>
    %291 = arith.mulf %289, %290 : vector<8x8xf32>
    %292 = vector.broadcast %254 : vector<1x8xf32> to vector<8x8xf32>
    %293 = arith.addf %291, %292 : vector<8x8xf32>
    %cst_116 = arith.constant dense<0xFF800000> : vector<8xf32>
    %294 = vector.multi_reduction <maximumf>, %293, %cst_116 [1] : vector<8x8xf32> to vector<8xf32>
    %295 = vector.shape_cast %294 : vector<8xf32> to vector<8x1xf32>
    %296 = vector.broadcast %295 : vector<8x1xf32> to vector<8x8xf32>
    %297 = arith.subf %293, %296 : vector<8x8xf32>
    %298 = math.exp %297 : vector<8x8xf32>
    %cst_117 = arith.constant dense<0.000000e+00> : vector<8xf32>
    %299 = vector.multi_reduction <add>, %298, %cst_117 [1] : vector<8x8xf32> to vector<8xf32>
    %300 = vector.shape_cast %299 : vector<8xf32> to vector<8x1xf32>
    %301 = tpu.reciprocal %300 {approx = true} : vector<8x1xf32> -> vector<8x1xf32>
    %302 = vector.broadcast %301 : vector<8x1xf32> to vector<8x8xf32>
    %303 = arith.mulf %298, %302 : vector<8x8xf32>
    %304 = arith.truncf %303 : vector<8x8xf32> to vector<8x8xbf16>
    %cst_118 = arith.constant dense<0.000000e+00> : vector<8x64xf32>
    %305 = tpu.matmul %304, %288, %cst_118 {dimension_numbers = #tpu.dot_dimension_numbers<[1], [0], [0], [1], [0, 0, 1, 1], [], []>} : vector<8x8xbf16>, vector<8x64xbf16>, vector<8x64xf32> -> vector<8x64xf32>
    %306 = arith.truncf %305 : vector<8x64xf32> to vector<8x64xbf16>
    %307 = vector.extract_strided_slice %240 {offsets = [64, 0], sizes = [64, 128], strides = [1, 1]} : vector<128x128xbf16> to vector<64x128xbf16>
    %cst_119 = arith.constant dense<0.000000e+00> : vector<8x128xf32>
    %308 = tpu.matmul %306, %307, %cst_119 {dimension_numbers = #tpu.dot_dimension_numbers<[1], [0], [0], [1], [0, 0, 1, 1], [], []>} : vector<8x64xbf16>, vector<64x128xbf16>, vector<8x128xf32> -> vector<8x128xf32>
    %309 = arith.addf %282, %308 : vector<8x128xf32>
    %310 = vector.extract_strided_slice %27 {offsets = [1, 0], sizes = [1, 8], strides = [1, 1]} : vector<2x8xf32> to vector<1x8xf32>
    %cst_120 = arith.constant 0.000000e+00 : f32
    %311 = vector.broadcast %cst_120 : f32 to vector<8x128xf32>
    %312 = vector.extract_strided_slice %251 {offsets = [8, 0], sizes = [8, 64], strides = [1, 1]} : vector<16x128xf32> to vector<8x64xf32>
    %313 = arith.truncf %312 : vector<8x64xf32> to vector<8x64xbf16>
    %314 = vector.extract_strided_slice %252 {offsets = [8, 0], sizes = [8, 64], strides = [1, 1]} : vector<16x128xf32> to vector<8x64xf32>
    %315 = arith.truncf %314 : vector<8x64xf32> to vector<8x64xbf16>
    %316 = vector.extract_strided_slice %253 {offsets = [8, 0], sizes = [8, 64], strides = [1, 1]} : vector<16x128xf32> to vector<8x64xf32>
    %317 = arith.truncf %316 : vector<8x64xf32> to vector<8x64xbf16>
    %cst_121 = arith.constant dense<0.000000e+00> : vector<8x8xf32>
    %318 = tpu.matmul %313, %315, %cst_121 {dimension_numbers = #tpu.dot_dimension_numbers<[1], [1], [0], [0], [0, 0, 1, 0], [], []>} : vector<8x64xbf16>, vector<8x64xbf16>, vector<8x8xf32> -> vector<8x8xf32>
    %cst_122 = arith.constant 1.250000e-01 : f32
    %319 = vector.broadcast %cst_122 : f32 to vector<8x8xf32>
    %320 = arith.mulf %318, %319 : vector<8x8xf32>
    %321 = vector.broadcast %310 : vector<1x8xf32> to vector<8x8xf32>
    %322 = arith.addf %320, %321 : vector<8x8xf32>
    %cst_123 = arith.constant dense<0xFF800000> : vector<8xf32>
    %323 = vector.multi_reduction <maximumf>, %322, %cst_123 [1] : vector<8x8xf32> to vector<8xf32>
    %324 = vector.shape_cast %323 : vector<8xf32> to vector<8x1xf32>
    %325 = vector.broadcast %324 : vector<8x1xf32> to vector<8x8xf32>
    %326 = arith.subf %322, %325 : vector<8x8xf32>
    %327 = math.exp %326 : vector<8x8xf32>
    %cst_124 = arith.constant dense<0.000000e+00> : vector<8xf32>
    %328 = vector.multi_reduction <add>, %327, %cst_124 [1] : vector<8x8xf32> to vector<8xf32>
    %329 = vector.shape_cast %328 : vector<8xf32> to vector<8x1xf32>
    %330 = tpu.reciprocal %329 {approx = true} : vector<8x1xf32> -> vector<8x1xf32>
    %331 = vector.broadcast %330 : vector<8x1xf32> to vector<8x8xf32>
    %332 = arith.mulf %327, %331 : vector<8x8xf32>
    %333 = arith.truncf %332 : vector<8x8xf32> to vector<8x8xbf16>
    %cst_125 = arith.constant dense<0.000000e+00> : vector<8x64xf32>
    %334 = tpu.matmul %333, %317, %cst_125 {dimension_numbers = #tpu.dot_dimension_numbers<[1], [0], [0], [1], [0, 0, 1, 1], [], []>} : vector<8x8xbf16>, vector<8x64xbf16>, vector<8x64xf32> -> vector<8x64xf32>
    %335 = arith.truncf %334 : vector<8x64xf32> to vector<8x64xbf16>
    %336 = vector.extract_strided_slice %240 {offsets = [0, 0], sizes = [64, 128], strides = [1, 1]} : vector<128x128xbf16> to vector<64x128xbf16>
    %cst_126 = arith.constant dense<0.000000e+00> : vector<8x128xf32>
    %337 = tpu.matmul %335, %336, %cst_126 {dimension_numbers = #tpu.dot_dimension_numbers<[1], [0], [0], [1], [0, 0, 1, 1], [], []>} : vector<8x64xbf16>, vector<64x128xbf16>, vector<8x128xf32> -> vector<8x128xf32>
    %338 = arith.addf %311, %337 : vector<8x128xf32>
    %339 = vector.extract_strided_slice %251 {offsets = [8, 64], sizes = [8, 64], strides = [1, 1]} : vector<16x128xf32> to vector<8x64xf32>
    %340 = arith.truncf %339 : vector<8x64xf32> to vector<8x64xbf16>
    %341 = vector.extract_strided_slice %252 {offsets = [8, 64], sizes = [8, 64], strides = [1, 1]} : vector<16x128xf32> to vector<8x64xf32>
    %342 = arith.truncf %341 : vector<8x64xf32> to vector<8x64xbf16>
    %343 = vector.extract_strided_slice %253 {offsets = [8, 64], sizes = [8, 64], strides = [1, 1]} : vector<16x128xf32> to vector<8x64xf32>
    %344 = arith.truncf %343 : vector<8x64xf32> to vector<8x64xbf16>
    %cst_127 = arith.constant dense<0.000000e+00> : vector<8x8xf32>
    %345 = tpu.matmul %340, %342, %cst_127 {dimension_numbers = #tpu.dot_dimension_numbers<[1], [1], [0], [0], [0, 0, 1, 0], [], []>} : vector<8x64xbf16>, vector<8x64xbf16>, vector<8x8xf32> -> vector<8x8xf32>
    %cst_128 = arith.constant 1.250000e-01 : f32
    %346 = vector.broadcast %cst_128 : f32 to vector<8x8xf32>
    %347 = arith.mulf %345, %346 : vector<8x8xf32>
    %348 = vector.broadcast %310 : vector<1x8xf32> to vector<8x8xf32>
    %349 = arith.addf %347, %348 : vector<8x8xf32>
    %cst_129 = arith.constant dense<0xFF800000> : vector<8xf32>
    %350 = vector.multi_reduction <maximumf>, %349, %cst_129 [1] : vector<8x8xf32> to vector<8xf32>
    %351 = vector.shape_cast %350 : vector<8xf32> to vector<8x1xf32>
    %352 = vector.broadcast %351 : vector<8x1xf32> to vector<8x8xf32>
    %353 = arith.subf %349, %352 : vector<8x8xf32>
    %354 = math.exp %353 : vector<8x8xf32>
    %cst_130 = arith.constant dense<0.000000e+00> : vector<8xf32>
    %355 = vector.multi_reduction <add>, %354, %cst_130 [1] : vector<8x8xf32> to vector<8xf32>
    %356 = vector.shape_cast %355 : vector<8xf32> to vector<8x1xf32>
    %357 = tpu.reciprocal %356 {approx = true} : vector<8x1xf32> -> vector<8x1xf32>
    %358 = vector.broadcast %357 : vector<8x1xf32> to vector<8x8xf32>
    %359 = arith.mulf %354, %358 : vector<8x8xf32>
    %360 = arith.truncf %359 : vector<8x8xf32> to vector<8x8xbf16>
    %cst_131 = arith.constant dense<0.000000e+00> : vector<8x64xf32>
    %361 = tpu.matmul %360, %344, %cst_131 {dimension_numbers = #tpu.dot_dimension_numbers<[1], [0], [0], [1], [0, 0, 1, 1], [], []>} : vector<8x8xbf16>, vector<8x64xbf16>, vector<8x64xf32> -> vector<8x64xf32>
    %362 = arith.truncf %361 : vector<8x64xf32> to vector<8x64xbf16>
    %363 = vector.extract_strided_slice %240 {offsets = [64, 0], sizes = [64, 128], strides = [1, 1]} : vector<128x128xbf16> to vector<64x128xbf16>
    %cst_132 = arith.constant dense<0.000000e+00> : vector<8x128xf32>
    %364 = tpu.matmul %362, %363, %cst_132 {dimension_numbers = #tpu.dot_dimension_numbers<[1], [0], [0], [1], [0, 0, 1, 1], [], []>} : vector<8x64xbf16>, vector<64x128xbf16>, vector<8x128xf32> -> vector<8x128xf32>
    %365 = arith.addf %338, %364 : vector<8x128xf32>
    %366 = tpu.concatenate %309, %365 in 0 : vector<8x128xf32>, vector<8x128xf32> -> vector<16x128xf32>
    %c1_133 = arith.constant 1 : index
    %c0_134 = arith.constant 0 : index
    %c0_135 = arith.constant 0 : index
    %367 = vector.load %arg8[%c1_133, %c0_134, %c0_135] : memref<2x1x128xf32, #tpu.memory_space<vmem>>, vector<1x1x128xf32>
    %368 = vector.shape_cast %367 : vector<1x1x128xf32> to vector<1x128xf32>
    %369 = vector.broadcast %368 : vector<1x128xf32> to vector<16x128xf32>
    %370 = arith.addf %366, %369 : vector<16x128xf32>
    %371 = arith.addf %370, %236 : vector<16x128xf32>
    %c1_136 = arith.constant 1 : index
    %c0_137 = arith.constant 0 : index
    %c0_138 = arith.constant 0 : index
    %372 = vector.load %arg9[%c1_136, %c0_137, %c0_138] : memref<2x1x128xf32, #tpu.memory_space<vmem>>, vector<1x1x128xf32>
    %373 = vector.shape_cast %372 : vector<1x1x128xf32> to vector<1x128xf32>
    %c1_139 = arith.constant 1 : index
    %c0_140 = arith.constant 0 : index
    %c0_141 = arith.constant 0 : index
    %374 = vector.load %arg10[%c1_139, %c0_140, %c0_141] : memref<2x1x128xf32, #tpu.memory_space<vmem>>, vector<1x1x128xf32>
    %375 = vector.shape_cast %374 : vector<1x1x128xf32> to vector<1x128xf32>
    %cst_142 = arith.constant dense<0.000000e+00> : vector<16xf32>
    %376 = vector.multi_reduction <add>, %371, %cst_142 [1] : vector<16x128xf32> to vector<16xf32>
    %377 = vector.shape_cast %376 : vector<16xf32> to vector<16x1xf32>
    %cst_143 = arith.constant 1.280000e+02 : f32
    %378 = vector.broadcast %cst_143 : f32 to vector<16x1xf32>
    %379 = arith.divf %377, %378 : vector<16x1xf32>
    %380 = vector.broadcast %379 : vector<16x1xf32> to vector<16x128xf32>
    %381 = arith.subf %371, %380 : vector<16x128xf32>
    %382 = arith.mulf %381, %381 : vector<16x128xf32>
    %cst_144 = arith.constant dense<0.000000e+00> : vector<16xf32>
    %383 = vector.multi_reduction <add>, %382, %cst_144 [1] : vector<16x128xf32> to vector<16xf32>
    %384 = vector.shape_cast %383 : vector<16xf32> to vector<16x1xf32>
    %cst_145 = arith.constant 1.280000e+02 : f32
    %385 = vector.broadcast %cst_145 : f32 to vector<16x1xf32>
    %386 = arith.divf %384, %385 : vector<16x1xf32>
    %cst_146 = arith.constant 9.99999996E-13 : f32
    %387 = vector.broadcast %cst_146 : f32 to vector<16x1xf32>
    %388 = arith.addf %386, %387 : vector<16x1xf32>
    %389 = math.rsqrt %388 : vector<16x1xf32>
    %390 = vector.broadcast %389 : vector<16x1xf32> to vector<16x128xf32>
    %391 = arith.mulf %381, %390 : vector<16x128xf32>
    %392 = vector.broadcast %373 : vector<1x128xf32> to vector<16x128xf32>
    %393 = arith.mulf %391, %392 : vector<16x128xf32>
    %394 = vector.broadcast %375 : vector<1x128xf32> to vector<16x128xf32>
    %395 = arith.addf %393, %394 : vector<16x128xf32>
    %396 = arith.truncf %395 : vector<16x128xf32> to vector<16x128xbf16>
    %cst_147 = arith.constant dense<0.000000e+00> : vector<16x512xf32>
    %397 = tpu.matmul %396, %242, %cst_147 {dimension_numbers = #tpu.dot_dimension_numbers<[1], [0], [0], [1], [0, 0, 1, 1], [], []>} : vector<16x128xbf16>, vector<128x512xbf16>, vector<16x512xf32> -> vector<16x512xf32>
    %c1_148 = arith.constant 1 : index
    %c0_149 = arith.constant 0 : index
    %c0_150 = arith.constant 0 : index
    %398 = vector.load %arg12[%c1_148, %c0_149, %c0_150] : memref<2x1x512xf32, #tpu.memory_space<vmem>>, vector<1x1x512xf32>
    %399 = vector.shape_cast %398 : vector<1x1x512xf32> to vector<1x512xf32>
    %400 = vector.broadcast %399 : vector<1x512xf32> to vector<16x512xf32>
    %401 = arith.addf %397, %400 : vector<16x512xf32>
    %cst_151 = arith.constant 5.000000e-01 : f32
    %402 = vector.broadcast %cst_151 : f32 to vector<16x512xf32>
    %403 = arith.mulf %402, %401 : vector<16x512xf32>
    %cst_152 = arith.constant 4.471500e-02 : f32
    %404 = vector.broadcast %cst_152 : f32 to vector<16x512xf32>
    %405 = arith.mulf %404, %401 : vector<16x512xf32>
    %406 = arith.mulf %405, %401 : vector<16x512xf32>
    %407 = arith.mulf %406, %401 : vector<16x512xf32>
    %408 = arith.addf %401, %407 : vector<16x512xf32>
    %cst_153 = arith.constant 0.797884583 : f32
    %409 = vector.broadcast %cst_153 : f32 to vector<16x512xf32>
    %410 = arith.mulf %409, %408 : vector<16x512xf32>
    %411 = math.tanh %410 : vector<16x512xf32>
    %cst_154 = arith.constant 1.000000e+00 : f32
    %412 = vector.broadcast %cst_154 : f32 to vector<16x512xf32>
    %413 = arith.addf %412, %411 : vector<16x512xf32>
    %414 = arith.mulf %403, %413 : vector<16x512xf32>
    %415 = arith.truncf %414 : vector<16x512xf32> to vector<16x512xbf16>
    %cst_155 = arith.constant dense<0.000000e+00> : vector<16x128xf32>
    %416 = tpu.matmul %415, %244, %cst_155 {dimension_numbers = #tpu.dot_dimension_numbers<[1], [0], [0], [1], [0, 0, 1, 1], [], []>} : vector<16x512xbf16>, vector<512x128xbf16>, vector<16x128xf32> -> vector<16x128xf32>
    %c1_156 = arith.constant 1 : index
    %c0_157 = arith.constant 0 : index
    %c0_158 = arith.constant 0 : index
    %417 = vector.load %arg14[%c1_156, %c0_157, %c0_158] : memref<2x1x128xf32, #tpu.memory_space<vmem>>, vector<1x1x128xf32>
    %418 = vector.shape_cast %417 : vector<1x1x128xf32> to vector<1x128xf32>
    %419 = vector.broadcast %418 : vector<1x128xf32> to vector<16x128xf32>
    %420 = arith.addf %416, %419 : vector<16x128xf32>
    %421 = arith.addf %420, %395 : vector<16x128xf32>
    %c1_159 = arith.constant 1 : index
    %c0_160 = arith.constant 0 : index
    %c0_161 = arith.constant 0 : index
    %422 = vector.load %arg15[%c1_159, %c0_160, %c0_161] : memref<2x1x128xf32, #tpu.memory_space<vmem>>, vector<1x1x128xf32>
    %423 = vector.shape_cast %422 : vector<1x1x128xf32> to vector<1x128xf32>
    %c1_162 = arith.constant 1 : index
    %c0_163 = arith.constant 0 : index
    %c0_164 = arith.constant 0 : index
    %424 = vector.load %arg16[%c1_162, %c0_163, %c0_164] : memref<2x1x128xf32, #tpu.memory_space<vmem>>, vector<1x1x128xf32>
    %425 = vector.shape_cast %424 : vector<1x1x128xf32> to vector<1x128xf32>
    %cst_165 = arith.constant dense<0.000000e+00> : vector<16xf32>
    %426 = vector.multi_reduction <add>, %421, %cst_165 [1] : vector<16x128xf32> to vector<16xf32>
    %427 = vector.shape_cast %426 : vector<16xf32> to vector<16x1xf32>
    %cst_166 = arith.constant 1.280000e+02 : f32
    %428 = vector.broadcast %cst_166 : f32 to vector<16x1xf32>
    %429 = arith.divf %427, %428 : vector<16x1xf32>
    %430 = vector.broadcast %429 : vector<16x1xf32> to vector<16x128xf32>
    %431 = arith.subf %421, %430 : vector<16x128xf32>
    %432 = arith.mulf %431, %431 : vector<16x128xf32>
    %cst_167 = arith.constant dense<0.000000e+00> : vector<16xf32>
    %433 = vector.multi_reduction <add>, %432, %cst_167 [1] : vector<16x128xf32> to vector<16xf32>
    %434 = vector.shape_cast %433 : vector<16xf32> to vector<16x1xf32>
    %cst_168 = arith.constant 1.280000e+02 : f32
    %435 = vector.broadcast %cst_168 : f32 to vector<16x1xf32>
    %436 = arith.divf %434, %435 : vector<16x1xf32>
    %cst_169 = arith.constant 9.99999996E-13 : f32
    %437 = vector.broadcast %cst_169 : f32 to vector<16x1xf32>
    %438 = arith.addf %436, %437 : vector<16x1xf32>
    %439 = math.rsqrt %438 : vector<16x1xf32>
    %440 = vector.broadcast %439 : vector<16x1xf32> to vector<16x128xf32>
    %441 = arith.mulf %431, %440 : vector<16x128xf32>
    %442 = vector.broadcast %423 : vector<1x128xf32> to vector<16x128xf32>
    %443 = arith.mulf %441, %442 : vector<16x128xf32>
    %444 = vector.broadcast %425 : vector<1x128xf32> to vector<16x128xf32>
    %445 = arith.addf %443, %444 : vector<16x128xf32>
    %446 = vector.extract_strided_slice %445 {offsets = [0, 0], sizes = [1, 128], strides = [1, 1]} : vector<16x128xf32> to vector<1x128xf32>
    %447 = vector.extract_strided_slice %445 {offsets = [8, 0], sizes = [1, 128], strides = [1, 1]} : vector<16x128xf32> to vector<1x128xf32>
    %448 = tpu.concatenate %446, %447 in 0 : vector<1x128xf32>, vector<1x128xf32> -> vector<2x128xf32>
    %449 = arith.truncf %448 : vector<2x128xf32> to vector<2x128xbf16>
    %c0_170 = arith.constant 0 : index
    %c0_171 = arith.constant 0 : index
    %450 = vector.load %arg17[%c0_170, %c0_171] : memref<128x128xbf16, #tpu.memory_space<vmem>>, vector<128x128xbf16>
    %cst_172 = arith.constant dense<0.000000e+00> : vector<2x128xf32>
    %451 = tpu.matmul %449, %450, %cst_172 {dimension_numbers = #tpu.dot_dimension_numbers<[1], [0], [0], [1], [0, 0, 1, 1], [], []>} : vector<2x128xbf16>, vector<128x128xbf16>, vector<2x128xf32> -> vector<2x128xf32>
    %c0_173 = arith.constant 0 : index
    %c0_174 = arith.constant 0 : index
    %452 = vector.load %arg18[%c0_173, %c0_174] : memref<1x128xf32, #tpu.memory_space<vmem>>, vector<1x128xf32>
    %453 = vector.broadcast %452 : vector<1x128xf32> to vector<2x128xf32>
    %454 = arith.addf %451, %453 : vector<2x128xf32>
    %455 = math.tanh %454 : vector<2x128xf32>
    %456 = arith.truncf %455 : vector<2x128xf32> to vector<2x128xbf16>
    %c0_175 = arith.constant 0 : index
    %c0_176 = arith.constant 0 : index
    %457 = vector.load %arg19[%c0_175, %c0_176] : memref<128x128xbf16, #tpu.memory_space<vmem>>, vector<128x128xbf16>
    %cst_177 = arith.constant dense<0.000000e+00> : vector<2x128xf32>
    %458 = tpu.matmul %456, %457, %cst_177 {dimension_numbers = #tpu.dot_dimension_numbers<[1], [0], [0], [1], [0, 0, 1, 1], [], []>} : vector<2x128xbf16>, vector<128x128xbf16>, vector<2x128xf32> -> vector<2x128xf32>
    %c0_178 = arith.constant 0 : index
    %c0_179 = arith.constant 0 : index
    %459 = vector.load %arg20[%c0_178, %c0_179] : memref<1x128xf32, #tpu.memory_space<vmem>>, vector<1x128xf32>
    %460 = vector.broadcast %459 : vector<1x128xf32> to vector<2x128xf32>
    %461 = arith.addf %458, %460 : vector<2x128xf32>
    %c0_180 = arith.constant 0 : index
    %c0_181 = arith.constant 0 : index
    %462 = vector.load %arg21[%c0_180, %c0_181] : memref<2x128xf32, #tpu.memory_space<vmem>>, vector<2x128xf32>
    tpu.vector_store %arg21[%c0_180, %c0_181], %461 {strides = array<i32>} : memref<2x128xf32, #tpu.memory_space<vmem>>, vector<2x128xf32>,
    return
  }
  func.func @transform_0(%arg0: i32) -> (i32, i32) {
    %c0_i32 = arith.constant 0 : i32
    %c0_i32_0 = arith.constant 0 : i32
    %c0_i32_1 = arith.constant 0 : i32
    return %c0_i32, %c0_i32_0 : i32, i32
  }
  func.func @transform_1(%arg0: i32) -> (i32, i32) {
    %c0_i32 = arith.constant 0 : i32
    %c0_i32_0 = arith.constant 0 : i32
    %c0_i32_1 = arith.constant 0 : i32
    return %c0_i32, %c0_i32_0 : i32, i32
  }
  func.func @transform_2(%arg0: i32) -> (i32, i32) {
    %c0_i32 = arith.constant 0 : i32
    %c0_i32_0 = arith.constant 0 : i32
    %c0_i32_1 = arith.constant 0 : i32
    return %c0_i32, %c0_i32_0 : i32, i32
  }
  func.func @transform_3(%arg0: i32) -> (i32, i32) {
    %c0_i32 = arith.constant 0 : i32
    %c0_i32_0 = arith.constant 0 : i32
    %c0_i32_1 = arith.constant 0 : i32
    return %c0_i32, %c0_i32_0 : i32, i32
  }
  func.func @transform_4(%arg0: i32) -> (i32, i32, i32) {
    %c0_i32 = arith.constant 0 : i32
    %c0_i32_0 = arith.constant 0 : i32
    %c0_i32_1 = arith.constant 0 : i32
    %c0_i32_2 = arith.constant 0 : i32
    return %c0_i32, %c0_i32_0, %c0_i32_1 : i32, i32, i32
  }
  func.func @transform_5(%arg0: i32) -> (i32, i32, i32) {
    %c0_i32 = arith.constant 0 : i32
    %c0_i32_0 = arith.constant 0 : i32
    %c0_i32_1 = arith.constant 0 : i32
    %c0_i32_2 = arith.constant 0 : i32
    return %c0_i32, %c0_i32_0, %c0_i32_1 : i32, i32, i32
  }
  func.func @transform_6(%arg0: i32) -> (i32, i32, i32) {
    %c0_i32 = arith.constant 0 : i32
    %c0_i32_0 = arith.constant 0 : i32
    %c0_i32_1 = arith.constant 0 : i32
    %c0_i32_2 = arith.constant 0 : i32
    return %c0_i32, %c0_i32_0, %c0_i32_1 : i32, i32, i32
  }
  func.func @transform_7(%arg0: i32) -> (i32, i32, i32) {
    %c0_i32 = arith.constant 0 : i32
    %c0_i32_0 = arith.constant 0 : i32
    %c0_i32_1 = arith.constant 0 : i32
    %c0_i32_2 = arith.constant 0 : i32
    return %c0_i32, %c0_i32_0, %c0_i32_1 : i32, i32, i32
  }
  func.func @transform_8(%arg0: i32) -> (i32, i32, i32) {
    %c0_i32 = arith.constant 0 : i32
    %c0_i32_0 = arith.constant 0 : i32
    %c0_i32_1 = arith.constant 0 : i32
    %c0_i32_2 = arith.constant 0 : i32
    return %c0_i32, %c0_i32_0, %c0_i32_1 : i32, i32, i32
  }
  func.func @transform_9(%arg0: i32) -> (i32, i32, i32) {
    %c0_i32 = arith.constant 0 : i32
    %c0_i32_0 = arith.constant 0 : i32
    %c0_i32_1 = arith.constant 0 : i32
    %c0_i32_2 = arith.constant 0 : i32
    return %c0_i32, %c0_i32_0, %c0_i32_1 : i32, i32, i32
  }
  func.func @transform_10(%arg0: i32) -> (i32, i32, i32) {
    %c0_i32 = arith.constant 0 : i32
    %c0_i32_0 = arith.constant 0 : i32
    %c0_i32_1 = arith.constant 0 : i32
    %c0_i32_2 = arith.constant 0 : i32
    return %c0_i32, %c0_i32_0, %c0_i32_1 : i32, i32, i32
  }
  func.func @transform_11(%arg0: i32) -> (i32, i32, i32) {
    %c0_i32 = arith.constant 0 : i32
    %c0_i32_0 = arith.constant 0 : i32
    %c0_i32_1 = arith.constant 0 : i32
    %c0_i32_2 = arith.constant 0 : i32
    return %c0_i32, %c0_i32_0, %c0_i32_1 : i32, i32, i32
  }
  func.func @transform_12(%arg0: i32) -> (i32, i32, i32) {
    %c0_i32 = arith.constant 0 : i32
    %c0_i32_0 = arith.constant 0 : i32
    %c0_i32_1 = arith.constant 0 : i32
    %c0_i32_2 = arith.constant 0 : i32
    return %c0_i32, %c0_i32_0, %c0_i32_1 : i32, i32, i32
  }
  func.func @transform_13(%arg0: i32) -> (i32, i32, i32) {
    %c0_i32 = arith.constant 0 : i32
    %c0_i32_0 = arith.constant 0 : i32
    %c0_i32_1 = arith.constant 0 : i32
    %c0_i32_2 = arith.constant 0 : i32
    return %c0_i32, %c0_i32_0, %c0_i32_1 : i32, i32, i32
  }
  func.func @transform_14(%arg0: i32) -> (i32, i32, i32) {
    %c0_i32 = arith.constant 0 : i32
    %c0_i32_0 = arith.constant 0 : i32
    %c0_i32_1 = arith.constant 0 : i32
    %c0_i32_2 = arith.constant 0 : i32
    return %c0_i32, %c0_i32_0, %c0_i32_1 : i32, i32, i32
  }
  func.func @transform_15(%arg0: i32) -> (i32, i32, i32) {
    %c0_i32 = arith.constant 0 : i32
    %c0_i32_0 = arith.constant 0 : i32
    %c0_i32_1 = arith.constant 0 : i32
    %c0_i32_2 = arith.constant 0 : i32
    return %c0_i32, %c0_i32_0, %c0_i32_1 : i32, i32, i32
  }
  func.func @transform_16(%arg0: i32) -> (i32, i32) {
    %c0_i32 = arith.constant 0 : i32
    %c0_i32_0 = arith.constant 0 : i32
    %c0_i32_1 = arith.constant 0 : i32
    return %c0_i32, %c0_i32_0 : i32, i32
  }
  func.func @transform_17(%arg0: i32) -> (i32, i32) {
    %c0_i32 = arith.constant 0 : i32
    %c0_i32_0 = arith.constant 0 : i32
    %c0_i32_1 = arith.constant 0 : i32
    return %c0_i32, %c0_i32_0 : i32, i32
  }
  func.func @transform_18(%arg0: i32) -> (i32, i32) {
    %c0_i32 = arith.constant 0 : i32
    %c0_i32_0 = arith.constant 0 : i32
    %c0_i32_1 = arith.constant 0 : i32
    return %c0_i32, %c0_i32_0 : i32, i32
  }
  func.func @transform_19(%arg0: i32) -> (i32, i32) {
    %c0_i32 = arith.constant 0 : i32
    %c0_i32_0 = arith.constant 0 : i32
    %c0_i32_1 = arith.constant 0 : i32
    return %c0_i32, %c0_i32_0 : i32, i32
  }
  func.func @transform_20(%arg0: i32) -> (i32, i32) {
    %c0_i32 = arith.constant 0 : i32
    %c0_i32_0 = arith.constant 0 : i32
    %c0_i32_1 = arith.constant 0 : i32
    return %c0_i32, %c0_i32_0 : i32, i32
  }
}

</mosaic_0001>

<llo_original>
// kernel: tpu_custom_call.1
$region0: #{tpu_custom_call.1}
  #allocation0 [shape = 'u32[]', space=smem, size = 0x4, offset = 0x4, fixed_abs, tag = 'smem constant byte address 0x4 - core index']
  #allocation1 [shape = 'u32[144,128]{1,0:T(1,128)}', space=vmem, size = 0x12000, scoped, tag = 'internal scratch']
  %s0 = inlined_call_operand.hbm [shape: f32[16,128], index: 0, kind: input, shape index: {}]
  %s1 = inlined_call_operand.vmem [shape: f32[2,8], index: 1, kind: input, shape index: {}]
  %s2 = inlined_call_operand.hbm [shape: f32[1,128], index: 2, kind: input, shape index: {}]
  %s3 = inlined_call_operand.hbm [shape: f32[1,128], index: 3, kind: input, shape index: {}]
  %s4 = inlined_call_operand.hbm [shape: bf16[2,128,384], index: 4, kind: input, shape index: {}]
  %s5 = inlined_call_operand.hbm [shape: f32[2,1,384], index: 5, kind: input, shape index: {}]
  %s6 = inlined_call_operand.hbm [shape: bf16[2,128,128], index: 6, kind: input, shape index: {}]
  %s7 = inlined_call_operand.vmem [shape: f32[2,1,128], index: 7, kind: input, shape index: {}]
  %s8 = inlined_call_operand.hbm [shape: f32[2,1,128], index: 8, kind: input, shape index: {}]
  %s9 = inlined_call_operand.hbm [shape: f32[2,1,128], index: 9, kind: input, shape index: {}]
  %s10 = inlined_call_operand.hbm [shape: bf16[2,128,512], index: 10, kind: input, shape index: {}]
  %s11 = inlined_call_operand.hbm [shape: f32[2,1,512], index: 11, kind: input, shape index: {}]
  %s12 = inlined_call_operand.hbm [shape: bf16[2,512,128], index: 12, kind: input, shape index: {}]
  %s13 = inlined_call_operand.hbm [shape: f32[2,1,128], index: 13, kind: input, shape index: {}]
  %s14 = inlined_call_operand.hbm [shape: f32[2,1,128], index: 14, kind: input, shape index: {}]
  %s15 = inlined_call_operand.hbm [shape: f32[2,1,128], index: 15, kind: input, shape index: {}]
  %s16 = inlined_call_operand.hbm [shape: bf16[128,128], index: 16, kind: input, shape index: {}]
  %s17 = inlined_call_operand.hbm [shape: f32[1,128], index: 17, kind: input, shape index: {}]
  %s18 = inlined_call_operand.vmem [shape: bf16[128,128], index: 18, kind: input, shape index: {}]
  %s19 = inlined_call_operand.vmem [shape: f32[1,128], index: 19, kind: input, shape index: {}]
  %s20 = inlined_call_operand.hbm [shape: f32[2,128], index: 20, kind: output, shape index: {}]
  %s21 = sld [smem:[#allocation0]]
  $region154: #{tpu_custom_call.1} parent=0
    _
  %s23 = ssub.s32 1, %s21
  %s24 = scalar_select 0, %s23, %s21
  $region1: #{tpu_custom_call.1} parent=0
    #allocation2 [shape = 'u8[8192]{0}', space=vmem, size = 0x2000, scoped, tag = 'input window, operand 0, single buffered']
    #allocation3 [shape = 's32[1]{0}', space=sflag, size = 0x4, scoped, tag = 'scoped memory for tpu_custom_call.1']
    #allocation4 [shape = 's32[1]{0}', space=sflag, size = 0x4, scoped, tag = 'scoped memory for tpu_custom_call.1']
    #allocation5 [shape = 'u8[512]{0}', space=vmem, size = 0x400, scoped, tag = 'input window, operand 2, single buffered']
    #allocation6 [shape = 's32[1]{0}', space=sflag, size = 0x4, scoped, tag = 'scoped memory for tpu_custom_call.1']
    #allocation7 [shape = 'u8[512]{0}', space=vmem, size = 0x400, scoped, tag = 'input window, operand 3, single buffered']
    #allocation8 [shape = 'u8[196608]{0}', space=vmem, size = 0x30000, scoped, tag = 'input window, operand 4, single buffered']
    #allocation9 [shape = 's32[1]{0}', space=sflag, size = 0x4, scoped, tag = 'scoped memory for tpu_custom_call.1']
    #allocation10 [shape = 'u8[3072]{0}', space=vmem, size = 0xc00, scoped, tag = 'input window, operand 5, single buffered']
    #allocation11 [shape = 'u8[65536]{0}', space=vmem, size = 0x10000, scoped, tag = 'input window, operand 6, single buffered']
    #allocation12 [shape = 's32[1]{0}', space=sflag, size = 0x4, scoped, tag = 'scoped memory for tpu_custom_call.1']
    #allocation13 [shape = 'u8[1024]{0}', space=vmem, size = 0x400, scoped, tag = 'input window, operand 8, single buffered']
    #allocation14 [shape = 'u8[1024]{0}', space=vmem, size = 0x400, scoped, tag = 'input window, operand 9, single buffered']
    #allocation15 [shape = 's32[1]{0}', space=sflag, size = 0x4, scoped, tag = 'scoped memory for tpu_custom_call.1']
    #allocation16 [shape = 'u8[262144]{0}', space=vmem, size = 0x40000, scoped, tag = 'input window, operand 10, single buffered']
    #allocation17 [shape = 'u8[4096]{0}', space=vmem, size = 0x1000, scoped, tag = 'input window, operand 11, single buffered']
    #allocation18 [shape = 's32[1]{0}', space=sflag, size = 0x4, scoped, tag = 'scoped memory for tpu_custom_call.1']
    #allocation19 [shape = 'u8[262144]{0}', space=vmem, size = 0x40000, scoped, tag = 'input window, operand 12, single buffered']
    #allocation20 [shape = 'u8[1024]{0}', space=vmem, size = 0x400, scoped, tag = 'input window, operand 13, single buffered']
    #allocation21 [shape = 's32[1]{0}', space=sflag, size = 0x4, scoped, tag = 'scoped memory for tpu_custom_call.1']
    #allocation22 [shape = 'u8[1024]{0}', space=vmem, size = 0x400, scoped, tag = 'input window, operand 14, single buffered']
    #allocation23 [shape = 'u8[1024]{0}', space=vmem, size = 0x400, scoped, tag = 'input window, operand 15, single buffered']
    #allocation24 [shape = 's32[1]{0}', space=sflag, size = 0x4, scoped, tag = 'scoped memory for tpu_custom_call.1']
    #allocation25 [shape = 'u8[32768]{0}', space=vmem, size = 0x8000, scoped, tag = 'input window, operand 16, single buffered']
    #allocation26 [shape = 'u8[512]{0}', space=vmem, size = 0x400, scoped, tag = 'input window, operand 17, single buffered']
    #allocation27 [shape = 's32[1]{0}', space=sflag, size = 0x4, scoped, tag = 'scoped memory for tpu_custom_call.1']
    #allocation28 [shape = 'u8[1024]{0}', space=vmem, size = 0x400, scoped, tag = 'output window, operand 0, single buffered']
    %25 = vsyncpa [#allocation3], 0
    %26 = vsyncpa [#allocation6], 0
    %27 = vsyncpa [#allocation9], 0
    %28 = vsyncpa [#allocation12], 0
    %29 = vsyncpa [#allocation15], 0
    %30 = vsyncpa [#allocation18], 0
    %31 = vsyncpa [#allocation21], 0
    %32 = vsyncpa [#allocation24], 0
    %33 = vsyncpa [#allocation27], 0
    %34 = vsyncpa [#allocation4], 0
    // Predicated region
    $region2: #{tpu_custom_call.1} parent=1 // pred_check
      _
    $region3: #{tpu_custom_call.1} parent=1 // pred_check_branch
      %36 = sbr.rel (0) target = $region5
    $region4: #{tpu_custom_call.1} parent=1 // pred_region
      %s38 = ssub.s32 256, 256
      %39 = vsyncadd [#allocation3], %s38
      %s40 = sshll.u32 [#allocation2], 4
      %s41 = int_to_ptr.vmem [resolvable:$true] %s40
      %46 = dma.hbm_to_vmem [thread:$0]  %s0, 256, %s41, [#allocation3], 128, 128, 8
    $region5: #{tpu_custom_call.1} parent=1 // pred_fallthru
      _
    // Predicated region
    $region6: #{tpu_custom_call.1} parent=1 // pred_check
      _
    $region7: #{tpu_custom_call.1} parent=1 // pred_check_branch
      %48 = sbr.rel (0) target = $region9
    $region8: #{tpu_custom_call.1} parent=1 // pred_region
      _
    $region9: #{tpu_custom_call.1} parent=1 // pred_fallthru
      _
    // Predicated region
    $region10: #{tpu_custom_call.1} parent=1 // pred_check
      _
    $region11: #{tpu_custom_call.1} parent=1 // pred_check_branch
      %50 = sbr.rel (0) target = $region13
    $region12: #{tpu_custom_call.1} parent=1 // pred_region
      %s52 = ssub.s32 16, 16
      %53 = vsyncadd [#allocation6], %s52
      %s55 = sshll.u32 [#allocation5], 4
      %s56 = int_to_ptr.vmem [resolvable:$true] %s55
      %58 = dma.hbm_to_vmem [thread:$0]  %s2, 16, %s56, [#allocation6]
    $region13: #{tpu_custom_call.1} parent=1 // pred_fallthru
      _
    // Predicated region
    $region14: #{tpu_custom_call.1} parent=1 // pred_check
      _
    $region15: #{tpu_custom_call.1} parent=1 // pred_check_branch
      %60 = sbr.rel (0) target = $region17
    $region16: #{tpu_custom_call.1} parent=1 // pred_region
      %s62 = ssub.s32 16, 16
      %63 = vsyncadd [#allocation6], %s62
      %s65 = sshll.u32 [#allocation7], 4
      %s66 = int_to_ptr.vmem [resolvable:$true] %s65
      %68 = dma.hbm_to_vmem [thread:$0]  %s3, 16, %s66, [#allocation6]
    $region17: #{tpu_custom_call.1} parent=1 // pred_fallthru
      _
    // Predicated region
    $region18: #{tpu_custom_call.1} parent=1 // pred_check
      _
    $region19: #{tpu_custom_call.1} parent=1 // pred_check_branch
      %70 = sbr.rel (0) target = $region21
    $region20: #{tpu_custom_call.1} parent=1 // pred_region
      %s72 = ssub.s32 6144, 6144
      %73 = vsyncadd [#allocation9], %s72
      %s74 = sshll.u32 [#allocation8], 4
      %s75 = int_to_ptr.vmem [resolvable:$true] %s74
      %80 = dma.hbm_to_vmem [thread:$0]  %s4, 6144, %s75, [#allocation9], 192, 192, 12
    $region21: #{tpu_custom_call.1} parent=1 // pred_fallthru
      _
    // Predicated region
    $region22: #{tpu_custom_call.1} parent=1 // pred_check
      _
    $region23: #{tpu_custom_call.1} parent=1 // pred_check_branch
      %82 = sbr.rel (0) target = $region25
    $region24: #{tpu_custom_call.1} parent=1 // pred_region
      %s84 = ssub.s32 96, 96
      %85 = vsyncadd [#allocation9], %s84
      %s86 = sshll.u32 [#allocation10], 4
      %s87 = int_to_ptr.vmem [resolvable:$true] %s86
      %92 = dma.hbm_to_vmem [thread:$0]  %s5, 96, %s87, [#allocation9], 48, 48, 3
    $region25: #{tpu_custom_call.1} parent=1 // pred_fallthru
      _
    // Predicated region
    $region26: #{tpu_custom_call.1} parent=1 // pred_check
      _
    $region27: #{tpu_custom_call.1} parent=1 // pred_check_branch
      %94 = sbr.rel (0) target = $region29
    $region28: #{tpu_custom_call.1} parent=1 // pred_region
      %s96 = ssub.s32 2048, 2048
      %97 = vsyncadd [#allocation12], %s96
      %s98 = sshll.u32 [#allocation11], 4
      %s99 = int_to_ptr.vmem [resolvable:$true] %s98
      %104 = dma.hbm_to_vmem [thread:$0]  %s6, 2048, %s99, [#allocation12], 64, 64, 4
    $region29: #{tpu_custom_call.1} parent=1 // pred_fallthru
      _
    // Predicated region
    $region30: #{tpu_custom_call.1} parent=1 // pred_check
      _
    $region31: #{tpu_custom_call.1} parent=1 // pred_check_branch
      %106 = sbr.rel (0) target = $region33
    $region32: #{tpu_custom_call.1} parent=1 // pred_region
      _
    $region33: #{tpu_custom_call.1} parent=1 // pred_fallthru
      _
    // Predicated region
    $region34: #{tpu_custom_call.1} parent=1 // pred_check
      _
    $region35: #{tpu_custom_call.1} parent=1 // pred_check_branch
      %108 = sbr.rel (0) target = $region37
    $region36: #{tpu_custom_call.1} parent=1 // pred_region
      %s110 = ssub.s32 32, 32
      %111 = vsyncadd [#allocation12], %s110
      %s112 = sshll.u32 [#allocation13], 4
      %s113 = int_to_ptr.vmem [resolvable:$true] %s112
      %118 = dma.hbm_to_vmem [thread:$0]  %s8, 32, %s113, [#allocation12], 16, 16, 1
    $region37: #{tpu_custom_call.1} parent=1 // pred_fallthru
      _
    // Predicated region
    $region38: #{tpu_custom_call.1} parent=1 // pred_check
      _
    $region39: #{tpu_custom_call.1} parent=1 // pred_check_branch
      %120 = sbr.rel (0) target = $region41
    $region40: #{tpu_custom_call.1} parent=1 // pred_region
      %s122 = ssub.s32 32, 32
      %123 = vsyncadd [#allocation15], %s122
      %s124 = sshll.u32 [#allocation14], 4
      %s125 = int_to_ptr.vmem [resolvable:$true] %s124
      %130 = dma.hbm_to_vmem [thread:$0]  %s9, 32, %s125, [#allocation15], 16, 16, 1
    $region41: #{tpu_custom_call.1} parent=1 // pred_fallthru
      _
    // Predicated region
    $region42: #{tpu_custom_call.1} parent=1 // pred_check
      _
    $region43: #{tpu_custom_call.1} parent=1 // pred_check_branch
      %132 = sbr.rel (0) target = $region45
    $region44: #{tpu_custom_call.1} parent=1 // pred_region
      %s134 = ssub.s32 8192, 8192
      %135 = vsyncadd [#allocation15], %s134
      %s136 = sshll.u32 [#allocation16], 4
      %s137 = int_to_ptr.vmem [resolvable:$true] %s136
      %142 = dma.hbm_to_vmem [thread:$0]  %s10, 8192, %s137, [#allocation15], 256, 256, 16
    $region45: #{tpu_custom_call.1} parent=1 // pred_fallthru
      _
    // Predicated region
    $region46: #{tpu_custom_call.1} parent=1 // pred_check
      _
    $region47: #{tpu_custom_call.1} parent=1 // pred_check_branch
      %144 = sbr.rel (0) target = $region49
    $region48: #{tpu_custom_call.1} parent=1 // pred_region
      %s146 = ssub.s32 128, 128
      %147 = vsyncadd [#allocation18], %s146
      %s148 = sshll.u32 [#allocation17], 4
      %s149 = int_to_ptr.vmem [resolvable:$true] %s148
      %154 = dma.hbm_to_vmem [thread:$0]  %s11, 128, %s149, [#allocation18], 64, 64, 4
    $region49: #{tpu_custom_call.1} parent=1 // pred_fallthru
      _
    // Predicated region
    $region50: #{tpu_custom_call.1} parent=1 // pred_check
      _
    $region51: #{tpu_custom_call.1} parent=1 // pred_check_branch
      %156 = sbr.rel (0) target = $region53
    $region52: #{tpu_custom_call.1} parent=1 // pred_region
      %s158 = ssub.s32 8192, 8192
      %159 = vsyncadd [#allocation18], %s158
      %s160 = sshll.u32 [#allocation19], 4
      %s161 = int_to_ptr.vmem [resolvable:$true] %s160
      %166 = dma.hbm_to_vmem [thread:$0]  %s12, 8192, %s161, [#allocation18], 64, 64, 4
    $region53: #{tpu_custom_call.1} parent=1 // pred_fallthru
      _
    // Predicated region
    $region54: #{tpu_custom_call.1} parent=1 // pred_check
      _
    $region55: #{tpu_custom_call.1} parent=1 // pred_check_branch
      %168 = sbr.rel (0) target = $region57
    $region56: #{tpu_custom_call.1} parent=1 // pred_region
      %s170 = ssub.s32 32, 32
      %171 = vsyncadd [#allocation21], %s170
      %s172 = sshll.u32 [#allocation20], 4
      %s173 = int_to_ptr.vmem [resolvable:$true] %s172
      %178 = dma.hbm_to_vmem [thread:$0]  %s13, 32, %s173, [#allocation21], 16, 16, 1
    $region57: #{tpu_custom_call.1} parent=1 // pred_fallthru
      _
    // Predicated region
    $region58: #{tpu_custom_call.1} parent=1 // pred_check
      _
    $region59: #{tpu_custom_call.1} parent=1 // pred_check_branch
      %180 = sbr.rel (0) target = $region61
    $region60: #{tpu_custom_call.1} parent=1 // pred_region
      %s182 = ssub.s32 32, 32
      %183 = vsyncadd [#allocation21], %s182
      %s184 = sshll.u32 [#allocation22], 4
      %s185 = int_to_ptr.vmem [resolvable:$true] %s184
      %190 = dma.hbm_to_vmem [thread:$0]  %s14, 32, %s185, [#allocation21], 16, 16, 1
    $region61: #{tpu_custom_call.1} parent=1 // pred_fallthru
      _
    // Predicated region
    $region62: #{tpu_custom_call.1} parent=1 // pred_check
      _
    $region63: #{tpu_custom_call.1} parent=1 // pred_check_branch
      %192 = sbr.rel (0) target = $region65
    $region64: #{tpu_custom_call.1} parent=1 // pred_region
      %s194 = ssub.s32 32, 32
      %195 = vsyncadd [#allocation24], %s194
      %s196 = sshll.u32 [#allocation23], 4
      %s197 = int_to_ptr.vmem [resolvable:$true] %s196
      %202 = dma.hbm_to_vmem [thread:$0]  %s15, 32, %s197, [#allocation24], 16, 16, 1
    $region65: #{tpu_custom_call.1} parent=1 // pred_fallthru
      _
    // Predicated region
    $region66: #{tpu_custom_call.1} parent=1 // pred_check
      _
    $region67: #{tpu_custom_call.1} parent=1 // pred_check_branch
      %204 = sbr.rel (0) target = $region69
    $region68: #{tpu_custom_call.1} parent=1 // pred_region
      %s206 = ssub.s32 1024, 1024
      %207 = vsyncadd [#allocation24], %s206
      %s208 = sshll.u32 [#allocation25], 4
      %s209 = int_to_ptr.vmem [resolvable:$true] %s208
      %214 = dma.hbm_to_vmem [thread:$0]  %s16, 1024, %s209, [#allocation24], 64, 64, 4
    $region69: #{tpu_custom_call.1} parent=1 // pred_fallthru
      _
    // Predicated region
    $region70: #{tpu_custom_call.1} parent=1 // pred_check
      _
    $region71: #{tpu_custom_call.1} parent=1 // pred_check_branch
      %216 = sbr.rel (0) target = $region73
    $region72: #{tpu_custom_call.1} parent=1 // pred_region
      %s218 = ssub.s32 16, 16
      %219 = vsyncadd [#allocation27], %s218
      %s221 = sshll.u32 [#allocation26], 4
      %s222 = int_to_ptr.vmem [resolvable:$true] %s221
      %224 = dma.hbm_to_vmem [thread:$0]  %s17, 16, %s222, [#allocation27]
    $region73: #{tpu_custom_call.1} parent=1 // pred_fallthru
      _
    // Predicated region
    $region74: #{tpu_custom_call.1} parent=1 // pred_check
      _
    $region75: #{tpu_custom_call.1} parent=1 // pred_check_branch
      %226 = sbr.rel (0) target = $region77
    $region76: #{tpu_custom_call.1} parent=1 // pred_region
      _
    $region77: #{tpu_custom_call.1} parent=1 // pred_fallthru
      _
    // Predicated region
    $region78: #{tpu_custom_call.1} parent=1 // pred_check
      _
    $region79: #{tpu_custom_call.1} parent=1 // pred_check_branch
      %228 = sbr.rel (0) target = $region81
    $region80: #{tpu_custom_call.1} parent=1 // pred_region
      _
    $region81: #{tpu_custom_call.1} parent=1 // pred_fallthru
      _
    // Predicated region
    $region82: #{tpu_custom_call.1} parent=1 // pred_check
      _
    $region83: #{tpu_custom_call.1} parent=1 // pred_check_branch
      %230 = sbr.rel (0) target = $region85
    $region84: #{tpu_custom_call.1} parent=1 // pred_region
      %231 = dma.done [#allocation3], 256
    $region85: #{tpu_custom_call.1} parent=1 // pred_fallthru
      _
    // Predicated region
    $region86: #{tpu_custom_call.1} parent=1 // pred_check
      _
    $region87: #{tpu_custom_call.1} parent=1 // pred_check_branch
      %233 = sbr.rel (0) target = $region89
    $region88: #{tpu_custom_call.1} parent=1 // pred_region
      %234 = dma.done [#allocation6], 16
    $region89: #{tpu_custom_call.1} parent=1 // pred_fallthru
      _
    // Predicated region
    $region90: #{tpu_custom_call.1} parent=1 // pred_check
      _
    $region91: #{tpu_custom_call.1} parent=1 // pred_check_branch
      %236 = sbr.rel (0) target = $region93
    $region92: #{tpu_custom_call.1} parent=1 // pred_region
      %237 = dma.done [#allocation6], 16
    $region93: #{tpu_custom_call.1} parent=1 // pred_fallthru
      _
    // Predicated region
    $region94: #{tpu_custom_call.1} parent=1 // pred_check
      _
    $region95: #{tpu_custom_call.1} parent=1 // pred_check_branch
      %239 = sbr.rel (0) target = $region97
    $region96: #{tpu_custom_call.1} parent=1 // pred_region
      %240 = dma.done [#allocation9], 6144
    $region97: #{tpu_custom_call.1} parent=1 // pred_fallthru
      _
    // Predicated region
    $region98: #{tpu_custom_call.1} parent=1 // pred_check
      _
    $region99: #{tpu_custom_call.1} parent=1 // pred_check_branch
      %242 = sbr.rel (0) target = $region101
    $region100: #{tpu_custom_call.1} parent=1 // pred_region
      %243 = dma.done [#allocation9], 96
    $region101: #{tpu_custom_call.1} parent=1 // pred_fallthru
      _
    // Predicated region
    $region102: #{tpu_custom_call.1} parent=1 // pred_check
      _
    $region103: #{tpu_custom_call.1} parent=1 // pred_check_branch
      %245 = sbr.rel (0) target = $region105
    $region104: #{tpu_custom_call.1} parent=1 // pred_region
      %246 = dma.done [#allocation12], 2048
    $region105: #{tpu_custom_call.1} parent=1 // pred_fallthru
      _
    // Predicated region
    $region106: #{tpu_custom_call.1} parent=1 // pred_check
      _
    $region107: #{tpu_custom_call.1} parent=1 // pred_check_branch
      %248 = sbr.rel (0) target = $region109
    $region108: #{tpu_custom_call.1} parent=1 // pred_region
      %249 = dma.done [#allocation12], 32
    $region109: #{tpu_custom_call.1} parent=1 // pred_fallthru
      _
    // Predicated region
    $region110: #{tpu_custom_call.1} parent=1 // pred_check
      _
    $region111: #{tpu_custom_call.1} parent=1 // pred_check_branch
      %251 = sbr.rel (0) target = $region113
    $region112: #{tpu_custom_call.1} parent=1 // pred_region
      %252 = dma.done [#allocation15], 32
    $region113: #{tpu_custom_call.1} parent=1 // pred_fallthru
      _
    // Predicated region
    $region114: #{tpu_custom_call.1} parent=1 // pred_check
      _
    $region115: #{tpu_custom_call.1} parent=1 // pred_check_branch
      %254 = sbr.rel (0) target = $region117
    $region116: #{tpu_custom_call.1} parent=1 // pred_region
      %255 = dma.done [#allocation15], 8192
    $region117: #{tpu_custom_call.1} parent=1 // pred_fallthru
      _
    // Predicated region
    $region118: #{tpu_custom_call.1} parent=1 // pred_check
      _
    $region119: #{tpu_custom_call.1} parent=1 // pred_check_branch
      %257 = sbr.rel (0) target = $region121
    $region120: #{tpu_custom_call.1} parent=1 // pred_region
      %258 = dma.done [#allocation18], 128
    $region121: #{tpu_custom_call.1} parent=1 // pred_fallthru
      _
    // Predicated region
    $region122: #{tpu_custom_call.1} parent=1 // pred_check
      _
    $region123: #{tpu_custom_call.1} parent=1 // pred_check_branch
      %260 = sbr.rel (0) target = $region125
    $region124: #{tpu_custom_call.1} parent=1 // pred_region
      %261 = dma.done [#allocation18], 8192
    $region125: #{tpu_custom_call.1} parent=1 // pred_fallthru
      _
    // Predicated region
    $region126: #{tpu_custom_call.1} parent=1 // pred_check
      _
    $region127: #{tpu_custom_call.1} parent=1 // pred_check_branch
      %263 = sbr.rel (0) target = $region129
    $region128: #{tpu_custom_call.1} parent=1 // pred_region
      %264 = dma.done [#allocation21], 32
    $region129: #{tpu_custom_call.1} parent=1 // pred_fallthru
      _
    // Predicated region
    $region130: #{tpu_custom_call.1} parent=1 // pred_check
      _
    $region131: #{tpu_custom_call.1} parent=1 // pred_check_branch
      %266 = sbr.rel (0) target = $region133
    $region132: #{tpu_custom_call.1} parent=1 // pred_region
      %267 = dma.done [#allocation21], 32
    $region133: #{tpu_custom_call.1} parent=1 // pred_fallthru
      _
    // Predicated region
    $region134: #{tpu_custom_call.1} parent=1 // pred_check
      _
    $region135: #{tpu_custom_call.1} parent=1 // pred_check_branch
      %269 = sbr.rel (0) target = $region137
    $region136: #{tpu_custom_call.1} parent=1 // pred_region
      %270 = dma.done [#allocation24], 32
    $region137: #{tpu_custom_call.1} parent=1 // pred_fallthru
      _
    // Predicated region
    $region138: #{tpu_custom_call.1} parent=1 // pred_check
      _
    $region139: #{tpu_custom_call.1} parent=1 // pred_check_branch
      %272 = sbr.rel (0) target = $region141
    $region140: #{tpu_custom_call.1} parent=1 // pred_region
      %273 = dma.done [#allocation24], 1024
    $region141: #{tpu_custom_call.1} parent=1 // pred_fallthru
      _
    // Predicated region
    $region142: #{tpu_custom_call.1} parent=1 // pred_check
      _
    $region143: #{tpu_custom_call.1} parent=1 // pred_check_branch
      %275 = sbr.rel (0) target = $region145
    $region144: #{tpu_custom_call.1} parent=1 // pred_region
      %276 = dma.done [#allocation27], 16
    $region145: #{tpu_custom_call.1} parent=1 // pred_fallthru
      _
    %v278 = vld [vmem:[#allocation2] sm:$0xff]
    %v279 = vld [vmem:[#allocation2 + $0x8] sm:$0xff]
    %v280 = vld [vmem:[#allocation5] sm:$0x1]
    %v281 = vld [vmem:[#allocation7] sm:$0x1]
    %282 = vadd.xlane.f32.xlu0 %v278
    %v283 = vpop.xlane.xlu0 %282
    %284 = vadd.xlane.f32.xlu0 %v279
    %v285 = vpop.xlane.xlu0 %284
    %v286 = vrcp.pop 128.0
    %v287 = vmul.f32 %v283, %v286
    %v288 = vmul.f32 %v285, %v286
    %v289 = vsub.f32 %v278, %v287
    %v290 = vsub.f32 %v279, %v288
    %v291 = vmul.f32 %v289, %v289
    %v292 = vmul.f32 %v290, %v290
    %293 = vadd.xlane.f32.xlu0 %v291
    %v294 = vpop.xlane.xlu0 %293
    %295 = vadd.xlane.f32.xlu0 %v292
    %v296 = vpop.xlane.xlu0 %295
    %v297 = vmul.f32 %v294, %v286
    %v298 = vmul.f32 %v296, %v286
    %v299 = vadd.f32 %v297, 1e-12
    %v300 = vadd.f32 %v298, 1e-12
    %v301 = vrsqrt.pop %v299
    %v302 = vrsqrt.pop %v300
    %v303 = vmul.f32 %v289, %v301
    %v304 = vmul.f32 %v290, %v302
    %v306 = vlaneseq
    %v307 = vshrl.u32 %v306, 7
    %v308 = vsub.s32 0, %v307
    %v309 = vrot.slane %v280, %v308
    %v311 = vmul.f32 %v303, %v309
    %v312 = vmul.f32 %v304, %v309
    %v314 = vlaneseq
    %v315 = vshrl.u32 %v314, 7
    %v316 = vsub.s32 0, %v315
    %v317 = vrot.slane %v281, %v316
    %v319 = vadd.f32 %v311, %v317
    %v320 = vadd.f32 %v312, %v317
    %v321 = vld [vmem:[%s1] sm:$0x3]
    %v322 = vsub.f32 1.0, %v321
    %v323 = vmul.f32 %v322, -10000.0
    %v324 = vld [vmem:[#allocation8] sm:$0xff]
    %v325 = vld [vmem:[#allocation8 + $0x8] sm:$0xf]
    %v326 = vld [vmem:[#allocation8 + $0xc] sm:$0xff]
    %v327 = vld [vmem:[#allocation8 + $0x14] sm:$0xf]
    %v328 = vld [vmem:[#allocation8 + $0x18] sm:$0xff]
    %v329 = vld [vmem:[#allocation8 + $0x20] sm:$0xf]
    %v330 = vld [vmem:[#allocation8 + $0x24] sm:$0xff]
    %v331 = vld [vmem:[#allocation8 + $0x2c] sm:$0xf]
    %v332 = vld [vmem:[#allocation8 + $0x30] sm:$0xff]
    %v333 = vld [vmem:[#allocation8 + $0x38] sm:$0xf]
    %v334 = vld [vmem:[#allocation8 + $0x3c] sm:$0xff]
    %v335 = vld [vmem:[#allocation8 + $0x44] sm:$0xf]
    %v336 = vld [vmem:[#allocation8 + $0x48] sm:$0xff]
    %v337 = vld [vmem:[#allocation8 + $0x50] sm:$0xf]
    %v338 = vld [vmem:[#allocation8 + $0x54] sm:$0xff]
    %v339 = vld [vmem:[#allocation8 + $0x5c] sm:$0xf]
    %v340 = vld [vmem:[#allocation8 + $0x60] sm:$0xff]
    %v341 = vld [vmem:[#allocation8 + $0x68] sm:$0xf]
    %v342 = vld [vmem:[#allocation8 + $0x6c] sm:$0xff]
    %v343 = vld [vmem:[#allocation8 + $0x74] sm:$0xf]
    %v344 = vld [vmem:[#allocation8 + $0x78] sm:$0xff]
    %v345 = vld [vmem:[#allocation8 + $0x80] sm:$0xf]
    %v346 = vld [vmem:[#allocation8 + $0x84] sm:$0xff]
    %v347 = vld [vmem:[#allocation8 + $0x8c] sm:$0xf]
    %v348 = vld [vmem:[#allocation8 + $0x90] sm:$0xff]
    %v349 = vld [vmem:[#allocation8 + $0x98] sm:$0xf]
    %v350 = vld [vmem:[#allocation8 + $0x9c] sm:$0xff]
    %v351 = vld [vmem:[#allocation8 + $0xa4] sm:$0xf]
    %v352 = vld [vmem:[#allocation8 + $0xa8] sm:$0xff]
    %v353 = vld [vmem:[#allocation8 + $0xb0] sm:$0xf]
    %v354 = vld [vmem:[#allocation8 + $0xb4] sm:$0xff]
    %v355 = vld [vmem:[#allocation8 + $0xbc] sm:$0xf]
    %v356 = vld [vmem:[#allocation11] sm:$0xf]
    %v357 = vld [vmem:[#allocation11 + $0x4] sm:$0xf]
    %v358 = vld [vmem:[#allocation11 + $0x8] sm:$0xf]
    %v359 = vld [vmem:[#allocation11 + $0xc] sm:$0xf]
    %v360 = vld [vmem:[#allocation11 + $0x10] sm:$0xf]
    %v361 = vld [vmem:[#allocation11 + $0x14] sm:$0xf]
    %v362 = vld [vmem:[#allocation11 + $0x18] sm:$0xf]
    %v363 = vld [vmem:[#allocation11 + $0x1c] sm:$0xf]
    %v364 = vld [vmem:[#allocation11 + $0x20] sm:$0xf]
    %v365 = vld [vmem:[#allocation11 + $0x24] sm:$0xf]
    %v366 = vld [vmem:[#allocation11 + $0x28] sm:$0xf]
    %v367 = vld [vmem:[#allocation11 + $0x2c] sm:$0xf]
    %v368 = vld [vmem:[#allocation11 + $0x30] sm:$0xf]
    %v369 = vld [vmem:[#allocation11 + $0x34] sm:$0xf]
    %v370 = vld [vmem:[#allocation11 + $0x38] sm:$0xf]
    %v371 = vld [vmem:[#allocation11 + $0x3c] sm:$0xf]
    %v372 = vld [vmem:[#allocation16] sm:$0xff]
    %v373 = vld [vmem:[#allocation16 + $0x8] sm:$0xff]
    %v374 = vld [vmem:[#allocation16 + $0x10] sm:$0xff]
    %v375 = vld [vmem:[#allocation16 + $0x18] sm:$0xff]
    %v376 = vld [vmem:[#allocation16 + $0x20] sm:$0xff]
    %v377 = vld [vmem:[#allocation16 + $0x28] sm:$0xff]
    %v378 = vld [vmem:[#allocation16 + $0x30] sm:$0xff]
    %v379 = vld [vmem:[#allocation16 + $0x38] sm:$0xff]
    %v380 = vld [vmem:[#allocation16 + $0x40] sm:$0xff]
    %v381 = vld [vmem:[#allocation16 + $0x48] sm:$0xff]
    %v382 = vld [vmem:[#allocation16 + $0x50] sm:$0xff]
    %v383 = vld [vmem:[#allocation16 + $0x58] sm:$0xff]
    %v384 = vld [vmem:[#allocation16 + $0x60] sm:$0xff]
    %v385 = vld [vmem:[#allocation16 + $0x68] sm:$0xff]
    %v386 = vld [vmem:[#allocation16 + $0x70] sm:$0xff]
    %v387 = vld [vmem:[#allocation16 + $0x78] sm:$0xff]
    %v388 = vld [vmem:[#allocation16 + $0x80] sm:$0xff]
    %v389 = vld [vmem:[#allocation16 + $0x88] sm:$0xff]
    %v390 = vld [vmem:[#allocation16 + $0x90] sm:$0xff]
    %v391 = vld [vmem:[#allocation16 + $0x98] sm:$0xff]
    %v392 = vld [vmem:[#allocation16 + $0xa0] sm:$0xff]
    %v393 = vld [vmem:[#allocation16 + $0xa8] sm:$0xff]
    %v394 = vld [vmem:[#allocation16 + $0xb0] sm:$0xff]
    %v395 = vld [vmem:[#allocation16 + $0xb8] sm:$0xff]
    %v396 = vld [vmem:[#allocation16 + $0xc0] sm:$0xff]
    %v397 = vld [vmem:[#allocation16 + $0xc8] sm:$0xff]
    %v398 = vld [vmem:[#allocation16 + $0xd0] sm:$0xff]
    %v399 = vld [vmem:[#allocation16 + $0xd8] sm:$0xff]
    %v400 = vld [vmem:[#allocation16 + $0xe0] sm:$0xff]
    %v401 = vld [vmem:[#allocation16 + $0xe8] sm:$0xff]
    %v402 = vld [vmem:[#allocation16 + $0xf0] sm:$0xff]
    %v403 = vld [vmem:[#allocation16 + $0xf8] sm:$0xff]
    %v404 = vld [vmem:[#allocation19] sm:$0xf]
    %v405 = vld [vmem:[#allocation19 + $0x4] sm:$0xf]
    %v406 = vld [vmem:[#allocation19 + $0x8] sm:$0xf]
    %v407 = vld [vmem:[#allocation19 + $0xc] sm:$0xf]
    %v408 = vld [vmem:[#allocation19 + $0x10] sm:$0xf]
    %v409 = vld [vmem:[#allocation19 + $0x14] sm:$0xf]
    %v410 = vld [vmem:[#allocation19 + $0x18] sm:$0xf]
    %v411 = vld [vmem:[#allocation19 + $0x1c] sm:$0xf]
    %v412 = vld [vmem:[#allocation19 + $0x20] sm:$0xf]
    %v413 = vld [vmem:[#allocation19 + $0x24] sm:$0xf]
    %v414 = vld [vmem:[#allocation19 + $0x28] sm:$0xf]
    %v415 = vld [vmem:[#allocation19 + $0x2c] sm:$0xf]
    %v416 = vld [vmem:[#allocation19 + $0x30] sm:$0xf]
    %v417 = vld [vmem:[#allocation19 + $0x34] sm:$0xf]
    %v418 = vld [vmem:[#allocation19 + $0x38] sm:$0xf]
    %v419 = vld [vmem:[#allocation19 + $0x3c] sm:$0xf]
    %v420 = vld [vmem:[#allocation19 + $0x40] sm:$0xf]
    %v421 = vld [vmem:[#allocation19 + $0x44] sm:$0xf]
    %v422 = vld [vmem:[#allocation19 + $0x48] sm:$0xf]
    %v423 = vld [vmem:[#allocation19 + $0x4c] sm:$0xf]
    %v424 = vld [vmem:[#allocation19 + $0x50] sm:$0xf]
    %v425 = vld [vmem:[#allocation19 + $0x54] sm:$0xf]
    %v426 = vld [vmem:[#allocation19 + $0x58] sm:$0xf]
    %v427 = vld [vmem:[#allocation19 + $0x5c] sm:$0xf]
    %v428 = vld [vmem:[#allocation19 + $0x60] sm:$0xf]
    %v429 = vld [vmem:[#allocation19 + $0x64] sm:$0xf]
    %v430 = vld [vmem:[#allocation19 + $0x68] sm:$0xf]
    %v431 = vld [vmem:[#allocation19 + $0x6c] sm:$0xf]
    %v432 = vld [vmem:[#allocation19 + $0x70] sm:$0xf]
    %v433 = vld [vmem:[#allocation19 + $0x74] sm:$0xf]
    %v434 = vld [vmem:[#allocation19 + $0x78] sm:$0xf]
    %v435 = vld [vmem:[#allocation19 + $0x7c] sm:$0xf]
    %v436 = vld [vmem:[#allocation19 + $0x80] sm:$0xf]
    %v437 = vld [vmem:[#allocation19 + $0x84] sm:$0xf]
    %v438 = vld [vmem:[#allocation19 + $0x88] sm:$0xf]
    %v439 = vld [vmem:[#allocation19 + $0x8c] sm:$0xf]
    %v440 = vld [vmem:[#allocation19 + $0x90] sm:$0xf]
    %v441 = vld [vmem:[#allocation19 + $0x94] sm:$0xf]
    %v442 = vld [vmem:[#allocation19 + $0x98] sm:$0xf]
    %v443 = vld [vmem:[#allocation19 + $0x9c] sm:$0xf]
    %v444 = vld [vmem:[#allocation19 + $0xa0] sm:$0xf]
    %v445 = vld [vmem:[#allocation19 + $0xa4] sm:$0xf]
    %v446 = vld [vmem:[#allocation19 + $0xa8] sm:$0xf]
    %v447 = vld [vmem:[#allocation19 + $0xac] sm:$0xf]
    %v448 = vld [vmem:[#allocation19 + $0xb0] sm:$0xf]
    %v449 = vld [vmem:[#allocation19 + $0xb4] sm:$0xf]
    %v450 = vld [vmem:[#allocation19 + $0xb8] sm:$0xf]
    %v451 = vld [vmem:[#allocation19 + $0xbc] sm:$0xf]
    %v452 = vld [vmem:[#allocation19 + $0xc0] sm:$0xf]
    %v453 = vld [vmem:[#allocation19 + $0xc4] sm:$0xf]
    %v454 = vld [vmem:[#allocation19 + $0xc8] sm:$0xf]
    %v455 = vld [vmem:[#allocation19 + $0xcc] sm:$0xf]
    %v456 = vld [vmem:[#allocation19 + $0xd0] sm:$0xf]
    %v457 = vld [vmem:[#allocation19 + $0xd4] sm:$0xf]
    %v458 = vld [vmem:[#allocation19 + $0xd8] sm:$0xf]
    %v459 = vld [vmem:[#allocation19 + $0xdc] sm:$0xf]
    %v460 = vld [vmem:[#allocation19 + $0xe0] sm:$0xf]
    %v461 = vld [vmem:[#allocation19 + $0xe4] sm:$0xf]
    %v462 = vld [vmem:[#allocation19 + $0xe8] sm:$0xf]
    %v463 = vld [vmem:[#allocation19 + $0xec] sm:$0xf]
    %v464 = vld [vmem:[#allocation19 + $0xf0] sm:$0xf]
    %v465 = vld [vmem:[#allocation19 + $0xf4] sm:$0xf]
    %v466 = vld [vmem:[#allocation19 + $0xf8] sm:$0xf]
    %v467 = vld [vmem:[#allocation19 + $0xfc] sm:$0xf]
    %v468 = vpack.c.bf16 %v320, %v319
    %v469 = vld [vmem:[#allocation10] sm:$0x7]
    %v471 = vlaneseq
    %v472 = vshrl.u32 %v471, 7
    %v473 = vsub.s32 0, %v472
    %v474 = vrot.slane %v469, %v473
    %v475 = vlaneseq
    %v476 = vshrl.u32 %v475, 7
    %v477 = vsub.s32 1, %v476
    %v478 = vrot.slane %v469, %v477
    %v479 = vlaneseq
    %v480 = vshrl.u32 %v479, 7
    %v481 = vsub.s32 2, %v480
    %v482 = vrot.slane %v469, %v481
    %v518 = vunpack.c.l.b16 %v324
    %v519 = vunpack.c.h.b16 %v324
    %v520 = vunpack.c.l.b16 %v325
    %v521 = vunpack.c.l.b16 %v326
    %v522 = vunpack.c.h.b16 %v326
    %v523 = vunpack.c.l.b16 %v327
    %v524 = vunpack.c.l.b16 %v328
    %v525 = vunpack.c.h.b16 %v328
    %v526 = vunpack.c.l.b16 %v329
    %v527 = vunpack.c.l.b16 %v330
    %v528 = vunpack.c.h.b16 %v330
    %v529 = vunpack.c.l.b16 %v331
    %v530 = vunpack.c.l.b16 %v332
    %v531 = vunpack.c.h.b16 %v332
    %v532 = vunpack.c.l.b16 %v333
    %v533 = vunpack.c.l.b16 %v334
    %v534 = vunpack.c.h.b16 %v334
    %v535 = vunpack.c.l.b16 %v335
    %v536 = vunpack.c.l.b16 %v336
    %v537 = vunpack.c.h.b16 %v336
    %v538 = vunpack.c.l.b16 %v337
    %v539 = vunpack.c.l.b16 %v338
    %v540 = vunpack.c.h.b16 %v338
    %v541 = vunpack.c.l.b16 %v339
    %v542 = vunpack.c.l.b16 %v340
    %v543 = vunpack.c.h.b16 %v340
    %v544 = vunpack.c.l.b16 %v341
    %v545 = vunpack.c.l.b16 %v342
    %v546 = vunpack.c.h.b16 %v342
    %v547 = vunpack.c.l.b16 %v343
    %v548 = vunpack.c.l.b16 %v344
    %v549 = vunpack.c.h.b16 %v344
    %v550 = vunpack.c.l.b16 %v345
    %v551 = vunpack.c.l.b16 %v346
    %v552 = vunpack.c.h.b16 %v346
    %v553 = vunpack.c.l.b16 %v347
    %v554 = vunpack.c.l.b16 %v348
    %v555 = vunpack.c.h.b16 %v348
    %v556 = vunpack.c.l.b16 %v349
    %v557 = vunpack.c.l.b16 %v350
    %v558 = vunpack.c.h.b16 %v350
    %v559 = vunpack.c.l.b16 %v351
    %v560 = vunpack.c.l.b16 %v352
    %v561 = vunpack.c.h.b16 %v352
    %v562 = vunpack.c.l.b16 %v353
    %v563 = vunpack.c.l.b16 %v354
    %v564 = vunpack.c.h.b16 %v354
    %v565 = vunpack.c.l.b16 %v355
    %v566 = vpack.c.b16 %v521, %v518
    %v567 = vpack.c.b16 %v522, %v519
    %v568 = vpack.c.b16 %v523, %v520
    %v569 = vpack.c.b16 %v527, %v524
    %v570 = vpack.c.b16 %v528, %v525
    %v571 = vpack.c.b16 %v529, %v526
    %v572 = vpack.c.b16 %v533, %v530
    %v573 = vpack.c.b16 %v534, %v531
    %v574 = vpack.c.b16 %v535, %v532
    %v575 = vpack.c.b16 %v539, %v536
    %v576 = vpack.c.b16 %v540, %v537
    %v577 = vpack.c.b16 %v541, %v538
    %v578 = vpack.c.b16 %v545, %v542
    %v579 = vpack.c.b16 %v546, %v543
    %v580 = vpack.c.b16 %v547, %v544
    %v581 = vpack.c.b16 %v551, %v548
    %v582 = vpack.c.b16 %v552, %v549
    %v583 = vpack.c.b16 %v553, %v550
    %v584 = vpack.c.b16 %v557, %v554
    %v585 = vpack.c.b16 %v558, %v555
    %v586 = vpack.c.b16 %v559, %v556
    %v587 = vpack.c.b16 %v563, %v560
    %v588 = vpack.c.b16 %v564, %v561
    %v589 = vpack.c.b16 %v565, %v562
    %614 = vmatprep.subr.bf16.mxu0 %v567
    %615 = vmatpush1.bf16.msra.mxu0 %v566
    %616 = vmatprep.subr.bf16.mxu0 %v570
    %617 = vmatpush1.bf16.msra.mxu0 %v569
    %618 = vmatprep.subr.bf16.mxu0 %v573
    %619 = vmatpush1.bf16.msra.mxu0 %v572
    %620 = vmatprep.subr.bf16.mxu0 %v576
    %621 = vmatpush1.bf16.msra.mxu0 %v575
    %622 = vmatprep.subr.bf16.mxu0 %v579
    %623 = vmatpush1.bf16.msra.mxu0 %v578
    %624 = vmatprep.subr.bf16.mxu0 %v582
    %625 = vmatpush1.bf16.msra.mxu0 %v581
    %626 = vmatprep.subr.bf16.mxu0 %v585
    %627 = vmatpush1.bf16.msra.mxu0 %v584
    %628 = vmatprep.subr.bf16.mxu0 %v588
    %629 = vmatpush1.bf16.msra.mxu0 %v587
    %630 = vmatprep.subr.bf16.mxu0 0
    %631 = vmatpush1.bf16.msra.mxu0 0
    %632 = vmatprep.subr.bf16.mxu0 0
    %633 = vmatpush1.bf16.msra.mxu0 0
    %634 = vmatprep.subr.bf16.mxu0 0
    %635 = vmatpush1.bf16.msra.mxu0 0
    %636 = vmatprep.subr.bf16.mxu0 0
    %637 = vmatpush1.bf16.msra.mxu0 0
    %638 = vmatprep.subr.bf16.mxu0 0
    %639 = vmatpush1.bf16.msra.mxu0 0
    %640 = vmatprep.subr.bf16.mxu0 0
    %641 = vmatpush1.bf16.msra.mxu0 0
    %642 = vmatprep.subr.bf16.mxu0 0
    %643 = vmatpush1.bf16.msra.mxu0 0
    %644 = vmatprep.subr.bf16.mxu0 0
    %645 = vmatpush1.bf16.msra.mxu0 0
    %646 = vmatprep.mubr.bf16.mxu0 0
    %647 = vmatmul.mubr.bf16.gmra.mrb[0].mxu0 %v468
    %v648 = vpop.f32.mrb[0].mxu0
    %v649 = vadd.f32 %v474, %v648
    %v650 = vpop.f32.mrb[0].mxu0
    %v651 = vadd.f32 %v478, %v650
    %v652 = vpop.f32.mrb[0].mxu0
    %v653 = vadd.f32 %v474, %v652
    %v654 = vpop.f32.mrb[0].mxu0
    %v655 = vadd.f32 %v478, %v654
    %656 = vdwg.mxu0
    %657 = vmatprep.subr.bf16.mxu0 0
    %658 = vmatpush1.bf16.msra.mxu0 %v568
    %659 = vmatprep.subr.bf16.mxu0 0
    %660 = vmatpush1.bf16.msra.mxu0 %v571
    %661 = vmatprep.subr.bf16.mxu0 0
    %662 = vmatpush1.bf16.msra.mxu0 %v574
    %663 = vmatprep.subr.bf16.mxu0 0
    %664 = vmatpush1.bf16.msra.mxu0 %v577
    %665 = vmatprep.subr.bf16.mxu0 0
    %666 = vmatpush1.bf16.msra.mxu0 %v580
    %667 = vmatprep.subr.bf16.mxu0 0
    %668 = vmatpush1.bf16.msra.mxu0 %v583
    %669 = vmatprep.subr.bf16.mxu0 0
    %670 = vmatpush1.bf16.msra.mxu0 %v586
    %671 = vmatprep.subr.bf16.mxu0 0
    %672 = vmatpush1.bf16.msra.mxu0 %v589
    %673 = vmatprep.subr.bf16.mxu0 0
    %674 = vmatpush1.bf16.msra.mxu0 0
    %675 = vmatprep.subr.bf16.mxu0 0
    %676 = vmatpush1.bf16.msra.mxu0 0
    %677 = vmatprep.subr.bf16.mxu0 0
    %678 = vmatpush1.bf16.msra.mxu0 0
    %679 = vmatprep.subr.bf16.mxu0 0
    %680 = vmatpush1.bf16.msra.mxu0 0
    %681 = vmatprep.subr.bf16.mxu0 0
    %682 = vmatpush1.bf16.msra.mxu0 0
    %683 = vmatprep.subr.bf16.mxu0 0
    %684 = vmatpush1.bf16.msra.mxu0 0
    %685 = vmatprep.subr.bf16.mxu0 0
    %686 = vmatpush1.bf16.msra.mxu0 0
    %687 = vmatprep.subr.bf16.mxu0 0
    %688 = vmatpush1.bf16.msra.mxu0 0
    %689 = vmatprep.mubr.bf16.mxu0 0
    %690 = vmatmul.mubr.bf16.gmra.mrb[0].mxu0 %v468
    %v691 = vpop.f32.mrb[0].mxu0
    %v692 = vadd.f32 %v482, %v691
    %v693 = vpop.f32.mrb[0].mxu0
    %v694 = vpop.f32.mrb[0].mxu0
    %v695 = vadd.f32 %v482, %v694
    %v696 = vpop.f32.mrb[0].mxu0
    %697 = vdwg.mxu0
    %v698 = vpack.c.bf16 %v649, %v649
    %v699 = vpack.c.bf16 %v651, %v651
    %v700 = vpack.c.bf16 %v692, %v692
    %vm701 = vcmask 523264
    %v703 = vsel %vm701, %v698, 0
    %v706 = vsel %vm701, %v699, 0
    %708 = vmatprep.subr.bf16.mxu0 0
    %709 = vmatpush1.bf16.xpose.msra.mxu0 %v706
    %710 = vmatprep.subr.bf16.mxu0 0
    %711 = vmatpush1.bf16.xpose.msra.mxu0 0
    %712 = vmatprep.subr.bf16.mxu0 0
    %713 = vmatpush1.bf16.xpose.msra.mxu0 0
    %714 = vmatprep.subr.bf16.mxu0 0
    %715 = vmatpush1.bf16.xpose.msra.mxu0 0
    %716 = vmatprep.subr.bf16.mxu0 0
    %717 = vmatpush1.bf16.xpose.msra.mxu0 0
    %718 = vmatprep.subr.bf16.mxu0 0
    %719 = vmatpush1.bf16.xpose.msra.mxu0 0
    %720 = vmatprep.subr.bf16.mxu0 0
    %721 = vmatpush1.bf16.xpose.msra.mxu0 0
    %722 = vmatprep.subr.bf16.mxu0 0
    %723 = vmatpush1.bf16.xpose.msra.mxu0 0
    %724 = vmatprep.subr.bf16.mxu0 0
    %725 = vmatpush1.bf16.xpose.msra.mxu0 0
    %726 = vmatprep.subr.bf16.mxu0 0
    %727 = vmatpush1.bf16.xpose.msra.mxu0 0
    %728 = vmatprep.subr.bf16.mxu0 0
    %729 = vmatpush1.bf16.xpose.msra.mxu0 0
    %730 = vmatprep.subr.bf16.mxu0 0
    %731 = vmatpush1.bf16.xpose.msra.mxu0 0
    %732 = vmatprep.subr.bf16.mxu0 0
    %733 = vmatpush1.bf16.xpose.msra.mxu0 0
    %734 = vmatprep.subr.bf16.mxu0 0
    %735 = vmatpush1.bf16.xpose.msra.mxu0 0
    %736 = vmatprep.subr.bf16.mxu0 0
    %737 = vmatpush1.bf16.xpose.msra.mxu0 0
    %738 = vmatprep.subr.bf16.mxu0 0
    %739 = vmatpush1.bf16.xpose.msra.mxu0 0
    %740 = vmatprep.mubr.bf16.mxu0 0
    %741 = vmatmul.mubr.bf16.gmra.mrb[0].mxu0 %v703
    %v742 = vpop.f32.mrb[0].mxu0
    %v743 = vadd.f32 0.0, %v742
    %v744 = vpop.f32.mrb[0].mxu0
    %v745 = vpop.f32.mrb[0].mxu0
    %v746 = vpop.f32.mrb[0].mxu0
    %747 = vdwg.mxu0
    %v748 = vmul.f32 %v743, 0.125
    %v749 = vlaneseq
    %v750 = vshrl.u32 %v749, 7
    %v751 = vsub.s32 0, %v750
    %v752 = vrot.slane %v323, %v751
    %v753 = vadd.f32 %v748, %v752
    %vm754 = vcmask 64512
    %v755 = vsel %vm754, %v753, -inf
    %756 = vmax.xlane.f32.xlu0 %v755
    %v757 = vpop.xlane.xlu0 %756
    %v758 = vsub.f32 %v753, %v757
    %v759 = vmul.f32 %v758, 1.442695
    %v760 = vpow.pop %v759
    %v761 = vsel %vm754, %v760, 0.0
    %762 = vadd.xlane.f32.xlu0 %v761
    %v763 = vpop.xlane.xlu0 %762
    %v764 = vrcp.pop %v763
    %v765 = vmul.f32 %v760, %v764
    %v766 = vpack.c.bf16 %v765, %v765
    %v768 = vsel %vm754, %v766, 0
    %vm770 = vcmask 1043456
    %v772 = vsel %vm770, %v700, 0
    %774 = vmatprep.subr.bf16.mxu0 0
    %775 = vmatpush1.bf16.msra.mxu0 %v772
    %776 = vmatprep.subr.bf16.mxu0 0
    %777 = vmatpush1.bf16.msra.mxu0 0
    %778 = vmatprep.subr.bf16.mxu0 0
    %779 = vmatpush1.bf16.msra.mxu0 0
    %780 = vmatprep.subr.bf16.mxu0 0
    %781 = vmatpush1.bf16.msra.mxu0 0
    %782 = vmatprep.subr.bf16.mxu0 0
    %783 = vmatpush1.bf16.msra.mxu0 0
    %784 = vmatprep.subr.bf16.mxu0 0
    %785 = vmatpush1.bf16.msra.mxu0 0
    %786 = vmatprep.subr.bf16.mxu0 0
    %787 = vmatpush1.bf16.msra.mxu0 0
    %788 = vmatprep.subr.bf16.mxu0 0
    %789 = vmatpush1.bf16.msra.mxu0 0
    %790 = vmatprep.subr.bf16.mxu0 0
    %791 = vmatpush1.bf16.msra.mxu0 0
    %792 = vmatprep.subr.bf16.mxu0 0
    %793 = vmatpush1.bf16.msra.mxu0 0
    %794 = vmatprep.subr.bf16.mxu0 0
    %795 = vmatpush1.bf16.msra.mxu0 0
    %796 = vmatprep.subr.bf16.mxu0 0
    %797 = vmatpush1.bf16.msra.mxu0 0
    %798 = vmatprep.subr.bf16.mxu0 0
    %799 = vmatpush1.bf16.msra.mxu0 0
    %800 = vmatprep.subr.bf16.mxu0 0
    %801 = vmatpush1.bf16.msra.mxu0 0
    %802 = vmatprep.subr.bf16.mxu0 0
    %803 = vmatpush1.bf16.msra.mxu0 0
    %804 = vmatprep.subr.bf16.mxu0 0
    %805 = vmatpush1.bf16.msra.mxu0 0
    %806 = vmatprep.mubr.bf16.mxu0 0
    %807 = vmatmul.mubr.bf16.gmra.mrb[0].mxu0 %v768
    %v808 = vpop.f32.mrb[0].mxu0
    %v809 = vadd.f32 0.0, %v808
    %v810 = vpop.f32.mrb[0].mxu0
    %v811 = vpop.f32.mrb[0].mxu0
    %v812 = vpop.f32.mrb[0].mxu0
    %813 = vdwg.mxu0
    %v814 = vpack.c.bf16 %v809, %v809
    %816 = vrot.lane.b32.xlu0 %v698, 64
    %v817 = vpop.permute.xlu0 %816
    %819 = vrot.lane.b32.xlu0 %v699, 64
    %v820 = vpop.permute.xlu0 %819
    %v822 = vsel %vm701, %v817, 0
    %v825 = vsel %vm701, %v820, 0
    %827 = vmatprep.subr.bf16.mxu0 0
    %828 = vmatpush1.bf16.xpose.msra.mxu0 %v825
    %829 = vmatprep.subr.bf16.mxu0 0
    %830 = vmatpush1.bf16.xpose.msra.mxu0 0
    %831 = vmatprep.subr.bf16.mxu0 0
    %832 = vmatpush1.bf16.xpose.msra.mxu0 0
    %833 = vmatprep.subr.bf16.mxu0 0
    %834 = vmatpush1.bf16.xpose.msra.mxu0 0
    %835 = vmatprep.subr.bf16.mxu0 0
    %836 = vmatpush1.bf16.xpose.msra.mxu0 0
    %837 = vmatprep.subr.bf16.mxu0 0
    %838 = vmatpush1.bf16.xpose.msra.mxu0 0
    %839 = vmatprep.subr.bf16.mxu0 0
    %840 = vmatpush1.bf16.xpose.msra.mxu0 0
    %841 = vmatprep.subr.bf16.mxu0 0
    %842 = vmatpush1.bf16.xpose.msra.mxu0 0
    %843 = vmatprep.subr.bf16.mxu0 0
    %844 = vmatpush1.bf16.xpose.msra.mxu0 0
    %845 = vmatprep.subr.bf16.mxu0 0
    %846 = vmatpush1.bf16.xpose.msra.mxu0 0
    %847 = vmatprep.subr.bf16.mxu0 0
    %848 = vmatpush1.bf16.xpose.msra.mxu0 0
    %849 = vmatprep.subr.bf16.mxu0 0
    %850 = vmatpush1.bf16.xpose.msra.mxu0 0
    %851 = vmatprep.subr.bf16.mxu0 0
    %852 = vmatpush1.bf16.xpose.msra.mxu0 0
    %853 = vmatprep.subr.bf16.mxu0 0
    %854 = vmatpush1.bf16.xpose.msra.mxu0 0
    %855 = vmatprep.subr.bf16.mxu0 0
    %856 = vmatpush1.bf16.xpose.msra.mxu0 0
    %857 = vmatprep.subr.bf16.mxu0 0
    %858 = vmatpush1.bf16.xpose.msra.mxu0 0
    %859 = vmatprep.mubr.bf16.mxu0 0
    %860 = vmatmul.mubr.bf16.gmra.mrb[0].mxu0 %v822
    %v861 = vpop.f32.mrb[0].mxu0
    %v862 = vadd.f32 0.0, %v861
    %v863 = vpop.f32.mrb[0].mxu0
    %v864 = vpop.f32.mrb[0].mxu0
    %v865 = vpop.f32.mrb[0].mxu0
    %866 = vdwg.mxu0
    %v867 = vmul.f32 %v862, 0.125
    %v868 = vadd.f32 %v867, %v752
    %v869 = vsel %vm754, %v868, -inf
    %870 = vmax.xlane.f32.xlu0 %v869
    %v871 = vpop.xlane.xlu0 %870
    %v872 = vsub.f32 %v868, %v871
    %v873 = vmul.f32 %v872, 1.442695
    %v874 = vpow.pop %v873
    %v875 = vsel %vm754, %v874, 0.0
    %876 = vadd.xlane.f32.xlu0 %v875
    %v877 = vpop.xlane.xlu0 %876
    %v878 = vrcp.pop %v877
    %v879 = vmul.f32 %v874, %v878
    %v880 = vpack.c.bf16 %v879, %v879
    %882 = vrot.lane.b32.xlu0 %v700, 64
    %v883 = vpop.permute.xlu0 %882
    %v885 = vsel %vm754, %v880, 0
    %v888 = vsel %vm770, %v883, 0
    %890 = vmatprep.subr.bf16.mxu0 0
    %891 = vmatpush1.bf16.msra.mxu0 %v888
    %892 = vmatprep.subr.bf16.mxu0 0
    %893 = vmatpush1.bf16.msra.mxu0 0
    %894 = vmatprep.subr.bf16.mxu0 0
    %895 = vmatpush1.bf16.msra.mxu0 0
    %896 = vmatprep.subr.bf16.mxu0 0
    %897 = vmatpush1.bf16.msra.mxu0 0
    %898 = vmatprep.subr.bf16.mxu0 0
    %899 = vmatpush1.bf16.msra.mxu0 0
    %900 = vmatprep.subr.bf16.mxu0 0
    %901 = vmatpush1.bf16.msra.mxu0 0
    %902 = vmatprep.subr.bf16.mxu0 0
    %903 = vmatpush1.bf16.msra.mxu0 0
    %904 = vmatprep.subr.bf16.mxu0 0
    %905 = vmatpush1.bf16.msra.mxu0 0
    %906 = vmatprep.subr.bf16.mxu0 0
    %907 = vmatpush1.bf16.msra.mxu0 0
    %908 = vmatprep.subr.bf16.mxu0 0
    %909 = vmatpush1.bf16.msra.mxu0 0
    %910 = vmatprep.subr.bf16.mxu0 0
    %911 = vmatpush1.bf16.msra.mxu0 0
    %912 = vmatprep.subr.bf16.mxu0 0
    %913 = vmatpush1.bf16.msra.mxu0 0
    %914 = vmatprep.subr.bf16.mxu0 0
    %915 = vmatpush1.bf16.msra.mxu0 0
    %916 = vmatprep.subr.bf16.mxu0 0
    %917 = vmatpush1.bf16.msra.mxu0 0
    %918 = vmatprep.subr.bf16.mxu0 0
    %919 = vmatpush1.bf16.msra.mxu0 0
    %920 = vmatprep.subr.bf16.mxu0 0
    %921 = vmatpush1.bf16.msra.mxu0 0
    %922 = vmatprep.mubr.bf16.mxu0 0
    %923 = vmatmul.mubr.bf16.gmra.mrb[0].mxu0 %v885
    %v924 = vpop.f32.mrb[0].mxu0
    %v925 = vadd.f32 0.0, %v924
    %v926 = vpop.f32.mrb[0].mxu0
    %v927 = vpop.f32.mrb[0].mxu0
    %v928 = vpop.f32.mrb[0].mxu0
    %929 = vdwg.mxu0
    %v930 = vpack.c.bf16 %v925, %v925
    %v939 = vunpack.c.l.b16 %v364
    %v940 = vunpack.c.l.b16 %v365
    %v941 = vunpack.c.l.b16 %v366
    %v942 = vunpack.c.l.b16 %v367
    %v943 = vunpack.c.l.b16 %v368
    %v944 = vunpack.c.l.b16 %v369
    %v945 = vunpack.c.l.b16 %v370
    %v946 = vunpack.c.l.b16 %v371
    %v947 = vpack.c.b16 %v940, %v939
    %v948 = vpack.c.b16 %v942, %v941
    %v949 = vpack.c.b16 %v944, %v943
    %v950 = vpack.c.b16 %v946, %v945
    %v956 = vsel %vm701, %v930, 0
    %958 = vmatprep.subr.bf16.mxu0 0
    %959 = vmatpush1.bf16.msra.mxu0 %v947
    %960 = vmatprep.subr.bf16.mxu0 0
    %961 = vmatpush1.bf16.msra.mxu0 %v948
    %962 = vmatprep.subr.bf16.mxu0 0
    %963 = vmatpush1.bf16.msra.mxu0 %v949
    %964 = vmatprep.subr.bf16.mxu0 0
    %965 = vmatpush1.bf16.msra.mxu0 %v950
    %966 = vmatprep.subr.bf16.mxu0 0
    %967 = vmatpush1.bf16.msra.mxu0 0
    %968 = vmatprep.subr.bf16.mxu0 0
    %969 = vmatpush1.bf16.msra.mxu0 0
    %970 = vmatprep.subr.bf16.mxu0 0
    %971 = vmatpush1.bf16.msra.mxu0 0
    %972 = vmatprep.subr.bf16.mxu0 0
    %973 = vmatpush1.bf16.msra.mxu0 0
    %974 = vmatprep.subr.bf16.mxu0 0
    %975 = vmatpush1.bf16.msra.mxu0 0
    %976 = vmatprep.subr.bf16.mxu0 0
    %977 = vmatpush1.bf16.msra.mxu0 0
    %978 = vmatprep.subr.bf16.mxu0 0
    %979 = vmatpush1.bf16.msra.mxu0 0
    %980 = vmatprep.subr.bf16.mxu0 0
    %981 = vmatpush1.bf16.msra.mxu0 0
    %982 = vmatprep.subr.bf16.mxu0 0
    %983 = vmatpush1.bf16.msra.mxu0 0
    %984 = vmatprep.subr.bf16.mxu0 0
    %985 = vmatpush1.bf16.msra.mxu0 0
    %986 = vmatprep.subr.bf16.mxu0 0
    %987 = vmatpush1.bf16.msra.mxu0 0
    %988 = vmatprep.subr.bf16.mxu0 0
    %989 = vmatpush1.bf16.msra.mxu0 0
    %990 = vmatprep.mubr.bf16.mxu0 0
    %991 = vmatmul.mubr.bf16.gmra.mrb[0].mxu0 %v956
    %v992 = vpop.f32.mrb[0].mxu0
    %v993 = vadd.f32 0.0, %v992
    %v994 = vpop.f32.mrb[0].mxu0
    %v995 = vpop.f32.mrb[0].mxu0
    %v996 = vpop.f32.mrb[0].mxu0
    %997 = vdwg.mxu0
    %v1006 = vunpack.c.l.b16 %v356
    %v1007 = vunpack.c.l.b16 %v357
    %v1008 = vunpack.c.l.b16 %v358
    %v1009 = vunpack.c.l.b16 %v359
    %v1010 = vunpack.c.l.b16 %v360
    %v1011 = vunpack.c.l.b16 %v361
    %v1012 = vunpack.c.l.b16 %v362
    %v1013 = vunpack.c.l.b16 %v363
    %v1014 = vpack.c.b16 %v1007, %v1006
    %v1015 = vpack.c.b16 %v1009, %v1008
    %v1016 = vpack.c.b16 %v1011, %v1010
    %v1017 = vpack.c.b16 %v1013, %v1012
    %v1023 = vsel %vm701, %v814, 0
    %1025 = vmatprep.subr.bf16.mxu0 0
    %1026 = vmatpush1.bf16.msra.mxu0 %v1014
    %1027 = vmatprep.subr.bf16.mxu0 0
    %1028 = vmatpush1.bf16.msra.mxu0 %v1015
    %1029 = vmatprep.subr.bf16.mxu0 0
    %1030 = vmatpush1.bf16.msra.mxu0 %v1016
    %1031 = vmatprep.subr.bf16.mxu0 0
    %1032 = vmatpush1.bf16.msra.mxu0 %v1017
    %1033 = vmatprep.subr.bf16.mxu0 0
    %1034 = vmatpush1.bf16.msra.mxu0 0
    %1035 = vmatprep.subr.bf16.mxu0 0
    %1036 = vmatpush1.bf16.msra.mxu0 0
    %1037 = vmatprep.subr.bf16.mxu0 0
    %1038 = vmatpush1.bf16.msra.mxu0 0
    %1039 = vmatprep.subr.bf16.mxu0 0
    %1040 = vmatpush1.bf16.msra.mxu0 0
    %1041 = vmatprep.subr.bf16.mxu0 0
    %1042 = vmatpush1.bf16.msra.mxu0 0
    %1043 = vmatprep.subr.bf16.mxu0 0
    %1044 = vmatpush1.bf16.msra.mxu0 0
    %1045 = vmatprep.subr.bf16.mxu0 0
    %1046 = vmatpush1.bf16.msra.mxu0 0
    %1047 = vmatprep.subr.bf16.mxu0 0
    %1048 = vmatpush1.bf16.msra.mxu0 0
    %1049 = vmatprep.subr.bf16.mxu0 0
    %1050 = vmatpush1.bf16.msra.mxu0 0
    %1051 = vmatprep.subr.bf16.mxu0 0
    %1052 = vmatpush1.bf16.msra.mxu0 0
    %1053 = vmatprep.subr.bf16.mxu0 0
    %1054 = vmatpush1.bf16.msra.mxu0 0
    %1055 = vmatprep.subr.bf16.mxu0 0
    %1056 = vmatpush1.bf16.msra.mxu0 0
    %1057 = vmatprep.mubr.bf16.mxu0 0
    %1058 = vmatmul.mubr.bf16.gmra.mrb[0].mxu0 %v1023
    %v1059 = vpop.f32.mrb[0].mxu0
    %v1060 = vadd.f32 %v993, %v1059
    %v1061 = vpop.f32.mrb[0].mxu0
    %v1062 = vpop.f32.mrb[0].mxu0
    %v1063 = vpop.f32.mrb[0].mxu0
    %1064 = vdwg.mxu0
    %v1065 = vpack.c.bf16 %v653, %v653
    %v1066 = vpack.c.bf16 %v655, %v655
    %v1067 = vpack.c.bf16 %v695, %v695
    %v1069 = vsel %vm701, %v1065, 0
    %v1072 = vsel %vm701, %v1066, 0
    %1074 = vmatprep.subr.bf16.mxu0 0
    %1075 = vmatpush1.bf16.xpose.msra.mxu0 %v1072
    %1076 = vmatprep.subr.bf16.mxu0 0
    %1077 = vmatpush1.bf16.xpose.msra.mxu0 0
    %1078 = vmatprep.subr.bf16.mxu0 0
    %1079 = vmatpush1.bf16.xpose.msra.mxu0 0
    %1080 = vmatprep.subr.bf16.mxu0 0
    %1081 = vmatpush1.bf16.xpose.msra.mxu0 0
    %1082 = vmatprep.subr.bf16.mxu0 0
    %1083 = vmatpush1.bf16.xpose.msra.mxu0 0
    %1084 = vmatprep.subr.bf16.mxu0 0
    %1085 = vmatpush1.bf16.xpose.msra.mxu0 0
    %1086 = vmatprep.subr.bf16.mxu0 0
    %1087 = vmatpush1.bf16.xpose.msra.mxu0 0
    %1088 = vmatprep.subr.bf16.mxu0 0
    %1089 = vmatpush1.bf16.xpose.msra.mxu0 0
    %1090 = vmatprep.subr.bf16.mxu0 0
    %1091 = vmatpush1.bf16.xpose.msra.mxu0 0
    %1092 = vmatprep.subr.bf16.mxu0 0
    %1093 = vmatpush1.bf16.xpose.msra.mxu0 0
    %1094 = vmatprep.subr.bf16.mxu0 0
    %1095 = vmatpush1.bf16.xpose.msra.mxu0 0
    %1096 = vmatprep.subr.bf16.mxu0 0
    %1097 = vmatpush1.bf16.xpose.msra.mxu0 0
    %1098 = vmatprep.subr.bf16.mxu0 0
    %1099 = vmatpush1.bf16.xpose.msra.mxu0 0
    %1100 = vmatprep.subr.bf16.mxu0 0
    %1101 = vmatpush1.bf16.xpose.msra.mxu0 0
    %1102 = vmatprep.subr.bf16.mxu0 0
    %1103 = vmatpush1.bf16.xpose.msra.mxu0 0
    %1104 = vmatprep.subr.bf16.mxu0 0
    %1105 = vmatpush1.bf16.xpose.msra.mxu0 0
    %1106 = vmatprep.mubr.bf16.mxu0 0
    %1107 = vmatmul.mubr.bf16.gmra.mrb[0].mxu0 %v1069
    %v1108 = vpop.f32.mrb[0].mxu0
    %v1109 = vadd.f32 0.0, %v1108
    %v1110 = vpop.f32.mrb[0].mxu0
    %v1111 = vpop.f32.mrb[0].mxu0
    %v1112 = vpop.f32.mrb[0].mxu0
    %1113 = vdwg.mxu0
    %v1114 = vmul.f32 %v1109, 0.125
    %v1115 = vlaneseq
    %v1116 = vshrl.u32 %v1115, 7
    %v1117 = vsub.s32 1, %v1116
    %v1118 = vrot.slane %v323, %v1117
    %v1119 = vadd.f32 %v1114, %v1118
    %v1120 = vsel %vm754, %v1119, -inf
    %1121 = vmax.xlane.f32.xlu0 %v1120
    %v1122 = vpop.xlane.xlu0 %1121
    %v1123 = vsub.f32 %v1119, %v1122
    %v1124 = vmul.f32 %v1123, 1.442695
    %v1125 = vpow.pop %v1124
    %v1126 = vsel %vm754, %v1125, 0.0
    %1127 = vadd.xlane.f32.xlu0 %v1126
    %v1128 = vpop.xlane.xlu0 %1127
    %v1129 = vrcp.pop %v1128
    %v1130 = vmul.f32 %v1125, %v1129
    %v1131 = vpack.c.bf16 %v1130, %v1130
    %v1133 = vsel %vm754, %v1131, 0
    %v1136 = vsel %vm770, %v1067, 0
    %1138 = vmatprep.subr.bf16.mxu0 0
    %1139 = vmatpush1.bf16.msra.mxu0 %v1136
    %1140 = vmatprep.subr.bf16.mxu0 0
    %1141 = vmatpush1.bf16.msra.mxu0 0
    %1142 = vmatprep.subr.bf16.mxu0 0
    %1143 = vmatpush1.bf16.msra.mxu0 0
    %1144 = vmatprep.subr.bf16.mxu0 0
    %1145 = vmatpush1.bf16.msra.mxu0 0
    %1146 = vmatprep.subr.bf16.mxu0 0
    %1147 = vmatpush1.bf16.msra.mxu0 0
    %1148 = vmatprep.subr.bf16.mxu0 0
    %1149 = vmatpush1.bf16.msra.mxu0 0
    %1150 = vmatprep.subr.bf16.mxu0 0
    %1151 = vmatpush1.bf16.msra.mxu0 0
    %1152 = vmatprep.subr.bf16.mxu0 0
    %1153 = vmatpush1.bf16.msra.mxu0 0
    %1154 = vmatprep.subr.bf16.mxu0 0
    %1155 = vmatpush1.bf16.msra.mxu0 0
    %1156 = vmatprep.subr.bf16.mxu0 0
    %1157 = vmatpush1.bf16.msra.mxu0 0
    %1158 = vmatprep.subr.bf16.mxu0 0
    %1159 = vmatpush1.bf16.msra.mxu0 0
    %1160 = vmatprep.subr.bf16.mxu0 0
    %1161 = vmatpush1.bf16.msra.mxu0 0
    %1162 = vmatprep.subr.bf16.mxu0 0
    %1163 = vmatpush1.bf16.msra.mxu0 0
    %1164 = vmatprep.subr.bf16.mxu0 0
    %1165 = vmatpush1.bf16.msra.mxu0 0
    %1166 = vmatprep.subr.bf16.mxu0 0
    %1167 = vmatpush1.bf16.msra.mxu0 0
    %1168 = vmatprep.subr.bf16.mxu0 0
    %1169 = vmatpush1.bf16.msra.mxu0 0
    %1170 = vmatprep.mubr.bf16.mxu0 0
    %1171 = vmatmul.mubr.bf16.gmra.mrb[0].mxu0 %v1133
    %v1172 = vpop.f32.mrb[0].mxu0
    %v1173 = vadd.f32 0.0, %v1172
    %v1174 = vpop.f32.mrb[0].mxu0
    %v1175 = vpop.f32.mrb[0].mxu0
    %v1176 = vpop.f32.mrb[0].mxu0
    %1177 = vdwg.mxu0
    %v1178 = vpack.c.bf16 %v1173, %v1173
    %1180 = vrot.lane.b32.xlu0 %v1065, 64
    %v1181 = vpop.permute.xlu0 %1180
    %1183 = vrot.lane.b32.xlu0 %v1066, 64
    %v1184 = vpop.permute.xlu0 %1183
    %v1186 = vsel %vm701, %v1181, 0
    %v1189 = vsel %vm701, %v1184, 0
    %1191 = vmatprep.subr.bf16.mxu0 0
    %1192 = vmatpush1.bf16.xpose.msra.mxu0 %v1189
    %1193 = vmatprep.subr.bf16.mxu0 0
    %1194 = vmatpush1.bf16.xpose.msra.mxu0 0
    %1195 = vmatprep.subr.bf16.mxu0 0
    %1196 = vmatpush1.bf16.xpose.msra.mxu0 0
    %1197 = vmatprep.subr.bf16.mxu0 0
    %1198 = vmatpush1.bf16.xpose.msra.mxu0 0
    %1199 = vmatprep.subr.bf16.mxu0 0
    %1200 = vmatpush1.bf16.xpose.msra.mxu0 0
    %1201 = vmatprep.subr.bf16.mxu0 0
    %1202 = vmatpush1.bf16.xpose.msra.mxu0 0
    %1203 = vmatprep.subr.bf16.mxu0 0
    %1204 = vmatpush1.bf16.xpose.msra.mxu0 0
    %1205 = vmatprep.subr.bf16.mxu0 0
    %1206 = vmatpush1.bf16.xpose.msra.mxu0 0
    %1207 = vmatprep.subr.bf16.mxu0 0
    %1208 = vmatpush1.bf16.xpose.msra.mxu0 0
    %1209 = vmatprep.subr.bf16.mxu0 0
    %1210 = vmatpush1.bf16.xpose.msra.mxu0 0
    %1211 = vmatprep.subr.bf16.mxu0 0
    %1212 = vmatpush1.bf16.xpose.msra.mxu0 0
    %1213 = vmatprep.subr.bf16.mxu0 0
    %1214 = vmatpush1.bf16.xpose.msra.mxu0 0
    %1215 = vmatprep.subr.bf16.mxu0 0
    %1216 = vmatpush1.bf16.xpose.msra.mxu0 0
    %1217 = vmatprep.subr.bf16.mxu0 0
    %1218 = vmatpush1.bf16.xpose.msra.mxu0 0
    %1219 = vmatprep.subr.bf16.mxu0 0
    %1220 = vmatpush1.bf16.xpose.msra.mxu0 0
    %1221 = vmatprep.subr.bf16.mxu0 0
    %1222 = vmatpush1.bf16.xpose.msra.mxu0 0
    %1223 = vmatprep.mubr.bf16.mxu0 0
    %1224 = vmatmul.mubr.bf16.gmra.mrb[0].mxu0 %v1186
    %v1225 = vpop.f32.mrb[0].mxu0
    %v1226 = vadd.f32 0.0, %v1225
    %v1227 = vpop.f32.mrb[0].mxu0
    %v1228 = vpop.f32.mrb[0].mxu0
    %v1229 = vpop.f32.mrb[0].mxu0
    %1230 = vdwg.mxu0
    %v1231 = vmul.f32 %v1226, 0.125
    %v1232 = vadd.f32 %v1231, %v1118
    %v1233 = vsel %vm754, %v1232, -inf
    %1234 = vmax.xlane.f32.xlu0 %v1233
    %v1235 = vpop.xlane.xlu0 %1234
    %v1236 = vsub.f32 %v1232, %v1235
    %v1237 = vmul.f32 %v1236, 1.442695
    %v1238 = vpow.pop %v1237
    %v1239 = vsel %vm754, %v1238, 0.0
    %1240 = vadd.xlane.f32.xlu0 %v1239
    %v1241 = vpop.xlane.xlu0 %1240
    %v1242 = vrcp.pop %v1241
    %v1243 = vmul.f32 %v1238, %v1242
    %v1244 = vpack.c.bf16 %v1243, %v1243
    %1246 = vrot.lane.b32.xlu0 %v1067, 64
    %v1247 = vpop.permute.xlu0 %1246
    %v1249 = vsel %vm754, %v1244, 0
    %v1252 = vsel %vm770, %v1247, 0
    %1254 = vmatprep.subr.bf16.mxu0 0
    %1255 = vmatpush1.bf16.msra.mxu0 %v1252
    %1256 = vmatprep.subr.bf16.mxu0 0
    %1257 = vmatpush1.bf16.msra.mxu0 0
    %1258 = vmatprep.subr.bf16.mxu0 0
    %1259 = vmatpush1.bf16.msra.mxu0 0
    %1260 = vmatprep.subr.bf16.mxu0 0
    %1261 = vmatpush1.bf16.msra.mxu0 0
    %1262 = vmatprep.subr.bf16.mxu0 0
    %1263 = vmatpush1.bf16.msra.mxu0 0
    %1264 = vmatprep.subr.bf16.mxu0 0
    %1265 = vmatpush1.bf16.msra.mxu0 0
    %1266 = vmatprep.subr.bf16.mxu0 0
    %1267 = vmatpush1.bf16.msra.mxu0 0
    %1268 = vmatprep.subr.bf16.mxu0 0
    %1269 = vmatpush1.bf16.msra.mxu0 0
    %1270 = vmatprep.subr.bf16.mxu0 0
    %1271 = vmatpush1.bf16.msra.mxu0 0
    %1272 = vmatprep.subr.bf16.mxu0 0
    %1273 = vmatpush1.bf16.msra.mxu0 0
    %1274 = vmatprep.subr.bf16.mxu0 0
    %1275 = vmatpush1.bf16.msra.mxu0 0
    %1276 = vmatprep.subr.bf16.mxu0 0
    %1277 = vmatpush1.bf16.msra.mxu0 0
    %1278 = vmatprep.subr.bf16.mxu0 0
    %1279 = vmatpush1.bf16.msra.mxu0 0
    %1280 = vmatprep.subr.bf16.mxu0 0
    %1281 = vmatpush1.bf16.msra.mxu0 0
    %1282 = vmatprep.subr.bf16.mxu0 0
    %1283 = vmatpush1.bf16.msra.mxu0 0
    %1284 = vmatprep.subr.bf16.mxu0 0
    %1285 = vmatpush1.bf16.msra.mxu0 0
    %1286 = vmatprep.mubr.bf16.mxu0 0
    %1287 = vmatmul.mubr.bf16.gmra.mrb[0].mxu0 %v1249
    %v1288 = vpop.f32.mrb[0].mxu0
    %v1289 = vadd.f32 0.0, %v1288
    %v1290 = vpop.f32.mrb[0].mxu0
    %v1291 = vpop.f32.mrb[0].mxu0
    %v1292 = vpop.f32.mrb[0].mxu0
    %1293 = vdwg.mxu0
    %v1294 = vpack.c.bf16 %v1289, %v1289
    %v1296 = vsel %vm701, %v1294, 0
    %1298 = vmatprep.subr.bf16.mxu0 0
    %1299 = vmatpush1.bf16.msra.mxu0 %v947
    %1300 = vmatprep.subr.bf16.mxu0 0
    %1301 = vmatpush1.bf16.msra.mxu0 %v948
    %1302 = vmatprep.subr.bf16.mxu0 0
    %1303 = vmatpush1.bf16.msra.mxu0 %v949
    %1304 = vmatprep.subr.bf16.mxu0 0
    %1305 = vmatpush1.bf16.msra.mxu0 %v950
    %1306 = vmatprep.subr.bf16.mxu0 0
    %1307 = vmatpush1.bf16.msra.mxu0 0
    %1308 = vmatprep.subr.bf16.mxu0 0
    %1309 = vmatpush1.bf16.msra.mxu0 0
    %1310 = vmatprep.subr.bf16.mxu0 0
    %1311 = vmatpush1.bf16.msra.mxu0 0
    %1312 = vmatprep.subr.bf16.mxu0 0
    %1313 = vmatpush1.bf16.msra.mxu0 0
    %1314 = vmatprep.subr.bf16.mxu0 0
    %1315 = vmatpush1.bf16.msra.mxu0 0
    %1316 = vmatprep.subr.bf16.mxu0 0
    %1317 = vmatpush1.bf16.msra.mxu0 0
    %1318 = vmatprep.subr.bf16.mxu0 0
    %1319 = vmatpush1.bf16.msra.mxu0 0
    %1320 = vmatprep.subr.bf16.mxu0 0
    %1321 = vmatpush1.bf16.msra.mxu0 0
    %1322 = vmatprep.subr.bf16.mxu0 0
    %1323 = vmatpush1.bf16.msra.mxu0 0
    %1324 = vmatprep.subr.bf16.mxu0 0
    %1325 = vmatpush1.bf16.msra.mxu0 0
    %1326 = vmatprep.subr.bf16.mxu0 0
    %1327 = vmatpush1.bf16.msra.mxu0 0
    %1328 = vmatprep.subr.bf16.mxu0 0
    %1329 = vmatpush1.bf16.msra.mxu0 0
    %1330 = vmatprep.mubr.bf16.mxu0 0
    %1331 = vmatmul.mubr.bf16.gmra.mrb[0].mxu0 %v1296
    %v1332 = vpop.f32.mrb[0].mxu0
    %v1333 = vadd.f32 0.0, %v1332
    %v1334 = vpop.f32.mrb[0].mxu0
    %v1335 = vpop.f32.mrb[0].mxu0
    %v1336 = vpop.f32.mrb[0].mxu0
    %1337 = vdwg.mxu0
    %v1339 = vsel %vm701, %v1178, 0
    %1341 = vmatprep.subr.bf16.mxu0 0
    %1342 = vmatpush1.bf16.msra.mxu0 %v1014
    %1343 = vmatprep.subr.bf16.mxu0 0
    %1344 = vmatpush1.bf16.msra.mxu0 %v1015
    %1345 = vmatprep.subr.bf16.mxu0 0
    %1346 = vmatpush1.bf16.msra.mxu0 %v1016
    %1347 = vmatprep.subr.bf16.mxu0 0
    %1348 = vmatpush1.bf16.msra.mxu0 %v1017
    %1349 = vmatprep.subr.bf16.mxu0 0
    %1350 = vmatpush1.bf16.msra.mxu0 0
    %1351 = vmatprep.subr.bf16.mxu0 0
    %1352 = vmatpush1.bf16.msra.mxu0 0
    %1353 = vmatprep.subr.bf16.mxu0 0
    %1354 = vmatpush1.bf16.msra.mxu0 0
    %1355 = vmatprep.subr.bf16.mxu0 0
    %1356 = vmatpush1.bf16.msra.mxu0 0
    %1357 = vmatprep.subr.bf16.mxu0 0
    %1358 = vmatpush1.bf16.msra.mxu0 0
    %1359 = vmatprep.subr.bf16.mxu0 0
    %1360 = vmatpush1.bf16.msra.mxu0 0
    %1361 = vmatprep.subr.bf16.mxu0 0
    %1362 = vmatpush1.bf16.msra.mxu0 0
    %1363 = vmatprep.subr.bf16.mxu0 0
    %1364 = vmatpush1.bf16.msra.mxu0 0
    %1365 = vmatprep.subr.bf16.mxu0 0
    %1366 = vmatpush1.bf16.msra.mxu0 0
    %1367 = vmatprep.subr.bf16.mxu0 0
    %1368 = vmatpush1.bf16.msra.mxu0 0
    %1369 = vmatprep.subr.bf16.mxu0 0
    %1370 = vmatpush1.bf16.msra.mxu0 0
    %1371 = vmatprep.subr.bf16.mxu0 0
    %1372 = vmatpush1.bf16.msra.mxu0 0
    %1373 = vmatprep.mubr.bf16.mxu0 0
    %1374 = vmatmul.mubr.bf16.gmra.mrb[0].mxu0 %v1339
    %v1375 = vpop.f32.mrb[0].mxu0
    %v1376 = vadd.f32 %v1333, %v1375
    %v1377 = vpop.f32.mrb[0].mxu0
    %v1378 = vpop.f32.mrb[0].mxu0
    %v1379 = vpop.f32.mrb[0].mxu0
    %1380 = vdwg.mxu0
    %v1381 = vld [vmem:[%s7] sm:$0x1]
    %v1383 = vlaneseq
    %v1384 = vshrl.u32 %v1383, 7
    %v1385 = vsub.s32 0, %v1384
    %v1386 = vrot.slane %v1381, %v1385
    %v1388 = vadd.f32 %v1060, %v1386
    %v1389 = vadd.f32 %v1376, %v1386
    %v1390 = vadd.f32 %v1388, %v319
    %v1391 = vadd.f32 %v1389, %v320
    %v1392 = vld [vmem:[#allocation13] sm:$0x1]
    %v1393 = vld [vmem:[#allocation14] sm:$0x1]
    %1394 = vadd.xlane.f32.xlu0 %v1390
    %v1395 = vpop.xlane.xlu0 %1394
    %1396 = vadd.xlane.f32.xlu0 %v1391
    %v1397 = vpop.xlane.xlu0 %1396
    %v1398 = vmul.f32 %v1395, %v286
    %v1399 = vmul.f32 %v1397, %v286
    %v1400 = vsub.f32 %v1390, %v1398
    %v1401 = vsub.f32 %v1391, %v1399
    %v1402 = vmul.f32 %v1400, %v1400
    %v1403 = vmul.f32 %v1401, %v1401
    %1404 = vadd.xlane.f32.xlu0 %v1402
    %v1405 = vpop.xlane.xlu0 %1404
    %1406 = vadd.xlane.f32.xlu0 %v1403
    %v1407 = vpop.xlane.xlu0 %1406
    %v1408 = vmul.f32 %v1405, %v286
    %v1409 = vmul.f32 %v1407, %v286
    %v1410 = vadd.f32 %v1408, 1e-12
    %v1411 = vadd.f32 %v1409, 1e-12
    %v1412 = vrsqrt.pop %v1410
    %v1413 = vrsqrt.pop %v1411
    %v1414 = vmul.f32 %v1400, %v1412
    %v1415 = vmul.f32 %v1401, %v1413
    %v1417 = vlaneseq
    %v1418 = vshrl.u32 %v1417, 7
    %v1419 = vsub.s32 0, %v1418
    %v1420 = vrot.slane %v1392, %v1419
    %v1422 = vmul.f32 %v1414, %v1420
    %v1423 = vmul.f32 %v1415, %v1420
    %v1425 = vlaneseq
    %v1426 = vshrl.u32 %v1425, 7
    %v1427 = vsub.s32 0, %v1426
    %v1428 = vrot.slane %v1393, %v1427
    %v1430 = vadd.f32 %v1422, %v1428
    %v1431 = vadd.f32 %v1423, %v1428
    %v1432 = vpack.c.bf16 %v1431, %v1430
    %v1433 = vld [vmem:[#allocation17] sm:$0xf]
    %v1435 = vlaneseq
    %v1436 = vshrl.u32 %v1435, 7
    %v1437 = vsub.s32 0, %v1436
    %v1438 = vrot.slane %v1433, %v1437
    %v1439 = vlaneseq
    %v1440 = vshrl.u32 %v1439, 7
    %v1441 = vsub.s32 1, %v1440
    %v1442 = vrot.slane %v1433, %v1441
    %v1443 = vlaneseq
    %v1444 = vshrl.u32 %v1443, 7
    %v1445 = vsub.s32 2, %v1444
    %v1446 = vrot.slane %v1433, %v1445
    %v1447 = vlaneseq
    %v1448 = vshrl.u32 %v1447, 7
    %v1449 = vsub.s32 3, %v1448
    %v1450 = vrot.slane %v1433, %v1449
    %v1487 = vunpack.c.l.b16 %v372
    %v1488 = vunpack.c.h.b16 %v372
    %v1489 = vunpack.c.l.b16 %v373
    %v1490 = vunpack.c.h.b16 %v373
    %v1491 = vunpack.c.l.b16 %v374
    %v1492 = vunpack.c.h.b16 %v374
    %v1493 = vunpack.c.l.b16 %v375
    %v1494 = vunpack.c.h.b16 %v375
    %v1495 = vunpack.c.l.b16 %v376
    %v1496 = vunpack.c.h.b16 %v376
    %v1497 = vunpack.c.l.b16 %v377
    %v1498 = vunpack.c.h.b16 %v377
    %v1499 = vunpack.c.l.b16 %v378
    %v1500 = vunpack.c.h.b16 %v378
    %v1501 = vunpack.c.l.b16 %v379
    %v1502 = vunpack.c.h.b16 %v379
    %v1503 = vunpack.c.l.b16 %v380
    %v1504 = vunpack.c.h.b16 %v380
    %v1505 = vunpack.c.l.b16 %v381
    %v1506 = vunpack.c.h.b16 %v381
    %v1507 = vunpack.c.l.b16 %v382
    %v1508 = vunpack.c.h.b16 %v382
    %v1509 = vunpack.c.l.b16 %v383
    %v1510 = vunpack.c.h.b16 %v383
    %v1511 = vunpack.c.l.b16 %v384
    %v1512 = vunpack.c.h.b16 %v384
    %v1513 = vunpack.c.l.b16 %v385
    %v1514 = vunpack.c.h.b16 %v385
    %v1515 = vunpack.c.l.b16 %v386
    %v1516 = vunpack.c.h.b16 %v386
    %v1517 = vunpack.c.l.b16 %v387
    %v1518 = vunpack.c.h.b16 %v387
    %v1519 = vunpack.c.l.b16 %v388
    %v1520 = vunpack.c.h.b16 %v388
    %v1521 = vunpack.c.l.b16 %v389
    %v1522 = vunpack.c.h.b16 %v389
    %v1523 = vunpack.c.l.b16 %v390
    %v1524 = vunpack.c.h.b16 %v390
    %v1525 = vunpack.c.l.b16 %v391
    %v1526 = vunpack.c.h.b16 %v391
    %v1527 = vunpack.c.l.b16 %v392
    %v1528 = vunpack.c.h.b16 %v392
    %v1529 = vunpack.c.l.b16 %v393
    %v1530 = vunpack.c.h.b16 %v393
    %v1531 = vunpack.c.l.b16 %v394
    %v1532 = vunpack.c.h.b16 %v394
    %v1533 = vunpack.c.l.b16 %v395
    %v1534 = vunpack.c.h.b16 %v395
    %v1535 = vunpack.c.l.b16 %v396
    %v1536 = vunpack.c.h.b16 %v396
    %v1537 = vunpack.c.l.b16 %v397
    %v1538 = vunpack.c.h.b16 %v397
    %v1539 = vunpack.c.l.b16 %v398
    %v1540 = vunpack.c.h.b16 %v398
    %v1541 = vunpack.c.l.b16 %v399
    %v1542 = vunpack.c.h.b16 %v399
    %v1543 = vunpack.c.l.b16 %v400
    %v1544 = vunpack.c.h.b16 %v400
    %v1545 = vunpack.c.l.b16 %v401
    %v1546 = vunpack.c.h.b16 %v401
    %v1547 = vunpack.c.l.b16 %v402
    %v1548 = vunpack.c.h.b16 %v402
    %v1549 = vunpack.c.l.b16 %v403
    %v1550 = vunpack.c.h.b16 %v403
    %v1551 = vpack.c.b16 %v1491, %v1487
    %v1552 = vpack.c.b16 %v1492, %v1488
    %v1553 = vpack.c.b16 %v1493, %v1489
    %v1554 = vpack.c.b16 %v1494, %v1490
    %v1555 = vpack.c.b16 %v1499, %v1495
    %v1556 = vpack.c.b16 %v1500, %v1496
    %v1557 = vpack.c.b16 %v1501, %v1497
    %v1558 = vpack.c.b16 %v1502, %v1498
    %v1559 = vpack.c.b16 %v1507, %v1503
    %v1560 = vpack.c.b16 %v1508, %v1504
    %v1561 = vpack.c.b16 %v1509, %v1505
    %v1562 = vpack.c.b16 %v1510, %v1506
    %v1563 = vpack.c.b16 %v1515, %v1511
    %v1564 = vpack.c.b16 %v1516, %v1512
    %v1565 = vpack.c.b16 %v1517, %v1513
    %v1566 = vpack.c.b16 %v1518, %v1514
    %v1567 = vpack.c.b16 %v1523, %v1519
    %v1568 = vpack.c.b16 %v1524, %v1520
    %v1569 = vpack.c.b16 %v1525, %v1521
    %v1570 = vpack.c.b16 %v1526, %v1522
    %v1571 = vpack.c.b16 %v1531, %v1527
    %v1572 = vpack.c.b16 %v1532, %v1528
    %v1573 = vpack.c.b16 %v1533, %v1529
    %v1574 = vpack.c.b16 %v1534, %v1530
    %v1575 = vpack.c.b16 %v1539, %v1535
    %v1576 = vpack.c.b16 %v1540, %v1536
    %v1577 = vpack.c.b16 %v1541, %v1537
    %v1578 = vpack.c.b16 %v1542, %v1538
    %v1579 = vpack.c.b16 %v1547, %v1543
    %v1580 = vpack.c.b16 %v1548, %v1544
    %v1581 = vpack.c.b16 %v1549, %v1545
    %v1582 = vpack.c.b16 %v1550, %v1546
    %1615 = vmatprep.subr.bf16.mxu0 %v1552
    %1616 = vmatpush1.bf16.msra.mxu0 %v1551
    %1617 = vmatprep.subr.bf16.mxu0 %v1556
    %1618 = vmatpush1.bf16.msra.mxu0 %v1555
    %1619 = vmatprep.subr.bf16.mxu0 %v1560
    %1620 = vmatpush1.bf16.msra.mxu0 %v1559
    %1621 = vmatprep.subr.bf16.mxu0 %v1564
    %1622 = vmatpush1.bf16.msra.mxu0 %v1563
    %1623 = vmatprep.subr.bf16.mxu0 %v1568
    %1624 = vmatpush1.bf16.msra.mxu0 %v1567
    %1625 = vmatprep.subr.bf16.mxu0 %v1572
    %1626 = vmatpush1.bf16.msra.mxu0 %v1571
    %1627 = vmatprep.subr.bf16.mxu0 %v1576
    %1628 = vmatpush1.bf16.msra.mxu0 %v1575
    %1629 = vmatprep.subr.bf16.mxu0 %v1580
    %1630 = vmatpush1.bf16.msra.mxu0 %v1579
    %1631 = vmatprep.subr.bf16.mxu0 0
    %1632 = vmatpush1.bf16.msra.mxu0 0
    %1633 = vmatprep.subr.bf16.mxu0 0
    %1634 = vmatpush1.bf16.msra.mxu0 0
    %1635 = vmatprep.subr.bf16.mxu0 0
    %1636 = vmatpush1.bf16.msra.mxu0 0
    %1637 = vmatprep.subr.bf16.mxu0 0
    %1638 = vmatpush1.bf16.msra.mxu0 0
    %1639 = vmatprep.subr.bf16.mxu0 0
    %1640 = vmatpush1.bf16.msra.mxu0 0
    %1641 = vmatprep.subr.bf16.mxu0 0
    %1642 = vmatpush1.bf16.msra.mxu0 0
    %1643 = vmatprep.subr.bf16.mxu0 0
    %1644 = vmatpush1.bf16.msra.mxu0 0
    %1645 = vmatprep.subr.bf16.mxu0 0
    %1646 = vmatpush1.bf16.msra.mxu0 0
    %1647 = vmatprep.mubr.bf16.mxu0 0
    %1648 = vmatmul.mubr.bf16.gmra.mrb[0].mxu0 %v1432
    %v1649 = vpop.f32.mrb[0].mxu0
    %v1650 = vadd.f32 %v1438, %v1649
    %v1651 = vpop.f32.mrb[0].mxu0
    %v1652 = vadd.f32 %v1442, %v1651
    %v1653 = vpop.f32.mrb[0].mxu0
    %v1654 = vadd.f32 %v1438, %v1653
    %v1655 = vpop.f32.mrb[0].mxu0
    %v1656 = vadd.f32 %v1442, %v1655
    %1657 = vdwg.mxu0
    %1658 = vmatprep.subr.bf16.mxu0 %v1554
    %1659 = vmatpush1.bf16.msra.mxu0 %v1553
    %1660 = vmatprep.subr.bf16.mxu0 %v1558
    %1661 = vmatpush1.bf16.msra.mxu0 %v1557
    %1662 = vmatprep.subr.bf16.mxu0 %v1562
    %1663 = vmatpush1.bf16.msra.mxu0 %v1561
    %1664 = vmatprep.subr.bf16.mxu0 %v1566
    %1665 = vmatpush1.bf16.msra.mxu0 %v1565
    %1666 = vmatprep.subr.bf16.mxu0 %v1570
    %1667 = vmatpush1.bf16.msra.mxu0 %v1569
    %1668 = vmatprep.subr.bf16.mxu0 %v1574
    %1669 = vmatpush1.bf16.msra.mxu0 %v1573
    %1670 = vmatprep.subr.bf16.mxu0 %v1578
    %1671 = vmatpush1.bf16.msra.mxu0 %v1577
    %1672 = vmatprep.subr.bf16.mxu0 %v1582
    %1673 = vmatpush1.bf16.msra.mxu0 %v1581
    %1674 = vmatprep.subr.bf16.mxu0 0
    %1675 = vmatpush1.bf16.msra.mxu0 0
    %1676 = vmatprep.subr.bf16.mxu0 0
    %1677 = vmatpush1.bf16.msra.mxu0 0
    %1678 = vmatprep.subr.bf16.mxu0 0
    %1679 = vmatpush1.bf16.msra.mxu0 0
    %1680 = vmatprep.subr.bf16.mxu0 0
    %1681 = vmatpush1.bf16.msra.mxu0 0
    %1682 = vmatprep.subr.bf16.mxu0 0
    %1683 = vmatpush1.bf16.msra.mxu0 0
    %1684 = vmatprep.subr.bf16.mxu0 0
    %1685 = vmatpush1.bf16.msra.mxu0 0
    %1686 = vmatprep.subr.bf16.mxu0 0
    %1687 = vmatpush1.bf16.msra.mxu0 0
    %1688 = vmatprep.subr.bf16.mxu0 0
    %1689 = vmatpush1.bf16.msra.mxu0 0
    %1690 = vmatprep.mubr.bf16.mxu0 0
    %1691 = vmatmul.mubr.bf16.gmra.mrb[0].mxu0 %v1432
    %v1692 = vpop.f32.mrb[0].mxu0
    %v1693 = vadd.f32 %v1446, %v1692
    %v1694 = vpop.f32.mrb[0].mxu0
    %v1695 = vadd.f32 %v1450, %v1694
    %v1696 = vpop.f32.mrb[0].mxu0
    %v1697 = vadd.f32 %v1446, %v1696
    %v1698 = vpop.f32.mrb[0].mxu0
    %v1699 = vadd.f32 %v1450, %v1698
    %1700 = vdwg.mxu0
    %v1701 = vmul.f32 %v1650, 0.5
    %v1702 = vmul.f32 %v1652, 0.5
    %v1703 = vmul.f32 %v1693, 0.5
    %v1704 = vmul.f32 %v1695, 0.5
    %v1705 = vmul.f32 %v1654, 0.5
    %v1706 = vmul.f32 %v1656, 0.5
    %v1707 = vmul.f32 %v1697, 0.5
    %v1708 = vmul.f32 %v1699, 0.5
    %v1709 = vmul.f32 %v1650, 0.044715
    %v1710 = vmul.f32 %v1652, 0.044715
    %v1711 = vmul.f32 %v1693, 0.044715
    %v1712 = vmul.f32 %v1695, 0.044715
    %v1713 = vmul.f32 %v1654, 0.044715
    %v1714 = vmul.f32 %v1656, 0.044715
    %v1715 = vmul.f32 %v1697, 0.044715
    %v1716 = vmul.f32 %v1699, 0.044715
    %v1717 = vmul.f32 %v1709, %v1650
    %v1718 = vmul.f32 %v1710, %v1652
    %v1719 = vmul.f32 %v1711, %v1693
    %v1720 = vmul.f32 %v1712, %v1695
    %v1721 = vmul.f32 %v1713, %v1654
    %v1722 = vmul.f32 %v1714, %v1656
    %v1723 = vmul.f32 %v1715, %v1697
    %v1724 = vmul.f32 %v1716, %v1699
    %v1725 = vmul.f32 %v1717, %v1650
    %v1726 = vmul.f32 %v1718, %v1652
    %v1727 = vmul.f32 %v1719, %v1693
    %v1728 = vmul.f32 %v1720, %v1695
    %v1729 = vmul.f32 %v1721, %v1654
    %v1730 = vmul.f32 %v1722, %v1656
    %v1731 = vmul.f32 %v1723, %v1697
    %v1732 = vmul.f32 %v1724, %v1699
    %v1733 = vadd.f32 %v1650, %v1725
    %v1734 = vadd.f32 %v1652, %v1726
    %v1735 = vadd.f32 %v1693, %v1727
    %v1736 = vadd.f32 %v1695, %v1728
    %v1737 = vadd.f32 %v1654, %v1729
    %v1738 = vadd.f32 %v1656, %v1730
    %v1739 = vadd.f32 %v1697, %v1731
    %v1740 = vadd.f32 %v1699, %v1732
    %v1741 = vmul.f32 %v1733, 0.7978846
    %v1742 = vmul.f32 %v1734, 0.7978846
    %v1743 = vmul.f32 %v1735, 0.7978846
    %v1744 = vmul.f32 %v1736, 0.7978846
    %v1745 = vmul.f32 %v1737, 0.7978846
    %v1746 = vmul.f32 %v1738, 0.7978846
    %v1747 = vmul.f32 %v1739, 0.7978846
    %v1748 = vmul.f32 %v1740, 0.7978846
    %v1749 = vtanh.pop %v1741
    %v1750 = vtanh.pop %v1742
    %v1751 = vtanh.pop %v1743
    %v1752 = vtanh.pop %v1744
    %v1753 = vtanh.pop %v1745
    %v1754 = vtanh.pop %v1746
    %v1755 = vtanh.pop %v1747
    %v1756 = vtanh.pop %v1748
    %v1757 = vadd.f32 %v1749, 1.0
    %v1758 = vadd.f32 %v1750, 1.0
    %v1759 = vadd.f32 %v1751, 1.0
    %v1760 = vadd.f32 %v1752, 1.0
    %v1761 = vadd.f32 %v1753, 1.0
    %v1762 = vadd.f32 %v1754, 1.0
    %v1763 = vadd.f32 %v1755, 1.0
    %v1764 = vadd.f32 %v1756, 1.0
    %v1765 = vmul.f32 %v1701, %v1757
    %v1766 = vmul.f32 %v1702, %v1758
    %v1767 = vmul.f32 %v1703, %v1759
    %v1768 = vmul.f32 %v1704, %v1760
    %v1769 = vmul.f32 %v1705, %v1761
    %v1770 = vmul.f32 %v1706, %v1762
    %v1771 = vmul.f32 %v1707, %v1763
    %v1772 = vmul.f32 %v1708, %v1764
    %v1773 = vpack.c.bf16 %v1769, %v1765
    %v1774 = vpack.c.bf16 %v1770, %v1766
    %v1775 = vpack.c.bf16 %v1771, %v1767
    %v1776 = vpack.c.bf16 %v1772, %v1768
    %v1777 = vld [vmem:[#allocation20] sm:$0x1]
    %v1779 = vlaneseq
    %v1780 = vshrl.u32 %v1779, 7
    %v1781 = vsub.s32 0, %v1780
    %v1782 = vrot.slane %v1777, %v1781
    %v1848 = vunpack.c.l.b16 %v404
    %v1849 = vunpack.c.l.b16 %v405
    %v1850 = vunpack.c.l.b16 %v406
    %v1851 = vunpack.c.l.b16 %v407
    %v1852 = vunpack.c.l.b16 %v408
    %v1853 = vunpack.c.l.b16 %v409
    %v1854 = vunpack.c.l.b16 %v410
    %v1855 = vunpack.c.l.b16 %v411
    %v1856 = vunpack.c.l.b16 %v412
    %v1857 = vunpack.c.l.b16 %v413
    %v1858 = vunpack.c.l.b16 %v414
    %v1859 = vunpack.c.l.b16 %v415
    %v1860 = vunpack.c.l.b16 %v416
    %v1861 = vunpack.c.l.b16 %v417
    %v1862 = vunpack.c.l.b16 %v418
    %v1863 = vunpack.c.l.b16 %v419
    %v1864 = vunpack.c.l.b16 %v420
    %v1865 = vunpack.c.l.b16 %v421
    %v1866 = vunpack.c.l.b16 %v422
    %v1867 = vunpack.c.l.b16 %v423
    %v1868 = vunpack.c.l.b16 %v424
    %v1869 = vunpack.c.l.b16 %v425
    %v1870 = vunpack.c.l.b16 %v426
    %v1871 = vunpack.c.l.b16 %v427
    %v1872 = vunpack.c.l.b16 %v428
    %v1873 = vunpack.c.l.b16 %v429
    %v1874 = vunpack.c.l.b16 %v430
    %v1875 = vunpack.c.l.b16 %v431
    %v1876 = vunpack.c.l.b16 %v432
    %v1877 = vunpack.c.l.b16 %v433
    %v1878 = vunpack.c.l.b16 %v434
    %v1879 = vunpack.c.l.b16 %v435
    %v1880 = vunpack.c.l.b16 %v436
    %v1881 = vunpack.c.l.b16 %v437
    %v1882 = vunpack.c.l.b16 %v438
    %v1883 = vunpack.c.l.b16 %v439
    %v1884 = vunpack.c.l.b16 %v440
    %v1885 = vunpack.c.l.b16 %v441
    %v1886 = vunpack.c.l.b16 %v442
    %v1887 = vunpack.c.l.b16 %v443
    %v1888 = vunpack.c.l.b16 %v444
    %v1889 = vunpack.c.l.b16 %v445
    %v1890 = vunpack.c.l.b16 %v446
    %v1891 = vunpack.c.l.b16 %v447
    %v1892 = vunpack.c.l.b16 %v448
    %v1893 = vunpack.c.l.b16 %v449
    %v1894 = vunpack.c.l.b16 %v450
    %v1895 = vunpack.c.l.b16 %v451
    %v1896 = vunpack.c.l.b16 %v452
    %v1897 = vunpack.c.l.b16 %v453
    %v1898 = vunpack.c.l.b16 %v454
    %v1899 = vunpack.c.l.b16 %v455
    %v1900 = vunpack.c.l.b16 %v456
    %v1901 = vunpack.c.l.b16 %v457
    %v1902 = vunpack.c.l.b16 %v458
    %v1903 = vunpack.c.l.b16 %v459
    %v1904 = vunpack.c.l.b16 %v460
    %v1905 = vunpack.c.l.b16 %v461
    %v1906 = vunpack.c.l.b16 %v462
    %v1907 = vunpack.c.l.b16 %v463
    %v1908 = vunpack.c.l.b16 %v464
    %v1909 = vunpack.c.l.b16 %v465
    %v1910 = vunpack.c.l.b16 %v466
    %v1911 = vunpack.c.l.b16 %v467
    %v1912 = vpack.c.b16 %v1849, %v1848
    %v1913 = vpack.c.b16 %v1851, %v1850
    %v1914 = vpack.c.b16 %v1853, %v1852
    %v1915 = vpack.c.b16 %v1855, %v1854
    %v1916 = vpack.c.b16 %v1857, %v1856
    %v1917 = vpack.c.b16 %v1859, %v1858
    %v1918 = vpack.c.b16 %v1861, %v1860
    %v1919 = vpack.c.b16 %v1863, %v1862
    %v1920 = vpack.c.b16 %v1865, %v1864
    %v1921 = vpack.c.b16 %v1867, %v1866
    %v1922 = vpack.c.b16 %v1869, %v1868
    %v1923 = vpack.c.b16 %v1871, %v1870
    %v1924 = vpack.c.b16 %v1873, %v1872
    %v1925 = vpack.c.b16 %v1875, %v1874
    %v1926 = vpack.c.b16 %v1877, %v1876
    %v1927 = vpack.c.b16 %v1879, %v1878
    %v1928 = vpack.c.b16 %v1881, %v1880
    %v1929 = vpack.c.b16 %v1883, %v1882
    %v1930 = vpack.c.b16 %v1885, %v1884
    %v1931 = vpack.c.b16 %v1887, %v1886
    %v1932 = vpack.c.b16 %v1889, %v1888
    %v1933 = vpack.c.b16 %v1891, %v1890
    %v1934 = vpack.c.b16 %v1893, %v1892
    %v1935 = vpack.c.b16 %v1895, %v1894
    %v1936 = vpack.c.b16 %v1897, %v1896
    %v1937 = vpack.c.b16 %v1899, %v1898
    %v1938 = vpack.c.b16 %v1901, %v1900
    %v1939 = vpack.c.b16 %v1903, %v1902
    %v1940 = vpack.c.b16 %v1905, %v1904
    %v1941 = vpack.c.b16 %v1907, %v1906
    %v1942 = vpack.c.b16 %v1909, %v1908
    %v1943 = vpack.c.b16 %v1911, %v1910
    %1976 = vmatprep.subr.bf16.mxu0 0
    %1977 = vmatpush1.bf16.msra.mxu0 %v1912
    %1978 = vmatprep.subr.bf16.mxu0 0
    %1979 = vmatpush1.bf16.msra.mxu0 %v1913
    %1980 = vmatprep.subr.bf16.mxu0 0
    %1981 = vmatpush1.bf16.msra.mxu0 %v1914
    %1982 = vmatprep.subr.bf16.mxu0 0
    %1983 = vmatpush1.bf16.msra.mxu0 %v1915
    %1984 = vmatprep.subr.bf16.mxu0 0
    %1985 = vmatpush1.bf16.msra.mxu0 %v1916
    %1986 = vmatprep.subr.bf16.mxu0 0
    %1987 = vmatpush1.bf16.msra.mxu0 %v1917
    %1988 = vmatprep.subr.bf16.mxu0 0
    %1989 = vmatpush1.bf16.msra.mxu0 %v1918
    %1990 = vmatprep.subr.bf16.mxu0 0
    %1991 = vmatpush1.bf16.msra.mxu0 %v1919
    %1992 = vmatprep.subr.bf16.mxu0 0
    %1993 = vmatpush1.bf16.msra.mxu0 %v1920
    %1994 = vmatprep.subr.bf16.mxu0 0
    %1995 = vmatpush1.bf16.msra.mxu0 %v1921
    %1996 = vmatprep.subr.bf16.mxu0 0
    %1997 = vmatpush1.bf16.msra.mxu0 %v1922
    %1998 = vmatprep.subr.bf16.mxu0 0
    %1999 = vmatpush1.bf16.msra.mxu0 %v1923
    %2000 = vmatprep.subr.bf16.mxu0 0
    %2001 = vmatpush1.bf16.msra.mxu0 %v1924
    %2002 = vmatprep.subr.bf16.mxu0 0
    %2003 = vmatpush1.bf16.msra.mxu0 %v1925
    %2004 = vmatprep.subr.bf16.mxu0 0
    %2005 = vmatpush1.bf16.msra.mxu0 %v1926
    %2006 = vmatprep.subr.bf16.mxu0 0
    %2007 = vmatpush1.bf16.msra.mxu0 %v1927
    %2008 = vmatprep.mubr.bf16.mxu0 %v1774
    %2009 = vmatmul.mubr.bf16.gmra.mrb[0].mxu0 %v1773
    %v2010 = vpop.f32.mrb[0].mxu0
    %v2011 = vadd.f32 %v1782, %v2010
    %v2012 = vpop.f32.mrb[0].mxu0
    %v2013 = vpop.f32.mrb[0].mxu0
    %v2014 = vadd.f32 %v1782, %v2013
    %v2015 = vpop.f32.mrb[0].mxu0
    %2016 = vdwg.mxu0
    %2017 = vmatprep.subr.bf16.mxu0 0
    %2018 = vmatpush1.bf16.msra.mxu0 %v1928
    %2019 = vmatprep.subr.bf16.mxu0 0
    %2020 = vmatpush1.bf16.msra.mxu0 %v1929
    %2021 = vmatprep.subr.bf16.mxu0 0
    %2022 = vmatpush1.bf16.msra.mxu0 %v1930
    %2023 = vmatprep.subr.bf16.mxu0 0
    %2024 = vmatpush1.bf16.msra.mxu0 %v1931
    %2025 = vmatprep.subr.bf16.mxu0 0
    %2026 = vmatpush1.bf16.msra.mxu0 %v1932
    %2027 = vmatprep.subr.bf16.mxu0 0
    %2028 = vmatpush1.bf16.msra.mxu0 %v1933
    %2029 = vmatprep.subr.bf16.mxu0 0
    %2030 = vmatpush1.bf16.msra.mxu0 %v1934
    %2031 = vmatprep.subr.bf16.mxu0 0
    %2032 = vmatpush1.bf16.msra.mxu0 %v1935
    %2033 = vmatprep.subr.bf16.mxu0 0
    %2034 = vmatpush1.bf16.msra.mxu0 %v1936
    %2035 = vmatprep.subr.bf16.mxu0 0
    %2036 = vmatpush1.bf16.msra.mxu0 %v1937
    %2037 = vmatprep.subr.bf16.mxu0 0
    %2038 = vmatpush1.bf16.msra.mxu0 %v1938
    %2039 = vmatprep.subr.bf16.mxu0 0
    %2040 = vmatpush1.bf16.msra.mxu0 %v1939
    %2041 = vmatprep.subr.bf16.mxu0 0
    %2042 = vmatpush1.bf16.msra.mxu0 %v1940
    %2043 = vmatprep.subr.bf16.mxu0 0
    %2044 = vmatpush1.bf16.msra.mxu0 %v1941
    %2045 = vmatprep.subr.bf16.mxu0 0
    %2046 = vmatpush1.bf16.msra.mxu0 %v1942
    %2047 = vmatprep.subr.bf16.mxu0 0
    %2048 = vmatpush1.bf16.msra.mxu0 %v1943
    %2049 = vmatprep.mubr.bf16.mxu0 %v1776
    %2050 = vmatmul.mubr.bf16.gmra.mrb[0].mxu0 %v1775
    %v2051 = vpop.f32.mrb[0].mxu0
    %v2052 = vadd.f32 %v2011, %v2051
    %v2053 = vpop.f32.mrb[0].mxu0
    %v2054 = vpop.f32.mrb[0].mxu0
    %v2055 = vadd.f32 %v2014, %v2054
    %v2056 = vpop.f32.mrb[0].mxu0
    %2057 = vdwg.mxu0
    %v2058 = vadd.f32 %v2052, %v1430
    %v2059 = vadd.f32 %v2055, %v1431
    %v2060 = vld [vmem:[#allocation22] sm:$0x1]
    %v2061 = vld [vmem:[#allocation23] sm:$0x1]
    %2062 = vadd.xlane.f32.xlu0 %v2058
    %v2063 = vpop.xlane.xlu0 %2062
    %2064 = vadd.xlane.f32.xlu0 %v2059
    %v2065 = vpop.xlane.xlu0 %2064
    %v2066 = vmul.f32 %v2063, %v286
    %v2067 = vmul.f32 %v2065, %v286
    %v2068 = vsub.f32 %v2058, %v2066
    %v2069 = vsub.f32 %v2059, %v2067
    %v2070 = vmul.f32 %v2068, %v2068
    %v2071 = vmul.f32 %v2069, %v2069
    %2072 = vadd.xlane.f32.xlu0 %v2070
    %v2073 = vpop.xlane.xlu0 %2072
    %2074 = vadd.xlane.f32.xlu0 %v2071
    %v2075 = vpop.xlane.xlu0 %2074
    %v2076 = vmul.f32 %v2073, %v286
    %v2077 = vmul.f32 %v2075, %v286
    %v2078 = vadd.f32 %v2076, 1e-12
    %v2079 = vadd.f32 %v2077, 1e-12
    %v2080 = vrsqrt.pop %v2078
    %v2081 = vrsqrt.pop %v2079
    %v2082 = vmul.f32 %v2068, %v2080
    %v2083 = vmul.f32 %v2069, %v2081
    %v2085 = vlaneseq
    %v2086 = vshrl.u32 %v2085, 7
    %v2087 = vsub.s32 0, %v2086
    %v2088 = vrot.slane %v2060, %v2087
    %v2090 = vmul.f32 %v2082, %v2088
    %v2091 = vmul.f32 %v2083, %v2088
    %v2093 = vlaneseq
    %v2094 = vshrl.u32 %v2093, 7
    %v2095 = vsub.s32 0, %v2094
    %v2096 = vrot.slane %v2061, %v2095
    %v2098 = vadd.f32 %v2090, %v2096
    %v2099 = vadd.f32 %v2091, %v2096
    %s2100 = scalar_lea.vmem [#allocation8], 192
    %v2101 = vld [vmem:[%s2100] sm:$0xff]
    %v2102 = vld [vmem:[%s2100 + $0x8] sm:$0xf]
    %v2103 = vld [vmem:[%s2100 + $0xc] sm:$0xff]
    %v2104 = vld [vmem:[%s2100 + $0x14] sm:$0xf]
    %v2105 = vld [vmem:[%s2100 + $0x18] sm:$0xff]
    %v2106 = vld [vmem:[%s2100 + $0x20] sm:$0xf]
    %v2107 = vld [vmem:[%s2100 + $0x24] sm:$0xff]
    %v2108 = vld [vmem:[%s2100 + $0x2c] sm:$0xf]
    %v2109 = vld [vmem:[%s2100 + $0x30] sm:$0xff]
    %v2110 = vld [vmem:[%s2100 + $0x38] sm:$0xf]
    %v2111 = vld [vmem:[%s2100 + $0x3c] sm:$0xff]
    %v2112 = vld [vmem:[%s2100 + $0x44] sm:$0xf]
    %v2113 = vld [vmem:[%s2100 + $0x48] sm:$0xff]
    %v2114 = vld [vmem:[%s2100 + $0x50] sm:$0xf]
    %v2115 = vld [vmem:[%s2100 + $0x54] sm:$0xff]
    %v2116 = vld [vmem:[%s2100 + $0x5c] sm:$0xf]
    %v2117 = vld [vmem:[%s2100 + $0x60] sm:$0xff]
    %v2118 = vld [vmem:[%s2100 + $0x68] sm:$0xf]
    %v2119 = vld [vmem:[%s2100 + $0x6c] sm:$0xff]
    %v2120 = vld [vmem:[%s2100 + $0x74] sm:$0xf]
    %v2121 = vld [vmem:[%s2100 + $0x78] sm:$0xff]
    %v2122 = vld [vmem:[%s2100 + $0x80] sm:$0xf]
    %v2123 = vld [vmem:[%s2100 + $0x84] sm:$0xff]
    %v2124 = vld [vmem:[%s2100 + $0x8c] sm:$0xf]
    %v2125 = vld [vmem:[%s2100 + $0x90] sm:$0xff]
    %v2126 = vld [vmem:[%s2100 + $0x98] sm:$0xf]
    %v2127 = vld [vmem:[%s2100 + $0x9c] sm:$0xff]
    %v2128 = vld [vmem:[%s2100 + $0xa4] sm:$0xf]
    %v2129 = vld [vmem:[%s2100 + $0xa8] sm:$0xff]
    %v2130 = vld [vmem:[%s2100 + $0xb0] sm:$0xf]
    %v2131 = vld [vmem:[%s2100 + $0xb4] sm:$0xff]
    %v2132 = vld [vmem:[%s2100 + $0xbc] sm:$0xf]
    %s2133 = scalar_lea.vmem [#allocation11], 64
    %v2134 = vld [vmem:[%s2133] sm:$0xf]
    %v2135 = vld [vmem:[%s2133 + $0x4] sm:$0xf]
    %v2136 = vld [vmem:[%s2133 + $0x8] sm:$0xf]
    %v2137 = vld [vmem:[%s2133 + $0xc] sm:$0xf]
    %v2138 = vld [vmem:[%s2133 + $0x10] sm:$0xf]
    %v2139 = vld [vmem:[%s2133 + $0x14] sm:$0xf]
    %v2140 = vld [vmem:[%s2133 + $0x18] sm:$0xf]
    %v2141 = vld [vmem:[%s2133 + $0x1c] sm:$0xf]
    %v2142 = vld [vmem:[%s2133 + $0x20] sm:$0xf]
    %v2143 = vld [vmem:[%s2133 + $0x24] sm:$0xf]
    %v2144 = vld [vmem:[%s2133 + $0x28] sm:$0xf]
    %v2145 = vld [vmem:[%s2133 + $0x2c] sm:$0xf]
    %v2146 = vld [vmem:[%s2133 + $0x30] sm:$0xf]
    %v2147 = vld [vmem:[%s2133 + $0x34] sm:$0xf]
    %v2148 = vld [vmem:[%s2133 + $0x38] sm:$0xf]
    %v2149 = vld [vmem:[%s2133 + $0x3c] sm:$0xf]
    %s2150 = scalar_lea.vmem [#allocation16], 256
    %v2151 = vld [vmem:[%s2150] sm:$0xff]
    %v2152 = vld [vmem:[%s2150 + $0x8] sm:$0xff]
    %v2153 = vld [vmem:[%s2150 + $0x10] sm:$0xff]
    %v2154 = vld [vmem:[%s2150 + $0x18] sm:$0xff]
    %v2155 = vld [vmem:[%s2150 + $0x20] sm:$0xff]
    %v2156 = vld [vmem:[%s2150 + $0x28] sm:$0xff]
    %v2157 = vld [vmem:[%s2150 + $0x30] sm:$0xff]
    %v2158 = vld [vmem:[%s2150 + $0x38] sm:$0xff]
    %v2159 = vld [vmem:[%s2150 + $0x40] sm:$0xff]
    %v2160 = vld [vmem:[%s2150 + $0x48] sm:$0xff]
    %v2161 = vld [vmem:[%s2150 + $0x50] sm:$0xff]
    %v2162 = vld [vmem:[%s2150 + $0x58] sm:$0xff]
    %v2163 = vld [vmem:[%s2150 + $0x60] sm:$0xff]
    %v2164 = vld [vmem:[%s2150 + $0x68] sm:$0xff]
    %v2165 = vld [vmem:[%s2150 + $0x70] sm:$0xff]
    %v2166 = vld [vmem:[%s2150 + $0x78] sm:$0xff]
    %v2167 = vld [vmem:[%s2150 + $0x80] sm:$0xff]
    %v2168 = vld [vmem:[%s2150 + $0x88] sm:$0xff]
    %v2169 = vld [vmem:[%s2150 + $0x90] sm:$0xff]
    %v2170 = vld [vmem:[%s2150 + $0x98] sm:$0xff]
    %v2171 = vld [vmem:[%s2150 + $0xa0] sm:$0xff]
    %v2172 = vld [vmem:[%s2150 + $0xa8] sm:$0xff]
    %v2173 = vld [vmem:[%s2150 + $0xb0] sm:$0xff]
    %v2174 = vld [vmem:[%s2150 + $0xb8] sm:$0xff]
    %v2175 = vld [vmem:[%s2150 + $0xc0] sm:$0xff]
    %v2176 = vld [vmem:[%s2150 + $0xc8] sm:$0xff]
    %v2177 = vld [vmem:[%s2150 + $0xd0] sm:$0xff]
    %v2178 = vld [vmem:[%s2150 + $0xd8] sm:$0xff]
    %v2179 = vld [vmem:[%s2150 + $0xe0] sm:$0xff]
    %v2180 = vld [vmem:[%s2150 + $0xe8] sm:$0xff]
    %v2181 = vld [vmem:[%s2150 + $0xf0] sm:$0xff]
    %v2182 = vld [vmem:[%s2150 + $0xf8] sm:$0xff]
    %s2183 = scalar_lea.vmem [#allocation19], 256
    %v2184 = vld [vmem:[%s2183] sm:$0xf]
    %v2185 = vld [vmem:[%s2183 + $0x4] sm:$0xf]
    %v2186 = vld [vmem:[%s2183 + $0x8] sm:$0xf]
    %v2187 = vld [vmem:[%s2183 + $0xc] sm:$0xf]
    %v2188 = vld [vmem:[%s2183 + $0x10] sm:$0xf]
    %v2189 = vld [vmem:[%s2183 + $0x14] sm:$0xf]
    %v2190 = vld [vmem:[%s2183 + $0x18] sm:$0xf]
    %v2191 = vld [vmem:[%s2183 + $0x1c] sm:$0xf]
    %v2192 = vld [vmem:[%s2183 + $0x20] sm:$0xf]
    %v2193 = vld [vmem:[%s2183 + $0x24] sm:$0xf]
    %v2194 = vld [vmem:[%s2183 + $0x28] sm:$0xf]
    %v2195 = vld [vmem:[%s2183 + $0x2c] sm:$0xf]
    %v2196 = vld [vmem:[%s2183 + $0x30] sm:$0xf]
    %v2197 = vld [vmem:[%s2183 + $0x34] sm:$0xf]
    %v2198 = vld [vmem:[%s2183 + $0x38] sm:$0xf]
    %v2199 = vld [vmem:[%s2183 + $0x3c] sm:$0xf]
    %v2200 = vld [vmem:[%s2183 + $0x40] sm:$0xf]
    %v2201 = vld [vmem:[%s2183 + $0x44] sm:$0xf]
    %v2202 = vld [vmem:[%s2183 + $0x48] sm:$0xf]
    %v2203 = vld [vmem:[%s2183 + $0x4c] sm:$0xf]
    %v2204 = vld [vmem:[%s2183 + $0x50] sm:$0xf]
    %v2205 = vld [vmem:[%s2183 + $0x54] sm:$0xf]
    %v2206 = vld [vmem:[%s2183 + $0x58] sm:$0xf]
    %v2207 = vld [vmem:[%s2183 + $0x5c] sm:$0xf]
    %v2208 = vld [vmem:[%s2183 + $0x60] sm:$0xf]
    %v2209 = vld [vmem:[%s2183 + $0x64] sm:$0xf]
    %v2210 = vld [vmem:[%s2183 + $0x68] sm:$0xf]
    %v2211 = vld [vmem:[%s2183 + $0x6c] sm:$0xf]
    %v2212 = vld [vmem:[%s2183 + $0x70] sm:$0xf]
    %v2213 = vld [vmem:[%s2183 + $0x74] sm:$0xf]
    %v2214 = vld [vmem:[%s2183 + $0x78] sm:$0xf]
    %v2215 = vld [vmem:[%s2183 + $0x7c] sm:$0xf]
    %v2216 = vld [vmem:[%s2183 + $0x80] sm:$0xf]
    %v2217 = vld [vmem:[%s2183 + $0x84] sm:$0xf]
    %v2218 = vld [vmem:[%s2183 + $0x88] sm:$0xf]
    %v2219 = vld [vmem:[%s2183 + $0x8c] sm:$0xf]
    %v2220 = vld [vmem:[%s2183 + $0x90] sm:$0xf]
    %v2221 = vld [vmem:[%s2183 + $0x94] sm:$0xf]
    %v2222 = vld [vmem:[%s2183 + $0x98] sm:$0xf]
    %v2223 = vld [vmem:[%s2183 + $0x9c] sm:$0xf]
    %v2224 = vld [vmem:[%s2183 + $0xa0] sm:$0xf]
    %v2225 = vld [vmem:[%s2183 + $0xa4] sm:$0xf]
    %v2226 = vld [vmem:[%s2183 + $0xa8] sm:$0xf]
    %v2227 = vld [vmem:[%s2183 + $0xac] sm:$0xf]
    %v2228 = vld [vmem:[%s2183 + $0xb0] sm:$0xf]
    %v2229 = vld [vmem:[%s2183 + $0xb4] sm:$0xf]
    %v2230 = vld [vmem:[%s2183 + $0xb8] sm:$0xf]
    %v2231 = vld [vmem:[%s2183 + $0xbc] sm:$0xf]
    %v2232 = vld [vmem:[%s2183 + $0xc0] sm:$0xf]
    %v2233 = vld [vmem:[%s2183 + $0xc4] sm:$0xf]
    %v2234 = vld [vmem:[%s2183 + $0xc8] sm:$0xf]
    %v2235 = vld [vmem:[%s2183 + $0xcc] sm:$0xf]
    %v2236 = vld [vmem:[%s2183 + $0xd0] sm:$0xf]
    %v2237 = vld [vmem:[%s2183 + $0xd4] sm:$0xf]
    %v2238 = vld [vmem:[%s2183 + $0xd8] sm:$0xf]
    %v2239 = vld [vmem:[%s2183 + $0xdc] sm:$0xf]
    %v2240 = vld [vmem:[%s2183 + $0xe0] sm:$0xf]
    %v2241 = vld [vmem:[%s2183 + $0xe4] sm:$0xf]
    %v2242 = vld [vmem:[%s2183 + $0xe8] sm:$0xf]
    %v2243 = vld [vmem:[%s2183 + $0xec] sm:$0xf]
    %v2244 = vld [vmem:[%s2183 + $0xf0] sm:$0xf]
    %v2245 = vld [vmem:[%s2183 + $0xf4] sm:$0xf]
    %v2246 = vld [vmem:[%s2183 + $0xf8] sm:$0xf]
    %v2247 = vld [vmem:[%s2183 + $0xfc] sm:$0xf]
    %v2248 = vpack.c.bf16 %v2099, %v2098
    %s2249 = scalar_lea.vmem [#allocation10], 3
    %v2250 = vld [vmem:[%s2249] sm:$0x7]
    %v2252 = vlaneseq
    %v2253 = vshrl.u32 %v2252, 7
    %v2254 = vsub.s32 0, %v2253
    %v2255 = vrot.slane %v2250, %v2254
    %v2256 = vlaneseq
    %v2257 = vshrl.u32 %v2256, 7
    %v2258 = vsub.s32 1, %v2257
    %v2259 = vrot.slane %v2250, %v2258
    %v2260 = vlaneseq
    %v2261 = vshrl.u32 %v2260, 7
    %v2262 = vsub.s32 2, %v2261
    %v2263 = vrot.slane %v2250, %v2262
    %v2299 = vunpack.c.l.b16 %v2101
    %v2300 = vunpack.c.h.b16 %v2101
    %v2301 = vunpack.c.l.b16 %v2102
    %v2302 = vunpack.c.l.b16 %v2103
    %v2303 = vunpack.c.h.b16 %v2103
    %v2304 = vunpack.c.l.b16 %v2104
    %v2305 = vunpack.c.l.b16 %v2105
    %v2306 = vunpack.c.h.b16 %v2105
    %v2307 = vunpack.c.l.b16 %v2106
    %v2308 = vunpack.c.l.b16 %v2107
    %v2309 = vunpack.c.h.b16 %v2107
    %v2310 = vunpack.c.l.b16 %v2108
    %v2311 = vunpack.c.l.b16 %v2109
    %v2312 = vunpack.c.h.b16 %v2109
    %v2313 = vunpack.c.l.b16 %v2110
    %v2314 = vunpack.c.l.b16 %v2111
    %v2315 = vunpack.c.h.b16 %v2111
    %v2316 = vunpack.c.l.b16 %v2112
    %v2317 = vunpack.c.l.b16 %v2113
    %v2318 = vunpack.c.h.b16 %v2113
    %v2319 = vunpack.c.l.b16 %v2114
    %v2320 = vunpack.c.l.b16 %v2115
    %v2321 = vunpack.c.h.b16 %v2115
    %v2322 = vunpack.c.l.b16 %v2116
    %v2323 = vunpack.c.l.b16 %v2117
    %v2324 = vunpack.c.h.b16 %v2117
    %v2325 = vunpack.c.l.b16 %v2118
    %v2326 = vunpack.c.l.b16 %v2119
    %v2327 = vunpack.c.h.b16 %v2119
    %v2328 = vunpack.c.l.b16 %v2120
    %v2329 = vunpack.c.l.b16 %v2121
    %v2330 = vunpack.c.h.b16 %v2121
    %v2331 = vunpack.c.l.b16 %v2122
    %v2332 = vunpack.c.l.b16 %v2123
    %v2333 = vunpack.c.h.b16 %v2123
    %v2334 = vunpack.c.l.b16 %v2124
    %v2335 = vunpack.c.l.b16 %v2125
    %v2336 = vunpack.c.h.b16 %v2125
    %v2337 = vunpack.c.l.b16 %v2126
    %v2338 = vunpack.c.l.b16 %v2127
    %v2339 = vunpack.c.h.b16 %v2127
    %v2340 = vunpack.c.l.b16 %v2128
    %v2341 = vunpack.c.l.b16 %v2129
    %v2342 = vunpack.c.h.b16 %v2129
    %v2343 = vunpack.c.l.b16 %v2130
    %v2344 = vunpack.c.l.b16 %v2131
    %v2345 = vunpack.c.h.b16 %v2131
    %v2346 = vunpack.c.l.b16 %v2132
    %v2347 = vpack.c.b16 %v2302, %v2299
    %v2348 = vpack.c.b16 %v2303, %v2300
    %v2349 = vpack.c.b16 %v2304, %v2301
    %v2350 = vpack.c.b16 %v2308, %v2305
    %v2351 = vpack.c.b16 %v2309, %v2306
    %v2352 = vpack.c.b16 %v2310, %v2307
    %v2353 = vpack.c.b16 %v2314, %v2311
    %v2354 = vpack.c.b16 %v2315, %v2312
    %v2355 = vpack.c.b16 %v2316, %v2313
    %v2356 = vpack.c.b16 %v2320, %v2317
    %v2357 = vpack.c.b16 %v2321, %v2318
    %v2358 = vpack.c.b16 %v2322, %v2319
    %v2359 = vpack.c.b16 %v2326, %v2323
    %v2360 = vpack.c.b16 %v2327, %v2324
    %v2361 = vpack.c.b16 %v2328, %v2325
    %v2362 = vpack.c.b16 %v2332, %v2329
    %v2363 = vpack.c.b16 %v2333, %v2330
    %v2364 = vpack.c.b16 %v2334, %v2331
    %v2365 = vpack.c.b16 %v2338, %v2335
    %v2366 = vpack.c.b16 %v2339, %v2336
    %v2367 = vpack.c.b16 %v2340, %v2337
    %v2368 = vpack.c.b16 %v2344, %v2341
    %v2369 = vpack.c.b16 %v2345, %v2342
    %v2370 = vpack.c.b16 %v2346, %v2343
    %2395 = vmatprep.subr.bf16.mxu0 %v2348
    %2396 = vmatpush1.bf16.msra.mxu0 %v2347
    %2397 = vmatprep.subr.bf16.mxu0 %v2351
    %2398 = vmatpush1.bf16.msra.mxu0 %v2350
    %2399 = vmatprep.subr.bf16.mxu0 %v2354
    %2400 = vmatpush1.bf16.msra.mxu0 %v2353
    %2401 = vmatprep.subr.bf16.mxu0 %v2357
    %2402 = vmatpush1.bf16.msra.mxu0 %v2356
    %2403 = vmatprep.subr.bf16.mxu0 %v2360
    %2404 = vmatpush1.bf16.msra.mxu0 %v2359
    %2405 = vmatprep.subr.bf16.mxu0 %v2363
    %2406 = vmatpush1.bf16.msra.mxu0 %v2362
    %2407 = vmatprep.subr.bf16.mxu0 %v2366
    %2408 = vmatpush1.bf16.msra.mxu0 %v2365
    %2409 = vmatprep.subr.bf16.mxu0 %v2369
    %2410 = vmatpush1.bf16.msra.mxu0 %v2368
    %2411 = vmatprep.subr.bf16.mxu0 0
    %2412 = vmatpush1.bf16.msra.mxu0 0
    %2413 = vmatprep.subr.bf16.mxu0 0
    %2414 = vmatpush1.bf16.msra.mxu0 0
    %2415 = vmatprep.subr.bf16.mxu0 0
    %2416 = vmatpush1.bf16.msra.mxu0 0
    %2417 = vmatprep.subr.bf16.mxu0 0
    %2418 = vmatpush1.bf16.msra.mxu0 0
    %2419 = vmatprep.subr.bf16.mxu0 0
    %2420 = vmatpush1.bf16.msra.mxu0 0
    %2421 = vmatprep.subr.bf16.mxu0 0
    %2422 = vmatpush1.bf16.msra.mxu0 0
    %2423 = vmatprep.subr.bf16.mxu0 0
    %2424 = vmatpush1.bf16.msra.mxu0 0
    %2425 = vmatprep.subr.bf16.mxu0 0
    %2426 = vmatpush1.bf16.msra.mxu0 0
    %2427 = vmatprep.mubr.bf16.mxu0 0
    %2428 = vmatmul.mubr.bf16.gmra.mrb[0].mxu0 %v2248
    %v2429 = vpop.f32.mrb[0].mxu0
    %v2430 = vadd.f32 %v2255, %v2429
    %v2431 = vpop.f32.mrb[0].mxu0
    %v2432 = vadd.f32 %v2259, %v2431
    %v2433 = vpop.f32.mrb[0].mxu0
    %v2434 = vadd.f32 %v2255, %v2433
    %v2435 = vpop.f32.mrb[0].mxu0
    %v2436 = vadd.f32 %v2259, %v2435
    %2437 = vdwg.mxu0
    %2438 = vmatprep.subr.bf16.mxu0 0
    %2439 = vmatpush1.bf16.msra.mxu0 %v2349
    %2440 = vmatprep.subr.bf16.mxu0 0
    %2441 = vmatpush1.bf16.msra.mxu0 %v2352
    %2442 = vmatprep.subr.bf16.mxu0 0
    %2443 = vmatpush1.bf16.msra.mxu0 %v2355
    %2444 = vmatprep.subr.bf16.mxu0 0
    %2445 = vmatpush1.bf16.msra.mxu0 %v2358
    %2446 = vmatprep.subr.bf16.mxu0 0
    %2447 = vmatpush1.bf16.msra.mxu0 %v2361
    %2448 = vmatprep.subr.bf16.mxu0 0
    %2449 = vmatpush1.bf16.msra.mxu0 %v2364
    %2450 = vmatprep.subr.bf16.mxu0 0
    %2451 = vmatpush1.bf16.msra.mxu0 %v2367
    %2452 = vmatprep.subr.bf16.mxu0 0
    %2453 = vmatpush1.bf16.msra.mxu0 %v2370
    %2454 = vmatprep.subr.bf16.mxu0 0
    %2455 = vmatpush1.bf16.msra.mxu0 0
    %2456 = vmatprep.subr.bf16.mxu0 0
    %2457 = vmatpush1.bf16.msra.mxu0 0
    %2458 = vmatprep.subr.bf16.mxu0 0
    %2459 = vmatpush1.bf16.msra.mxu0 0
    %2460 = vmatprep.subr.bf16.mxu0 0
    %2461 = vmatpush1.bf16.msra.mxu0 0
    %2462 = vmatprep.subr.bf16.mxu0 0
    %2463 = vmatpush1.bf16.msra.mxu0 0
    %2464 = vmatprep.subr.bf16.mxu0 0
    %2465 = vmatpush1.bf16.msra.mxu0 0
    %2466 = vmatprep.subr.bf16.mxu0 0
    %2467 = vmatpush1.bf16.msra.mxu0 0
    %2468 = vmatprep.subr.bf16.mxu0 0
    %2469 = vmatpush1.bf16.msra.mxu0 0
    %2470 = vmatprep.mubr.bf16.mxu0 0
    %2471 = vmatmul.mubr.bf16.gmra.mrb[0].mxu0 %v2248
    %v2472 = vpop.f32.mrb[0].mxu0
    %v2473 = vadd.f32 %v2263, %v2472
    %v2474 = vpop.f32.mrb[0].mxu0
    %v2475 = vpop.f32.mrb[0].mxu0
    %v2476 = vadd.f32 %v2263, %v2475
    %v2477 = vpop.f32.mrb[0].mxu0
    %2478 = vdwg.mxu0
    %v2479 = vpack.c.bf16 %v2430, %v2430
    %v2480 = vpack.c.bf16 %v2432, %v2432
    %v2481 = vpack.c.bf16 %v2473, %v2473
    %v2483 = vsel %vm701, %v2479, 0
    %v2486 = vsel %vm701, %v2480, 0
    %2488 = vmatprep.subr.bf16.mxu0 0
    %2489 = vmatpush1.bf16.xpose.msra.mxu0 %v2486
    %2490 = vmatprep.subr.bf16.mxu0 0
    %2491 = vmatpush1.bf16.xpose.msra.mxu0 0
    %2492 = vmatprep.subr.bf16.mxu0 0
    %2493 = vmatpush1.bf16.xpose.msra.mxu0 0
    %2494 = vmatprep.subr.bf16.mxu0 0
    %2495 = vmatpush1.bf16.xpose.msra.mxu0 0
    %2496 = vmatprep.subr.bf16.mxu0 0
    %2497 = vmatpush1.bf16.xpose.msra.mxu0 0
    %2498 = vmatprep.subr.bf16.mxu0 0
    %2499 = vmatpush1.bf16.xpose.msra.mxu0 0
    %2500 = vmatprep.subr.bf16.mxu0 0
    %2501 = vmatpush1.bf16.xpose.msra.mxu0 0
    %2502 = vmatprep.subr.bf16.mxu0 0
    %2503 = vmatpush1.bf16.xpose.msra.mxu0 0
    %2504 = vmatprep.subr.bf16.mxu0 0
    %2505 = vmatpush1.bf16.xpose.msra.mxu0 0
    %2506 = vmatprep.subr.bf16.mxu0 0
    %2507 = vmatpush1.bf16.xpose.msra.mxu0 0
    %2508 = vmatprep.subr.bf16.mxu0 0
    %2509 = vmatpush1.bf16.xpose.msra.mxu0 0
    %2510 = vmatprep.subr.bf16.mxu0 0
    %2511 = vmatpush1.bf16.xpose.msra.mxu0 0
    %2512 = vmatprep.subr.bf16.mxu0 0
    %2513 = vmatpush1.bf16.xpose.msra.mxu0 0
    %2514 = vmatprep.subr.bf16.mxu0 0
    %2515 = vmatpush1.bf16.xpose.msra.mxu0 0
    %2516 = vmatprep.subr.bf16.mxu0 0
    %2517 = vmatpush1.bf16.xpose.msra.mxu0 0
    %2518 = vmatprep.subr.bf16.mxu0 0
    %2519 = vmatpush1.bf16.xpose.msra.mxu0 0
    %2520 = vmatprep.mubr.bf16.mxu0 0
    %2521 = vmatmul.mubr.bf16.gmra.mrb[0].mxu0 %v2483
    %v2522 = vpop.f32.mrb[0].mxu0
    %v2523 = vadd.f32 0.0, %v2522
    %v2524 = vpop.f32.mrb[0].mxu0
    %v2525 = vpop.f32.mrb[0].mxu0
    %v2526 = vpop.f32.mrb[0].mxu0
    %2527 = vdwg.mxu0
    %v2528 = vmul.f32 %v2523, 0.125
    %v2529 = vadd.f32 %v2528, %v752
    %v2530 = vsel %vm754, %v2529, -inf
    %2531 = vmax.xlane.f32.xlu0 %v2530
    %v2532 = vpop.xlane.xlu0 %2531
    %v2533 = vsub.f32 %v2529, %v2532
    %v2534 = vmul.f32 %v2533, 1.442695
    %v2535 = vpow.pop %v2534
    %v2536 = vsel %vm754, %v2535, 0.0
    %2537 = vadd.xlane.f32.xlu0 %v2536
    %v2538 = vpop.xlane.xlu0 %2537
    %v2539 = vrcp.pop %v2538
    %v2540 = vmul.f32 %v2535, %v2539
    %v2541 = vpack.c.bf16 %v2540, %v2540
    %v2543 = vsel %vm754, %v2541, 0
    %v2546 = vsel %vm770, %v2481, 0
    %2548 = vmatprep.subr.bf16.mxu0 0
    %2549 = vmatpush1.bf16.msra.mxu0 %v2546
    %2550 = vmatprep.subr.bf16.mxu0 0
    %2551 = vmatpush1.bf16.msra.mxu0 0
    %2552 = vmatprep.subr.bf16.mxu0 0
    %2553 = vmatpush1.bf16.msra.mxu0 0
    %2554 = vmatprep.subr.bf16.mxu0 0
    %2555 = vmatpush1.bf16.msra.mxu0 0
    %2556 = vmatprep.subr.bf16.mxu0 0
    %2557 = vmatpush1.bf16.msra.mxu0 0
    %2558 = vmatprep.subr.bf16.mxu0 0
    %2559 = vmatpush1.bf16.msra.mxu0 0
    %2560 = vmatprep.subr.bf16.mxu0 0
    %2561 = vmatpush1.bf16.msra.mxu0 0
    %2562 = vmatprep.subr.bf16.mxu0 0
    %2563 = vmatpush1.bf16.msra.mxu0 0
    %2564 = vmatprep.subr.bf16.mxu0 0
    %2565 = vmatpush1.bf16.msra.mxu0 0
    %2566 = vmatprep.subr.bf16.mxu0 0
    %2567 = vmatpush1.bf16.msra.mxu0 0
    %2568 = vmatprep.subr.bf16.mxu0 0
    %2569 = vmatpush1.bf16.msra.mxu0 0
    %2570 = vmatprep.subr.bf16.mxu0 0
    %2571 = vmatpush1.bf16.msra.mxu0 0
    %2572 = vmatprep.subr.bf16.mxu0 0
    %2573 = vmatpush1.bf16.msra.mxu0 0
    %2574 = vmatprep.subr.bf16.mxu0 0
    %2575 = vmatpush1.bf16.msra.mxu0 0
    %2576 = vmatprep.subr.bf16.mxu0 0
    %2577 = vmatpush1.bf16.msra.mxu0 0
    %2578 = vmatprep.subr.bf16.mxu0 0
    %2579 = vmatpush1.bf16.msra.mxu0 0
    %2580 = vmatprep.mubr.bf16.mxu0 0
    %2581 = vmatmul.mubr.bf16.gmra.mrb[0].mxu0 %v2543
    %v2582 = vpop.f32.mrb[0].mxu0
    %v2583 = vadd.f32 0.0, %v2582
    %v2584 = vpop.f32.mrb[0].mxu0
    %v2585 = vpop.f32.mrb[0].mxu0
    %v2586 = vpop.f32.mrb[0].mxu0
    %2587 = vdwg.mxu0
    %v2588 = vpack.c.bf16 %v2583, %v2583
    %2590 = vrot.lane.b32.xlu0 %v2479, 64
    %v2591 = vpop.permute.xlu0 %2590
    %2593 = vrot.lane.b32.xlu0 %v2480, 64
    %v2594 = vpop.permute.xlu0 %2593
    %v2596 = vsel %vm701, %v2591, 0
    %v2599 = vsel %vm701, %v2594, 0
    %2601 = vmatprep.subr.bf16.mxu0 0
    %2602 = vmatpush1.bf16.xpose.msra.mxu0 %v2599
    %2603 = vmatprep.subr.bf16.mxu0 0
    %2604 = vmatpush1.bf16.xpose.msra.mxu0 0
    %2605 = vmatprep.subr.bf16.mxu0 0
    %2606 = vmatpush1.bf16.xpose.msra.mxu0 0
    %2607 = vmatprep.subr.bf16.mxu0 0
    %2608 = vmatpush1.bf16.xpose.msra.mxu0 0
    %2609 = vmatprep.subr.bf16.mxu0 0
    %2610 = vmatpush1.bf16.xpose.msra.mxu0 0
    %2611 = vmatprep.subr.bf16.mxu0 0
    %2612 = vmatpush1.bf16.xpose.msra.mxu0 0
    %2613 = vmatprep.subr.bf16.mxu0 0
    %2614 = vmatpush1.bf16.xpose.msra.mxu0 0
    %2615 = vmatprep.subr.bf16.mxu0 0
    %2616 = vmatpush1.bf16.xpose.msra.mxu0 0
    %2617 = vmatprep.subr.bf16.mxu0 0
    %2618 = vmatpush1.bf16.xpose.msra.mxu0 0
    %2619 = vmatprep.subr.bf16.mxu0 0
    %2620 = vmatpush1.bf16.xpose.msra.mxu0 0
    %2621 = vmatprep.subr.bf16.mxu0 0
    %2622 = vmatpush1.bf16.xpose.msra.mxu0 0
    %2623 = vmatprep.subr.bf16.mxu0 0
    %2624 = vmatpush1.bf16.xpose.msra.mxu0 0
    %2625 = vmatprep.subr.bf16.mxu0 0
    %2626 = vmatpush1.bf16.xpose.msra.mxu0 0
    %2627 = vmatprep.subr.bf16.mxu0 0
    %2628 = vmatpush1.bf16.xpose.msra.mxu0 0
    %2629 = vmatprep.subr.bf16.mxu0 0
    %2630 = vmatpush1.bf16.xpose.msra.mxu0 0
    %2631 = vmatprep.subr.bf16.mxu0 0
    %2632 = vmatpush1.bf16.xpose.msra.mxu0 0
    %2633 = vmatprep.mubr.bf16.mxu0 0
    %2634 = vmatmul.mubr.bf16.gmra.mrb[0].mxu0 %v2596
    %v2635 = vpop.f32.mrb[0].mxu0
    %v2636 = vadd.f32 0.0, %v2635
    %v2637 = vpop.f32.mrb[0].mxu0
    %v2638 = vpop.f32.mrb[0].mxu0
    %v2639 = vpop.f32.mrb[0].mxu0
    %2640 = vdwg.mxu0
    %v2641 = vmul.f32 %v2636, 0.125
    %v2642 = vadd.f32 %v2641, %v752
    %v2643 = vsel %vm754, %v2642, -inf
    %2644 = vmax.xlane.f32.xlu0 %v2643
    %v2645 = vpop.xlane.xlu0 %2644
    %v2646 = vsub.f32 %v2642, %v2645
    %v2647 = vmul.f32 %v2646, 1.442695
    %v2648 = vpow.pop %v2647
    %v2649 = vsel %vm754, %v2648, 0.0
    %2650 = vadd.xlane.f32.xlu0 %v2649
    %v2651 = vpop.xlane.xlu0 %2650
    %v2652 = vrcp.pop %v2651
    %v2653 = vmul.f32 %v2648, %v2652
    %v2654 = vpack.c.bf16 %v2653, %v2653
    %2656 = vrot.lane.b32.xlu0 %v2481, 64
    %v2657 = vpop.permute.xlu0 %2656
    %v2659 = vsel %vm754, %v2654, 0
    %v2662 = vsel %vm770, %v2657, 0
    %2664 = vmatprep.subr.bf16.mxu0 0
    %2665 = vmatpush1.bf16.msra.mxu0 %v2662
    %2666 = vmatprep.subr.bf16.mxu0 0
    %2667 = vmatpush1.bf16.msra.mxu0 0
    %2668 = vmatprep.subr.bf16.mxu0 0
    %2669 = vmatpush1.bf16.msra.mxu0 0
    %2670 = vmatprep.subr.bf16.mxu0 0
    %2671 = vmatpush1.bf16.msra.mxu0 0
    %2672 = vmatprep.subr.bf16.mxu0 0
    %2673 = vmatpush1.bf16.msra.mxu0 0
    %2674 = vmatprep.subr.bf16.mxu0 0
    %2675 = vmatpush1.bf16.msra.mxu0 0
    %2676 = vmatprep.subr.bf16.mxu0 0
    %2677 = vmatpush1.bf16.msra.mxu0 0
    %2678 = vmatprep.subr.bf16.mxu0 0
    %2679 = vmatpush1.bf16.msra.mxu0 0
    %2680 = vmatprep.subr.bf16.mxu0 0
    %2681 = vmatpush1.bf16.msra.mxu0 0
    %2682 = vmatprep.subr.bf16.mxu0 0
    %2683 = vmatpush1.bf16.msra.mxu0 0
    %2684 = vmatprep.subr.bf16.mxu0 0
    %2685 = vmatpush1.bf16.msra.mxu0 0
    %2686 = vmatprep.subr.bf16.mxu0 0
    %2687 = vmatpush1.bf16.msra.mxu0 0
    %2688 = vmatprep.subr.bf16.mxu0 0
    %2689 = vmatpush1.bf16.msra.mxu0 0
    %2690 = vmatprep.subr.bf16.mxu0 0
    %2691 = vmatpush1.bf16.msra.mxu0 0
    %2692 = vmatprep.subr.bf16.mxu0 0
    %2693 = vmatpush1.bf16.msra.mxu0 0
    %2694 = vmatprep.subr.bf16.mxu0 0
    %2695 = vmatpush1.bf16.msra.mxu0 0
    %2696 = vmatprep.mubr.bf16.mxu0 0
    %2697 = vmatmul.mubr.bf16.gmra.mrb[0].mxu0 %v2659
    %v2698 = vpop.f32.mrb[0].mxu0
    %v2699 = vadd.f32 0.0, %v2698
    %v2700 = vpop.f32.mrb[0].mxu0
    %v2701 = vpop.f32.mrb[0].mxu0
    %v2702 = vpop.f32.mrb[0].mxu0
    %2703 = vdwg.mxu0
    %v2704 = vpack.c.bf16 %v2699, %v2699
    %v2713 = vunpack.c.l.b16 %v2142
    %v2714 = vunpack.c.l.b16 %v2143
    %v2715 = vunpack.c.l.b16 %v2144
    %v2716 = vunpack.c.l.b16 %v2145
    %v2717 = vunpack.c.l.b16 %v2146
    %v2718 = vunpack.c.l.b16 %v2147
    %v2719 = vunpack.c.l.b16 %v2148
    %v2720 = vunpack.c.l.b16 %v2149
    %v2721 = vpack.c.b16 %v2714, %v2713
    %v2722 = vpack.c.b16 %v2716, %v2715
    %v2723 = vpack.c.b16 %v2718, %v2717
    %v2724 = vpack.c.b16 %v2720, %v2719
    %v2730 = vsel %vm701, %v2704, 0
    %2732 = vmatprep.subr.bf16.mxu0 0
    %2733 = vmatpush1.bf16.msra.mxu0 %v2721
    %2734 = vmatprep.subr.bf16.mxu0 0
    %2735 = vmatpush1.bf16.msra.mxu0 %v2722
    %2736 = vmatprep.subr.bf16.mxu0 0
    %2737 = vmatpush1.bf16.msra.mxu0 %v2723
    %2738 = vmatprep.subr.bf16.mxu0 0
    %2739 = vmatpush1.bf16.msra.mxu0 %v2724
    %2740 = vmatprep.subr.bf16.mxu0 0
    %2741 = vmatpush1.bf16.msra.mxu0 0
    %2742 = vmatprep.subr.bf16.mxu0 0
    %2743 = vmatpush1.bf16.msra.mxu0 0
    %2744 = vmatprep.subr.bf16.mxu0 0
    %2745 = vmatpush1.bf16.msra.mxu0 0
    %2746 = vmatprep.subr.bf16.mxu0 0
    %2747 = vmatpush1.bf16.msra.mxu0 0
    %2748 = vmatprep.subr.bf16.mxu0 0
    %2749 = vmatpush1.bf16.msra.mxu0 0
    %2750 = vmatprep.subr.bf16.mxu0 0
    %2751 = vmatpush1.bf16.msra.mxu0 0
    %2752 = vmatprep.subr.bf16.mxu0 0
    %2753 = vmatpush1.bf16.msra.mxu0 0
    %2754 = vmatprep.subr.bf16.mxu0 0
    %2755 = vmatpush1.bf16.msra.mxu0 0
    %2756 = vmatprep.subr.bf16.mxu0 0
    %2757 = vmatpush1.bf16.msra.mxu0 0
    %2758 = vmatprep.subr.bf16.mxu0 0
    %2759 = vmatpush1.bf16.msra.mxu0 0
    %2760 = vmatprep.subr.bf16.mxu0 0
    %2761 = vmatpush1.bf16.msra.mxu0 0
    %2762 = vmatprep.subr.bf16.mxu0 0
    %2763 = vmatpush1.bf16.msra.mxu0 0
    %2764 = vmatprep.mubr.bf16.mxu0 0
    %2765 = vmatmul.mubr.bf16.gmra.mrb[0].mxu0 %v2730
    %v2766 = vpop.f32.mrb[0].mxu0
    %v2767 = vadd.f32 0.0, %v2766
    %v2768 = vpop.f32.mrb[0].mxu0
    %v2769 = vpop.f32.mrb[0].mxu0
    %v2770 = vpop.f32.mrb[0].mxu0
    %2771 = vdwg.mxu0
    %v2780 = vunpack.c.l.b16 %v2134
    %v2781 = vunpack.c.l.b16 %v2135
    %v2782 = vunpack.c.l.b16 %v2136
    %v2783 = vunpack.c.l.b16 %v2137
    %v2784 = vunpack.c.l.b16 %v2138
    %v2785 = vunpack.c.l.b16 %v2139
    %v2786 = vunpack.c.l.b16 %v2140
    %v2787 = vunpack.c.l.b16 %v2141
    %v2788 = vpack.c.b16 %v2781, %v2780
    %v2789 = vpack.c.b16 %v2783, %v2782
    %v2790 = vpack.c.b16 %v2785, %v2784
    %v2791 = vpack.c.b16 %v2787, %v2786
    %v2797 = vsel %vm701, %v2588, 0
    %2799 = vmatprep.subr.bf16.mxu0 0
    %2800 = vmatpush1.bf16.msra.mxu0 %v2788
    %2801 = vmatprep.subr.bf16.mxu0 0
    %2802 = vmatpush1.bf16.msra.mxu0 %v2789
    %2803 = vmatprep.subr.bf16.mxu0 0
    %2804 = vmatpush1.bf16.msra.mxu0 %v2790
    %2805 = vmatprep.subr.bf16.mxu0 0
    %2806 = vmatpush1.bf16.msra.mxu0 %v2791
    %2807 = vmatprep.subr.bf16.mxu0 0
    %2808 = vmatpush1.bf16.msra.mxu0 0
    %2809 = vmatprep.subr.bf16.mxu0 0
    %2810 = vmatpush1.bf16.msra.mxu0 0
    %2811 = vmatprep.subr.bf16.mxu0 0
    %2812 = vmatpush1.bf16.msra.mxu0 0
    %2813 = vmatprep.subr.bf16.mxu0 0
    %2814 = vmatpush1.bf16.msra.mxu0 0
    %2815 = vmatprep.subr.bf16.mxu0 0
    %2816 = vmatpush1.bf16.msra.mxu0 0
    %2817 = vmatprep.subr.bf16.mxu0 0
    %2818 = vmatpush1.bf16.msra.mxu0 0
    %2819 = vmatprep.subr.bf16.mxu0 0
    %2820 = vmatpush1.bf16.msra.mxu0 0
    %2821 = vmatprep.subr.bf16.mxu0 0
    %2822 = vmatpush1.bf16.msra.mxu0 0
    %2823 = vmatprep.subr.bf16.mxu0 0
    %2824 = vmatpush1.bf16.msra.mxu0 0
    %2825 = vmatprep.subr.bf16.mxu0 0
    %2826 = vmatpush1.bf16.msra.mxu0 0
    %2827 = vmatprep.subr.bf16.mxu0 0
    %2828 = vmatpush1.bf16.msra.mxu0 0
    %2829 = vmatprep.subr.bf16.mxu0 0
    %2830 = vmatpush1.bf16.msra.mxu0 0
    %2831 = vmatprep.mubr.bf16.mxu0 0
    %2832 = vmatmul.mubr.bf16.gmra.mrb[0].mxu0 %v2797
    %v2833 = vpop.f32.mrb[0].mxu0
    %v2834 = vadd.f32 %v2767, %v2833
    %v2835 = vpop.f32.mrb[0].mxu0
    %v2836 = vpop.f32.mrb[0].mxu0
    %v2837 = vpop.f32.mrb[0].mxu0
    %2838 = vdwg.mxu0
    %v2839 = vpack.c.bf16 %v2434, %v2434
    %v2840 = vpack.c.bf16 %v2436, %v2436
    %v2841 = vpack.c.bf16 %v2476, %v2476
    %v2843 = vsel %vm701, %v2839, 0
    %v2846 = vsel %vm701, %v2840, 0
    %2848 = vmatprep.subr.bf16.mxu0 0
    %2849 = vmatpush1.bf16.xpose.msra.mxu0 %v2846
    %2850 = vmatprep.subr.bf16.mxu0 0
    %2851 = vmatpush1.bf16.xpose.msra.mxu0 0
    %2852 = vmatprep.subr.bf16.mxu0 0
    %2853 = vmatpush1.bf16.xpose.msra.mxu0 0
    %2854 = vmatprep.subr.bf16.mxu0 0
    %2855 = vmatpush1.bf16.xpose.msra.mxu0 0
    %2856 = vmatprep.subr.bf16.mxu0 0
    %2857 = vmatpush1.bf16.xpose.msra.mxu0 0
    %2858 = vmatprep.subr.bf16.mxu0 0
    %2859 = vmatpush1.bf16.xpose.msra.mxu0 0
    %2860 = vmatprep.subr.bf16.mxu0 0
    %2861 = vmatpush1.bf16.xpose.msra.mxu0 0
    %2862 = vmatprep.subr.bf16.mxu0 0
    %2863 = vmatpush1.bf16.xpose.msra.mxu0 0
    %2864 = vmatprep.subr.bf16.mxu0 0
    %2865 = vmatpush1.bf16.xpose.msra.mxu0 0
    %2866 = vmatprep.subr.bf16.mxu0 0
    %2867 = vmatpush1.bf16.xpose.msra.mxu0 0
    %2868 = vmatprep.subr.bf16.mxu0 0
    %2869 = vmatpush1.bf16.xpose.msra.mxu0 0
    %2870 = vmatprep.subr.bf16.mxu0 0
    %2871 = vmatpush1.bf16.xpose.msra.mxu0 0
    %2872 = vmatprep.subr.bf16.mxu0 0
    %2873 = vmatpush1.bf16.xpose.msra.mxu0 0
    %2874 = vmatprep.subr.bf16.mxu0 0
    %2875 = vmatpush1.bf16.xpose.msra.mxu0 0
    %2876 = vmatprep.subr.bf16.mxu0 0
    %2877 = vmatpush1.bf16.xpose.msra.mxu0 0
    %2878 = vmatprep.subr.bf16.mxu0 0
    %2879 = vmatpush1.bf16.xpose.msra.mxu0 0
    %2880 = vmatprep.mubr.bf16.mxu0 0
    %2881 = vmatmul.mubr.bf16.gmra.mrb[0].mxu0 %v2843
    %v2882 = vpop.f32.mrb[0].mxu0
    %v2883 = vadd.f32 0.0, %v2882
    %v2884 = vpop.f32.mrb[0].mxu0
    %v2885 = vpop.f32.mrb[0].mxu0
    %v2886 = vpop.f32.mrb[0].mxu0
    %2887 = vdwg.mxu0
    %v2888 = vmul.f32 %v2883, 0.125
    %v2889 = vadd.f32 %v2888, %v1118
    %v2890 = vsel %vm754, %v2889, -inf
    %2891 = vmax.xlane.f32.xlu0 %v2890
    %v2892 = vpop.xlane.xlu0 %2891
    %v2893 = vsub.f32 %v2889, %v2892
    %v2894 = vmul.f32 %v2893, 1.442695
    %v2895 = vpow.pop %v2894
    %v2896 = vsel %vm754, %v2895, 0.0
    %2897 = vadd.xlane.f32.xlu0 %v2896
    %v2898 = vpop.xlane.xlu0 %2897
    %v2899 = vrcp.pop %v2898
    %v2900 = vmul.f32 %v2895, %v2899
    %v2901 = vpack.c.bf16 %v2900, %v2900
    %v2903 = vsel %vm754, %v2901, 0
    %v2906 = vsel %vm770, %v2841, 0
    %2908 = vmatprep.subr.bf16.mxu0 0
    %2909 = vmatpush1.bf16.msra.mxu0 %v2906
    %2910 = vmatprep.subr.bf16.mxu0 0
    %2911 = vmatpush1.bf16.msra.mxu0 0
    %2912 = vmatprep.subr.bf16.mxu0 0
    %2913 = vmatpush1.bf16.msra.mxu0 0
    %2914 = vmatprep.subr.bf16.mxu0 0
    %2915 = vmatpush1.bf16.msra.mxu0 0
    %2916 = vmatprep.subr.bf16.mxu0 0
    %2917 = vmatpush1.bf16.msra.mxu0 0
    %2918 = vmatprep.subr.bf16.mxu0 0
    %2919 = vmatpush1.bf16.msra.mxu0 0
    %2920 = vmatprep.subr.bf16.mxu0 0
    %2921 = vmatpush1.bf16.msra.mxu0 0
    %2922 = vmatprep.subr.bf16.mxu0 0
    %2923 = vmatpush1.bf16.msra.mxu0 0
    %2924 = vmatprep.subr.bf16.mxu0 0
    %2925 = vmatpush1.bf16.msra.mxu0 0
    %2926 = vmatprep.subr.bf16.mxu0 0
    %2927 = vmatpush1.bf16.msra.mxu0 0
    %2928 = vmatprep.subr.bf16.mxu0 0
    %2929 = vmatpush1.bf16.msra.mxu0 0
    %2930 = vmatprep.subr.bf16.mxu0 0
    %2931 = vmatpush1.bf16.msra.mxu0 0
    %2932 = vmatprep.subr.bf16.mxu0 0
    %2933 = vmatpush1.bf16.msra.mxu0 0
    %2934 = vmatprep.subr.bf16.mxu0 0
    %2935 = vmatpush1.bf16.msra.mxu0 0
    %2936 = vmatprep.subr.bf16.mxu0 0
    %2937 = vmatpush1.bf16.msra.mxu0 0
    %2938 = vmatprep.subr.bf16.mxu0 0
    %2939 = vmatpush1.bf16.msra.mxu0 0
    %2940 = vmatprep.mubr.bf16.mxu0 0
    %2941 = vmatmul.mubr.bf16.gmra.mrb[0].mxu0 %v2903
    %v2942 = vpop.f32.mrb[0].mxu0
    %v2943 = vadd.f32 0.0, %v2942
    %v2944 = vpop.f32.mrb[0].mxu0
    %v2945 = vpop.f32.mrb[0].mxu0
    %v2946 = vpop.f32.mrb[0].mxu0
    %2947 = vdwg.mxu0
    %v2948 = vpack.c.bf16 %v2943, %v2943
    %2950 = vrot.lane.b32.xlu0 %v2839, 64
    %v2951 = vpop.permute.xlu0 %2950
    %2953 = vrot.lane.b32.xlu0 %v2840, 64
    %v2954 = vpop.permute.xlu0 %2953
    %v2956 = vsel %vm701, %v2951, 0
    %v2959 = vsel %vm701, %v2954, 0
    %2961 = vmatprep.subr.bf16.mxu0 0
    %2962 = vmatpush1.bf16.xpose.msra.mxu0 %v2959
    %2963 = vmatprep.subr.bf16.mxu0 0
    %2964 = vmatpush1.bf16.xpose.msra.mxu0 0
    %2965 = vmatprep.subr.bf16.mxu0 0
    %2966 = vmatpush1.bf16.xpose.msra.mxu0 0
    %2967 = vmatprep.subr.bf16.mxu0 0
    %2968 = vmatpush1.bf16.xpose.msra.mxu0 0
    %2969 = vmatprep.subr.bf16.mxu0 0
    %2970 = vmatpush1.bf16.xpose.msra.mxu0 0
    %2971 = vmatprep.subr.bf16.mxu0 0
    %2972 = vmatpush1.bf16.xpose.msra.mxu0 0
    %2973 = vmatprep.subr.bf16.mxu0 0
    %2974 = vmatpush1.bf16.xpose.msra.mxu0 0
    %2975 = vmatprep.subr.bf16.mxu0 0
    %2976 = vmatpush1.bf16.xpose.msra.mxu0 0
    %2977 = vmatprep.subr.bf16.mxu0 0
    %2978 = vmatpush1.bf16.xpose.msra.mxu0 0
    %2979 = vmatprep.subr.bf16.mxu0 0
    %2980 = vmatpush1.bf16.xpose.msra.mxu0 0
    %2981 = vmatprep.subr.bf16.mxu0 0
    %2982 = vmatpush1.bf16.xpose.msra.mxu0 0
    %2983 = vmatprep.subr.bf16.mxu0 0
    %2984 = vmatpush1.bf16.xpose.msra.mxu0 0
    %2985 = vmatprep.subr.bf16.mxu0 0
    %2986 = vmatpush1.bf16.xpose.msra.mxu0 0
    %2987 = vmatprep.subr.bf16.mxu0 0
    %2988 = vmatpush1.bf16.xpose.msra.mxu0 0
    %2989 = vmatprep.subr.bf16.mxu0 0
    %2990 = vmatpush1.bf16.xpose.msra.mxu0 0
    %2991 = vmatprep.subr.bf16.mxu0 0
    %2992 = vmatpush1.bf16.xpose.msra.mxu0 0
    %2993 = vmatprep.mubr.bf16.mxu0 0
    %2994 = vmatmul.mubr.bf16.gmra.mrb[0].mxu0 %v2956
    %v2995 = vpop.f32.mrb[0].mxu0
    %v2996 = vadd.f32 0.0, %v2995
    %v2997 = vpop.f32.mrb[0].mxu0
    %v2998 = vpop.f32.mrb[0].mxu0
    %v2999 = vpop.f32.mrb[0].mxu0
    %3000 = vdwg.mxu0
    %v3001 = vmul.f32 %v2996, 0.125
    %v3002 = vadd.f32 %v3001, %v1118
    %v3003 = vsel %vm754, %v3002, -inf
    %3004 = vmax.xlane.f32.xlu0 %v3003
    %v3005 = vpop.xlane.xlu0 %3004
    %v3006 = vsub.f32 %v3002, %v3005
    %v3007 = vmul.f32 %v3006, 1.442695
    %v3008 = vpow.pop %v3007
    %v3009 = vsel %vm754, %v3008, 0.0
    %3010 = vadd.xlane.f32.xlu0 %v3009
    %v3011 = vpop.xlane.xlu0 %3010
    %v3012 = vrcp.pop %v3011
    %v3013 = vmul.f32 %v3008, %v3012
    %v3014 = vpack.c.bf16 %v3013, %v3013
    %3016 = vrot.lane.b32.xlu0 %v2841, 64
    %v3017 = vpop.permute.xlu0 %3016
    %v3019 = vsel %vm754, %v3014, 0
    %v3022 = vsel %vm770, %v3017, 0
    %3024 = vmatprep.subr.bf16.mxu0 0
    %3025 = vmatpush1.bf16.msra.mxu0 %v3022
    %3026 = vmatprep.subr.bf16.mxu0 0
    %3027 = vmatpush1.bf16.msra.mxu0 0
    %3028 = vmatprep.subr.bf16.mxu0 0
    %3029 = vmatpush1.bf16.msra.mxu0 0
    %3030 = vmatprep.subr.bf16.mxu0 0
    %3031 = vmatpush1.bf16.msra.mxu0 0
    %3032 = vmatprep.subr.bf16.mxu0 0
    %3033 = vmatpush1.bf16.msra.mxu0 0
    %3034 = vmatprep.subr.bf16.mxu0 0
    %3035 = vmatpush1.bf16.msra.mxu0 0
    %3036 = vmatprep.subr.bf16.mxu0 0
    %3037 = vmatpush1.bf16.msra.mxu0 0
    %3038 = vmatprep.subr.bf16.mxu0 0
    %3039 = vmatpush1.bf16.msra.mxu0 0
    %3040 = vmatprep.subr.bf16.mxu0 0
    %3041 = vmatpush1.bf16.msra.mxu0 0
    %3042 = vmatprep.subr.bf16.mxu0 0
    %3043 = vmatpush1.bf16.msra.mxu0 0
    %3044 = vmatprep.subr.bf16.mxu0 0
    %3045 = vmatpush1.bf16.msra.mxu0 0
    %3046 = vmatprep.subr.bf16.mxu0 0
    %3047 = vmatpush1.bf16.msra.mxu0 0
    %3048 = vmatprep.subr.bf16.mxu0 0
    %3049 = vmatpush1.bf16.msra.mxu0 0
    %3050 = vmatprep.subr.bf16.mxu0 0
    %3051 = vmatpush1.bf16.msra.mxu0 0
    %3052 = vmatprep.subr.bf16.mxu0 0
    %3053 = vmatpush1.bf16.msra.mxu0 0
    %3054 = vmatprep.subr.bf16.mxu0 0
    %3055 = vmatpush1.bf16.msra.mxu0 0
    %3056 = vmatprep.mubr.bf16.mxu0 0
    %3057 = vmatmul.mubr.bf16.gmra.mrb[0].mxu0 %v3019
    %v3058 = vpop.f32.mrb[0].mxu0
    %v3059 = vadd.f32 0.0, %v3058
    %v3060 = vpop.f32.mrb[0].mxu0
    %v3061 = vpop.f32.mrb[0].mxu0
    %v3062 = vpop.f32.mrb[0].mxu0
    %3063 = vdwg.mxu0
    %v3064 = vpack.c.bf16 %v3059, %v3059
    %v3066 = vsel %vm701, %v3064, 0
    %3068 = vmatprep.subr.bf16.mxu0 0
    %3069 = vmatpush1.bf16.msra.mxu0 %v2721
    %3070 = vmatprep.subr.bf16.mxu0 0
    %3071 = vmatpush1.bf16.msra.mxu0 %v2722
    %3072 = vmatprep.subr.bf16.mxu0 0
    %3073 = vmatpush1.bf16.msra.mxu0 %v2723
    %3074 = vmatprep.subr.bf16.mxu0 0
    %3075 = vmatpush1.bf16.msra.mxu0 %v2724
    %3076 = vmatprep.subr.bf16.mxu0 0
    %3077 = vmatpush1.bf16.msra.mxu0 0
    %3078 = vmatprep.subr.bf16.mxu0 0
    %3079 = vmatpush1.bf16.msra.mxu0 0
    %3080 = vmatprep.subr.bf16.mxu0 0
    %3081 = vmatpush1.bf16.msra.mxu0 0
    %3082 = vmatprep.subr.bf16.mxu0 0
    %3083 = vmatpush1.bf16.msra.mxu0 0
    %3084 = vmatprep.subr.bf16.mxu0 0
    %3085 = vmatpush1.bf16.msra.mxu0 0
    %3086 = vmatprep.subr.bf16.mxu0 0
    %3087 = vmatpush1.bf16.msra.mxu0 0
    %3088 = vmatprep.subr.bf16.mxu0 0
    %3089 = vmatpush1.bf16.msra.mxu0 0
    %3090 = vmatprep.subr.bf16.mxu0 0
    %3091 = vmatpush1.bf16.msra.mxu0 0
    %3092 = vmatprep.subr.bf16.mxu0 0
    %3093 = vmatpush1.bf16.msra.mxu0 0
    %3094 = vmatprep.subr.bf16.mxu0 0
    %3095 = vmatpush1.bf16.msra.mxu0 0
    %3096 = vmatprep.subr.bf16.mxu0 0
    %3097 = vmatpush1.bf16.msra.mxu0 0
    %3098 = vmatprep.subr.bf16.mxu0 0
    %3099 = vmatpush1.bf16.msra.mxu0 0
    %3100 = vmatprep.mubr.bf16.mxu0 0
    %3101 = vmatmul.mubr.bf16.gmra.mrb[0].mxu0 %v3066
    %v3102 = vpop.f32.mrb[0].mxu0
    %v3103 = vadd.f32 0.0, %v3102
    %v3104 = vpop.f32.mrb[0].mxu0
    %v3105 = vpop.f32.mrb[0].mxu0
    %v3106 = vpop.f32.mrb[0].mxu0
    %3107 = vdwg.mxu0
    %v3109 = vsel %vm701, %v2948, 0
    %3111 = vmatprep.subr.bf16.mxu0 0
    %3112 = vmatpush1.bf16.msra.mxu0 %v2788
    %3113 = vmatprep.subr.bf16.mxu0 0
    %3114 = vmatpush1.bf16.msra.mxu0 %v2789
    %3115 = vmatprep.subr.bf16.mxu0 0
    %3116 = vmatpush1.bf16.msra.mxu0 %v2790
    %3117 = vmatprep.subr.bf16.mxu0 0
    %3118 = vmatpush1.bf16.msra.mxu0 %v2791
    %3119 = vmatprep.subr.bf16.mxu0 0
    %3120 = vmatpush1.bf16.msra.mxu0 0
    %3121 = vmatprep.subr.bf16.mxu0 0
    %3122 = vmatpush1.bf16.msra.mxu0 0
    %3123 = vmatprep.subr.bf16.mxu0 0
    %3124 = vmatpush1.bf16.msra.mxu0 0
    %3125 = vmatprep.subr.bf16.mxu0 0
    %3126 = vmatpush1.bf16.msra.mxu0 0
    %3127 = vmatprep.subr.bf16.mxu0 0
    %3128 = vmatpush1.bf16.msra.mxu0 0
    %3129 = vmatprep.subr.bf16.mxu0 0
    %3130 = vmatpush1.bf16.msra.mxu0 0
    %3131 = vmatprep.subr.bf16.mxu0 0
    %3132 = vmatpush1.bf16.msra.mxu0 0
    %3133 = vmatprep.subr.bf16.mxu0 0
    %3134 = vmatpush1.bf16.msra.mxu0 0
    %3135 = vmatprep.subr.bf16.mxu0 0
    %3136 = vmatpush1.bf16.msra.mxu0 0
    %3137 = vmatprep.subr.bf16.mxu0 0
    %3138 = vmatpush1.bf16.msra.mxu0 0
    %3139 = vmatprep.subr.bf16.mxu0 0
    %3140 = vmatpush1.bf16.msra.mxu0 0
    %3141 = vmatprep.subr.bf16.mxu0 0
    %3142 = vmatpush1.bf16.msra.mxu0 0
    %3143 = vmatprep.mubr.bf16.mxu0 0
    %3144 = vmatmul.mubr.bf16.gmra.mrb[0].mxu0 %v3109
    %v3145 = vpop.f32.mrb[0].mxu0
    %v3146 = vadd.f32 %v3103, %v3145
    %v3147 = vpop.f32.mrb[0].mxu0
    %v3148 = vpop.f32.mrb[0].mxu0
    %v3149 = vpop.f32.mrb[0].mxu0
    %3150 = vdwg.mxu0
    %s3151 = scalar_lea.vmem %s7, 1
    %v3152 = vld [vmem:[%s3151] sm:$0x1]
    %v3154 = vlaneseq
    %v3155 = vshrl.u32 %v3154, 7
    %v3156 = vsub.s32 0, %v3155
    %v3157 = vrot.slane %v3152, %v3156
    %v3159 = vadd.f32 %v2834, %v3157
    %v3160 = vadd.f32 %v3146, %v3157
    %v3161 = vadd.f32 %v3159, %v2098
    %v3162 = vadd.f32 %v3160, %v2099
    %s3163 = scalar_lea.vmem [#allocation13], 1
    %v3164 = vld [vmem:[%s3163] sm:$0x1]
    %s3165 = scalar_lea.vmem [#allocation14], 1
    %v3166 = vld [vmem:[%s3165] sm:$0x1]
    %3167 = vadd.xlane.f32.xlu0 %v3161
    %v3168 = vpop.xlane.xlu0 %3167
    %3169 = vadd.xlane.f32.xlu0 %v3162
    %v3170 = vpop.xlane.xlu0 %3169
    %v3171 = vmul.f32 %v3168, %v286
    %v3172 = vmul.f32 %v3170, %v286
    %v3173 = vsub.f32 %v3161, %v3171
    %v3174 = vsub.f32 %v3162, %v3172
    %v3175 = vmul.f32 %v3173, %v3173
    %v3176 = vmul.f32 %v3174, %v3174
    %3177 = vadd.xlane.f32.xlu0 %v3175
    %v3178 = vpop.xlane.xlu0 %3177
    %3179 = vadd.xlane.f32.xlu0 %v3176
    %v3180 = vpop.xlane.xlu0 %3179
    %v3181 = vmul.f32 %v3178, %v286
    %v3182 = vmul.f32 %v3180, %v286
    %v3183 = vadd.f32 %v3181, 1e-12
    %v3184 = vadd.f32 %v3182, 1e-12
    %v3185 = vrsqrt.pop %v3183
    %v3186 = vrsqrt.pop %v3184
    %v3187 = vmul.f32 %v3173, %v3185
    %v3188 = vmul.f32 %v3174, %v3186
    %v3190 = vlaneseq
    %v3191 = vshrl.u32 %v3190, 7
    %v3192 = vsub.s32 0, %v3191
    %v3193 = vrot.slane %v3164, %v3192
    %v3195 = vmul.f32 %v3187, %v3193
    %v3196 = vmul.f32 %v3188, %v3193
    %v3198 = vlaneseq
    %v3199 = vshrl.u32 %v3198, 7
    %v3200 = vsub.s32 0, %v3199
    %v3201 = vrot.slane %v3166, %v3200
    %v3203 = vadd.f32 %v3195, %v3201
    %v3204 = vadd.f32 %v3196, %v3201
    %v3205 = vpack.c.bf16 %v3204, %v3203
    %s3206 = scalar_lea.vmem [#allocation17], 4
    %v3207 = vld [vmem:[%s3206] sm:$0xf]
    %v3209 = vlaneseq
    %v3210 = vshrl.u32 %v3209, 7
    %v3211 = vsub.s32 0, %v3210
    %v3212 = vrot.slane %v3207, %v3211
    %v3213 = vlaneseq
    %v3214 = vshrl.u32 %v3213, 7
    %v3215 = vsub.s32 1, %v3214
    %v3216 = vrot.slane %v3207, %v3215
    %v3217 = vlaneseq
    %v3218 = vshrl.u32 %v3217, 7
    %v3219 = vsub.s32 2, %v3218
    %v3220 = vrot.slane %v3207, %v3219
    %v3221 = vlaneseq
    %v3222 = vshrl.u32 %v3221, 7
    %v3223 = vsub.s32 3, %v3222
    %v3224 = vrot.slane %v3207, %v3223
    %v3261 = vunpack.c.l.b16 %v2151
    %v3262 = vunpack.c.h.b16 %v2151
    %v3263 = vunpack.c.l.b16 %v2152
    %v3264 = vunpack.c.h.b16 %v2152
    %v3265 = vunpack.c.l.b16 %v2153
    %v3266 = vunpack.c.h.b16 %v2153
    %v3267 = vunpack.c.l.b16 %v2154
    %v3268 = vunpack.c.h.b16 %v2154
    %v3269 = vunpack.c.l.b16 %v2155
    %v3270 = vunpack.c.h.b16 %v2155
    %v3271 = vunpack.c.l.b16 %v2156
    %v3272 = vunpack.c.h.b16 %v2156
    %v3273 = vunpack.c.l.b16 %v2157
    %v3274 = vunpack.c.h.b16 %v2157
    %v3275 = vunpack.c.l.b16 %v2158
    %v3276 = vunpack.c.h.b16 %v2158
    %v3277 = vunpack.c.l.b16 %v2159
    %v3278 = vunpack.c.h.b16 %v2159
    %v3279 = vunpack.c.l.b16 %v2160
    %v3280 = vunpack.c.h.b16 %v2160
    %v3281 = vunpack.c.l.b16 %v2161
    %v3282 = vunpack.c.h.b16 %v2161
    %v3283 = vunpack.c.l.b16 %v2162
    %v3284 = vunpack.c.h.b16 %v2162
    %v3285 = vunpack.c.l.b16 %v2163
    %v3286 = vunpack.c.h.b16 %v2163
    %v3287 = vunpack.c.l.b16 %v2164
    %v3288 = vunpack.c.h.b16 %v2164
    %v3289 = vunpack.c.l.b16 %v2165
    %v3290 = vunpack.c.h.b16 %v2165
    %v3291 = vunpack.c.l.b16 %v2166
    %v3292 = vunpack.c.h.b16 %v2166
    %v3293 = vunpack.c.l.b16 %v2167
    %v3294 = vunpack.c.h.b16 %v2167
    %v3295 = vunpack.c.l.b16 %v2168
    %v3296 = vunpack.c.h.b16 %v2168
    %v3297 = vunpack.c.l.b16 %v2169
    %v3298 = vunpack.c.h.b16 %v2169
    %v3299 = vunpack.c.l.b16 %v2170
    %v3300 = vunpack.c.h.b16 %v2170
    %v3301 = vunpack.c.l.b16 %v2171
    %v3302 = vunpack.c.h.b16 %v2171
    %v3303 = vunpack.c.l.b16 %v2172
    %v3304 = vunpack.c.h.b16 %v2172
    %v3305 = vunpack.c.l.b16 %v2173
    %v3306 = vunpack.c.h.b16 %v2173
    %v3307 = vunpack.c.l.b16 %v2174
    %v3308 = vunpack.c.h.b16 %v2174
    %v3309 = vunpack.c.l.b16 %v2175
    %v3310 = vunpack.c.h.b16 %v2175
    %v3311 = vunpack.c.l.b16 %v2176
    %v3312 = vunpack.c.h.b16 %v2176
    %v3313 = vunpack.c.l.b16 %v2177
    %v3314 = vunpack.c.h.b16 %v2177
    %v3315 = vunpack.c.l.b16 %v2178
    %v3316 = vunpack.c.h.b16 %v2178
    %v3317 = vunpack.c.l.b16 %v2179
    %v3318 = vunpack.c.h.b16 %v2179
    %v3319 = vunpack.c.l.b16 %v2180
    %v3320 = vunpack.c.h.b16 %v2180
    %v3321 = vunpack.c.l.b16 %v2181
    %v3322 = vunpack.c.h.b16 %v2181
    %v3323 = vunpack.c.l.b16 %v2182
    %v3324 = vunpack.c.h.b16 %v2182
    %v3325 = vpack.c.b16 %v3265, %v3261
    %v3326 = vpack.c.b16 %v3266, %v3262
    %v3327 = vpack.c.b16 %v3267, %v3263
    %v3328 = vpack.c.b16 %v3268, %v3264
    %v3329 = vpack.c.b16 %v3273, %v3269
    %v3330 = vpack.c.b16 %v3274, %v3270
    %v3331 = vpack.c.b16 %v3275, %v3271
    %v3332 = vpack.c.b16 %v3276, %v3272
    %v3333 = vpack.c.b16 %v3281, %v3277
    %v3334 = vpack.c.b16 %v3282, %v3278
    %v3335 = vpack.c.b16 %v3283, %v3279
    %v3336 = vpack.c.b16 %v3284, %v3280
    %v3337 = vpack.c.b16 %v3289, %v3285
    %v3338 = vpack.c.b16 %v3290, %v3286
    %v3339 = vpack.c.b16 %v3291, %v3287
    %v3340 = vpack.c.b16 %v3292, %v3288
    %v3341 = vpack.c.b16 %v3297, %v3293
    %v3342 = vpack.c.b16 %v3298, %v3294
    %v3343 = vpack.c.b16 %v3299, %v3295
    %v3344 = vpack.c.b16 %v3300, %v3296
    %v3345 = vpack.c.b16 %v3305, %v3301
    %v3346 = vpack.c.b16 %v3306, %v3302
    %v3347 = vpack.c.b16 %v3307, %v3303
    %v3348 = vpack.c.b16 %v3308, %v3304
    %v3349 = vpack.c.b16 %v3313, %v3309
    %v3350 = vpack.c.b16 %v3314, %v3310
    %v3351 = vpack.c.b16 %v3315, %v3311
    %v3352 = vpack.c.b16 %v3316, %v3312
    %v3353 = vpack.c.b16 %v3321, %v3317
    %v3354 = vpack.c.b16 %v3322, %v3318
    %v3355 = vpack.c.b16 %v3323, %v3319
    %v3356 = vpack.c.b16 %v3324, %v3320
    %3389 = vmatprep.subr.bf16.mxu0 %v3326
    %3390 = vmatpush1.bf16.msra.mxu0 %v3325
    %3391 = vmatprep.subr.bf16.mxu0 %v3330
    %3392 = vmatpush1.bf16.msra.mxu0 %v3329
    %3393 = vmatprep.subr.bf16.mxu0 %v3334
    %3394 = vmatpush1.bf16.msra.mxu0 %v3333
    %3395 = vmatprep.subr.bf16.mxu0 %v3338
    %3396 = vmatpush1.bf16.msra.mxu0 %v3337
    %3397 = vmatprep.subr.bf16.mxu0 %v3342
    %3398 = vmatpush1.bf16.msra.mxu0 %v3341
    %3399 = vmatprep.subr.bf16.mxu0 %v3346
    %3400 = vmatpush1.bf16.msra.mxu0 %v3345
    %3401 = vmatprep.subr.bf16.mxu0 %v3350
    %3402 = vmatpush1.bf16.msra.mxu0 %v3349
    %3403 = vmatprep.subr.bf16.mxu0 %v3354
    %3404 = vmatpush1.bf16.msra.mxu0 %v3353
    %3405 = vmatprep.subr.bf16.mxu0 0
    %3406 = vmatpush1.bf16.msra.mxu0 0
    %3407 = vmatprep.subr.bf16.mxu0 0
    %3408 = vmatpush1.bf16.msra.mxu0 0
    %3409 = vmatprep.subr.bf16.mxu0 0
    %3410 = vmatpush1.bf16.msra.mxu0 0
    %3411 = vmatprep.subr.bf16.mxu0 0
    %3412 = vmatpush1.bf16.msra.mxu0 0
    %3413 = vmatprep.subr.bf16.mxu0 0
    %3414 = vmatpush1.bf16.msra.mxu0 0
    %3415 = vmatprep.subr.bf16.mxu0 0
    %3416 = vmatpush1.bf16.msra.mxu0 0
    %3417 = vmatprep.subr.bf16.mxu0 0
    %3418 = vmatpush1.bf16.msra.mxu0 0
    %3419 = vmatprep.subr.bf16.mxu0 0
    %3420 = vmatpush1.bf16.msra.mxu0 0
    %3421 = vmatprep.mubr.bf16.mxu0 0
    %3422 = vmatmul.mubr.bf16.gmra.mrb[0].mxu0 %v3205
    %v3423 = vpop.f32.mrb[0].mxu0
    %v3424 = vadd.f32 %v3212, %v3423
    %v3425 = vpop.f32.mrb[0].mxu0
    %v3426 = vadd.f32 %v3216, %v3425
    %v3427 = vpop.f32.mrb[0].mxu0
    %v3428 = vadd.f32 %v3212, %v3427
    %v3429 = vpop.f32.mrb[0].mxu0
    %v3430 = vadd.f32 %v3216, %v3429
    %3431 = vdwg.mxu0
    %3432 = vmatprep.subr.bf16.mxu0 %v3328
    %3433 = vmatpush1.bf16.msra.mxu0 %v3327
    %3434 = vmatprep.subr.bf16.mxu0 %v3332
    %3435 = vmatpush1.bf16.msra.mxu0 %v3331
    %3436 = vmatprep.subr.bf16.mxu0 %v3336
    %3437 = vmatpush1.bf16.msra.mxu0 %v3335
    %3438 = vmatprep.subr.bf16.mxu0 %v3340
    %3439 = vmatpush1.bf16.msra.mxu0 %v3339
    %3440 = vmatprep.subr.bf16.mxu0 %v3344
    %3441 = vmatpush1.bf16.msra.mxu0 %v3343
    %3442 = vmatprep.subr.bf16.mxu0 %v3348
    %3443 = vmatpush1.bf16.msra.mxu0 %v3347
    %3444 = vmatprep.subr.bf16.mxu0 %v3352
    %3445 = vmatpush1.bf16.msra.mxu0 %v3351
    %3446 = vmatprep.subr.bf16.mxu0 %v3356
    %3447 = vmatpush1.bf16.msra.mxu0 %v3355
    %3448 = vmatprep.subr.bf16.mxu0 0
    %3449 = vmatpush1.bf16.msra.mxu0 0
    %3450 = vmatprep.subr.bf16.mxu0 0
    %3451 = vmatpush1.bf16.msra.mxu0 0
    %3452 = vmatprep.subr.bf16.mxu0 0
    %3453 = vmatpush1.bf16.msra.mxu0 0
    %3454 = vmatprep.subr.bf16.mxu0 0
    %3455 = vmatpush1.bf16.msra.mxu0 0
    %3456 = vmatprep.subr.bf16.mxu0 0
    %3457 = vmatpush1.bf16.msra.mxu0 0
    %3458 = vmatprep.subr.bf16.mxu0 0
    %3459 = vmatpush1.bf16.msra.mxu0 0
    %3460 = vmatprep.subr.bf16.mxu0 0
    %3461 = vmatpush1.bf16.msra.mxu0 0
    %3462 = vmatprep.subr.bf16.mxu0 0
    %3463 = vmatpush1.bf16.msra.mxu0 0
    %3464 = vmatprep.mubr.bf16.mxu0 0
    %3465 = vmatmul.mubr.bf16.gmra.mrb[0].mxu0 %v3205
    %v3466 = vpop.f32.mrb[0].mxu0
    %v3467 = vadd.f32 %v3220, %v3466
    %v3468 = vpop.f32.mrb[0].mxu0
    %v3469 = vadd.f32 %v3224, %v3468
    %v3470 = vpop.f32.mrb[0].mxu0
    %v3471 = vadd.f32 %v3220, %v3470
    %v3472 = vpop.f32.mrb[0].mxu0
    %v3473 = vadd.f32 %v3224, %v3472
    %3474 = vdwg.mxu0
    %v3475 = vmul.f32 %v3424, 0.5
    %v3476 = vmul.f32 %v3426, 0.5
    %v3477 = vmul.f32 %v3467, 0.5
    %v3478 = vmul.f32 %v3469, 0.5
    %v3479 = vmul.f32 %v3428, 0.5
    %v3480 = vmul.f32 %v3430, 0.5
    %v3481 = vmul.f32 %v3471, 0.5
    %v3482 = vmul.f32 %v3473, 0.5
    %v3483 = vmul.f32 %v3424, 0.044715
    %v3484 = vmul.f32 %v3426, 0.044715
    %v3485 = vmul.f32 %v3467, 0.044715
    %v3486 = vmul.f32 %v3469, 0.044715
    %v3487 = vmul.f32 %v3428, 0.044715
    %v3488 = vmul.f32 %v3430, 0.044715
    %v3489 = vmul.f32 %v3471, 0.044715
    %v3490 = vmul.f32 %v3473, 0.044715
    %v3491 = vmul.f32 %v3483, %v3424
    %v3492 = vmul.f32 %v3484, %v3426
    %v3493 = vmul.f32 %v3485, %v3467
    %v3494 = vmul.f32 %v3486, %v3469
    %v3495 = vmul.f32 %v3487, %v3428
    %v3496 = vmul.f32 %v3488, %v3430
    %v3497 = vmul.f32 %v3489, %v3471
    %v3498 = vmul.f32 %v3490, %v3473
    %v3499 = vmul.f32 %v3491, %v3424
    %v3500 = vmul.f32 %v3492, %v3426
    %v3501 = vmul.f32 %v3493, %v3467
    %v3502 = vmul.f32 %v3494, %v3469
    %v3503 = vmul.f32 %v3495, %v3428
    %v3504 = vmul.f32 %v3496, %v3430
    %v3505 = vmul.f32 %v3497, %v3471
    %v3506 = vmul.f32 %v3498, %v3473
    %v3507 = vadd.f32 %v3424, %v3499
    %v3508 = vadd.f32 %v3426, %v3500
    %v3509 = vadd.f32 %v3467, %v3501
    %v3510 = vadd.f32 %v3469, %v3502
    %v3511 = vadd.f32 %v3428, %v3503
    %v3512 = vadd.f32 %v3430, %v3504
    %v3513 = vadd.f32 %v3471, %v3505
    %v3514 = vadd.f32 %v3473, %v3506
    %v3515 = vmul.f32 %v3507, 0.7978846
    %v3516 = vmul.f32 %v3508, 0.7978846
    %v3517 = vmul.f32 %v3509, 0.7978846
    %v3518 = vmul.f32 %v3510, 0.7978846
    %v3519 = vmul.f32 %v3511, 0.7978846
    %v3520 = vmul.f32 %v3512, 0.7978846
    %v3521 = vmul.f32 %v3513, 0.7978846
    %v3522 = vmul.f32 %v3514, 0.7978846
    %v3523 = vtanh.pop %v3515
    %v3524 = vtanh.pop %v3516
    %v3525 = vtanh.pop %v3517
    %v3526 = vtanh.pop %v3518
    %v3527 = vtanh.pop %v3519
    %v3528 = vtanh.pop %v3520
    %v3529 = vtanh.pop %v3521
    %v3530 = vtanh.pop %v3522
    %v3531 = vadd.f32 %v3523, 1.0
    %v3532 = vadd.f32 %v3524, 1.0
    %v3533 = vadd.f32 %v3525, 1.0
    %v3534 = vadd.f32 %v3526, 1.0
    %v3535 = vadd.f32 %v3527, 1.0
    %v3536 = vadd.f32 %v3528, 1.0
    %v3537 = vadd.f32 %v3529, 1.0
    %v3538 = vadd.f32 %v3530, 1.0
    %v3539 = vmul.f32 %v3475, %v3531
    %v3540 = vmul.f32 %v3476, %v3532
    %v3541 = vmul.f32 %v3477, %v3533
    %v3542 = vmul.f32 %v3478, %v3534
    %v3543 = vmul.f32 %v3479, %v3535
    %v3544 = vmul.f32 %v3480, %v3536
    %v3545 = vmul.f32 %v3481, %v3537
    %v3546 = vmul.f32 %v3482, %v3538
    %v3547 = vpack.c.bf16 %v3543, %v3539
    %v3548 = vpack.c.bf16 %v3544, %v3540
    %v3549 = vpack.c.bf16 %v3545, %v3541
    %v3550 = vpack.c.bf16 %v3546, %v3542
    %s3551 = scalar_lea.vmem [#allocation20], 1
    %v3552 = vld [vmem:[%s3551] sm:$0x1]
    %v3554 = vlaneseq
    %v3555 = vshrl.u32 %v3554, 7
    %v3556 = vsub.s32 0, %v3555
    %v3557 = vrot.slane %v3552, %v3556
    %v3623 = vunpack.c.l.b16 %v2184
    %v3624 = vunpack.c.l.b16 %v2185
    %v3625 = vunpack.c.l.b16 %v2186
    %v3626 = vunpack.c.l.b16 %v2187
    %v3627 = vunpack.c.l.b16 %v2188
    %v3628 = vunpack.c.l.b16 %v2189
    %v3629 = vunpack.c.l.b16 %v2190
    %v3630 = vunpack.c.l.b16 %v2191
    %v3631 = vunpack.c.l.b16 %v2192
    %v3632 = vunpack.c.l.b16 %v2193
    %v3633 = vunpack.c.l.b16 %v2194
    %v3634 = vunpack.c.l.b16 %v2195
    %v3635 = vunpack.c.l.b16 %v2196
    %v3636 = vunpack.c.l.b16 %v2197
    %v3637 = vunpack.c.l.b16 %v2198
    %v3638 = vunpack.c.l.b16 %v2199
    %v3639 = vunpack.c.l.b16 %v2200
    %v3640 = vunpack.c.l.b16 %v2201
    %v3641 = vunpack.c.l.b16 %v2202
    %v3642 = vunpack.c.l.b16 %v2203
    %v3643 = vunpack.c.l.b16 %v2204
    %v3644 = vunpack.c.l.b16 %v2205
    %v3645 = vunpack.c.l.b16 %v2206
    %v3646 = vunpack.c.l.b16 %v2207
    %v3647 = vunpack.c.l.b16 %v2208
    %v3648 = vunpack.c.l.b16 %v2209
    %v3649 = vunpack.c.l.b16 %v2210
    %v3650 = vunpack.c.l.b16 %v2211
    %v3651 = vunpack.c.l.b16 %v2212
    %v3652 = vunpack.c.l.b16 %v2213
    %v3653 = vunpack.c.l.b16 %v2214
    %v3654 = vunpack.c.l.b16 %v2215
    %v3655 = vunpack.c.l.b16 %v2216
    %v3656 = vunpack.c.l.b16 %v2217
    %v3657 = vunpack.c.l.b16 %v2218
    %v3658 = vunpack.c.l.b16 %v2219
    %v3659 = vunpack.c.l.b16 %v2220
    %v3660 = vunpack.c.l.b16 %v2221
    %v3661 = vunpack.c.l.b16 %v2222
    %v3662 = vunpack.c.l.b16 %v2223
    %v3663 = vunpack.c.l.b16 %v2224
    %v3664 = vunpack.c.l.b16 %v2225
    %v3665 = vunpack.c.l.b16 %v2226
    %v3666 = vunpack.c.l.b16 %v2227
    %v3667 = vunpack.c.l.b16 %v2228
    %v3668 = vunpack.c.l.b16 %v2229
    %v3669 = vunpack.c.l.b16 %v2230
    %v3670 = vunpack.c.l.b16 %v2231
    %v3671 = vunpack.c.l.b16 %v2232
    %v3672 = vunpack.c.l.b16 %v2233
    %v3673 = vunpack.c.l.b16 %v2234
    %v3674 = vunpack.c.l.b16 %v2235
    %v3675 = vunpack.c.l.b16 %v2236
    %v3676 = vunpack.c.l.b16 %v2237
    %v3677 = vunpack.c.l.b16 %v2238
    %v3678 = vunpack.c.l.b16 %v2239
    %v3679 = vunpack.c.l.b16 %v2240
    %v3680 = vunpack.c.l.b16 %v2241
    %v3681 = vunpack.c.l.b16 %v2242
    %v3682 = vunpack.c.l.b16 %v2243
    %v3683 = vunpack.c.l.b16 %v2244
    %v3684 = vunpack.c.l.b16 %v2245
    %v3685 = vunpack.c.l.b16 %v2246
    %v3686 = vunpack.c.l.b16 %v2247
    %v3687 = vpack.c.b16 %v3624, %v3623
    %v3688 = vpack.c.b16 %v3626, %v3625
    %v3689 = vpack.c.b16 %v3628, %v3627
    %v3690 = vpack.c.b16 %v3630, %v3629
    %v3691 = vpack.c.b16 %v3632, %v3631
    %v3692 = vpack.c.b16 %v3634, %v3633
    %v3693 = vpack.c.b16 %v3636, %v3635
    %v3694 = vpack.c.b16 %v3638, %v3637
    %v3695 = vpack.c.b16 %v3640, %v3639
    %v3696 = vpack.c.b16 %v3642, %v3641
    %v3697 = vpack.c.b16 %v3644, %v3643
    %v3698 = vpack.c.b16 %v3646, %v3645
    %v3699 = vpack.c.b16 %v3648, %v3647
    %v3700 = vpack.c.b16 %v3650, %v3649
    %v3701 = vpack.c.b16 %v3652, %v3651
    %v3702 = vpack.c.b16 %v3654, %v3653
    %v3703 = vpack.c.b16 %v3656, %v3655
    %v3704 = vpack.c.b16 %v3658, %v3657
    %v3705 = vpack.c.b16 %v3660, %v3659
    %v3706 = vpack.c.b16 %v3662, %v3661
    %v3707 = vpack.c.b16 %v3664, %v3663
    %v3708 = vpack.c.b16 %v3666, %v3665
    %v3709 = vpack.c.b16 %v3668, %v3667
    %v3710 = vpack.c.b16 %v3670, %v3669
    %v3711 = vpack.c.b16 %v3672, %v3671
    %v3712 = vpack.c.b16 %v3674, %v3673
    %v3713 = vpack.c.b16 %v3676, %v3675
    %v3714 = vpack.c.b16 %v3678, %v3677
    %v3715 = vpack.c.b16 %v3680, %v3679
    %v3716 = vpack.c.b16 %v3682, %v3681
    %v3717 = vpack.c.b16 %v3684, %v3683
    %v3718 = vpack.c.b16 %v3686, %v3685
    %3751 = vmatprep.subr.bf16.mxu0 0
    %3752 = vmatpush1.bf16.msra.mxu0 %v3687
    %3753 = vmatprep.subr.bf16.mxu0 0
    %3754 = vmatpush1.bf16.msra.mxu0 %v3688
    %3755 = vmatprep.subr.bf16.mxu0 0
    %3756 = vmatpush1.bf16.msra.mxu0 %v3689
    %3757 = vmatprep.subr.bf16.mxu0 0
    %3758 = vmatpush1.bf16.msra.mxu0 %v3690
    %3759 = vmatprep.subr.bf16.mxu0 0
    %3760 = vmatpush1.bf16.msra.mxu0 %v3691
    %3761 = vmatprep.subr.bf16.mxu0 0
    %3762 = vmatpush1.bf16.msra.mxu0 %v3692
    %3763 = vmatprep.subr.bf16.mxu0 0
    %3764 = vmatpush1.bf16.msra.mxu0 %v3693
    %3765 = vmatprep.subr.bf16.mxu0 0
    %3766 = vmatpush1.bf16.msra.mxu0 %v3694
    %3767 = vmatprep.subr.bf16.mxu0 0
    %3768 = vmatpush1.bf16.msra.mxu0 %v3695
    %3769 = vmatprep.subr.bf16.mxu0 0
    %3770 = vmatpush1.bf16.msra.mxu0 %v3696
    %3771 = vmatprep.subr.bf16.mxu0 0
    %3772 = vmatpush1.bf16.msra.mxu0 %v3697
    %3773 = vmatprep.subr.bf16.mxu0 0
    %3774 = vmatpush1.bf16.msra.mxu0 %v3698
    %3775 = vmatprep.subr.bf16.mxu0 0
    %3776 = vmatpush1.bf16.msra.mxu0 %v3699
    %3777 = vmatprep.subr.bf16.mxu0 0
    %3778 = vmatpush1.bf16.msra.mxu0 %v3700
    %3779 = vmatprep.subr.bf16.mxu0 0
    %3780 = vmatpush1.bf16.msra.mxu0 %v3701
    %3781 = vmatprep.subr.bf16.mxu0 0
    %3782 = vmatpush1.bf16.msra.mxu0 %v3702
    %3783 = vmatprep.mubr.bf16.mxu0 %v3548
    %3784 = vmatmul.mubr.bf16.gmra.mrb[0].mxu0 %v3547
    %v3785 = vpop.f32.mrb[0].mxu0
    %v3786 = vadd.f32 %v3557, %v3785
    %v3787 = vpop.f32.mrb[0].mxu0
    %v3788 = vpop.f32.mrb[0].mxu0
    %v3789 = vadd.f32 %v3557, %v3788
    %v3790 = vpop.f32.mrb[0].mxu0
    %3791 = vdwg.mxu0
    %3792 = vmatprep.subr.bf16.mxu0 0
    %3793 = vmatpush1.bf16.msra.mxu0 %v3703
    %3794 = vmatprep.subr.bf16.mxu0 0
    %3795 = vmatpush1.bf16.msra.mxu0 %v3704
    %3796 = vmatprep.subr.bf16.mxu0 0
    %3797 = vmatpush1.bf16.msra.mxu0 %v3705
    %3798 = vmatprep.subr.bf16.mxu0 0
    %3799 = vmatpush1.bf16.msra.mxu0 %v3706
    %3800 = vmatprep.subr.bf16.mxu0 0
    %3801 = vmatpush1.bf16.msra.mxu0 %v3707
    %3802 = vmatprep.subr.bf16.mxu0 0
    %3803 = vmatpush1.bf16.msra.mxu0 %v3708
    %3804 = vmatprep.subr.bf16.mxu0 0
    %3805 = vmatpush1.bf16.msra.mxu0 %v3709
    %3806 = vmatprep.subr.bf16.mxu0 0
    %3807 = vmatpush1.bf16.msra.mxu0 %v3710
    %3808 = vmatprep.subr.bf16.mxu0 0
    %3809 = vmatpush1.bf16.msra.mxu0 %v3711
    %3810 = vmatprep.subr.bf16.mxu0 0
    %3811 = vmatpush1.bf16.msra.mxu0 %v3712
    %3812 = vmatprep.subr.bf16.mxu0 0
    %3813 = vmatpush1.bf16.msra.mxu0 %v3713
    %3814 = vmatprep.subr.bf16.mxu0 0
    %3815 = vmatpush1.bf16.msra.mxu0 %v3714
    %3816 = vmatprep.subr.bf16.mxu0 0
    %3817 = vmatpush1.bf16.msra.mxu0 %v3715
    %3818 = vmatprep.subr.bf16.mxu0 0
    %3819 = vmatpush1.bf16.msra.mxu0 %v3716
    %3820 = vmatprep.subr.bf16.mxu0 0
    %3821 = vmatpush1.bf16.msra.mxu0 %v3717
    %3822 = vmatprep.subr.bf16.mxu0 0
    %3823 = vmatpush1.bf16.msra.mxu0 %v3718
    %3824 = vmatprep.mubr.bf16.mxu0 %v3550
    %3825 = vmatmul.mubr.bf16.gmra.mrb[0].mxu0 %v3549
    %v3826 = vpop.f32.mrb[0].mxu0
    %v3827 = vadd.f32 %v3786, %v3826
    %v3828 = vpop.f32.mrb[0].mxu0
    %v3829 = vpop.f32.mrb[0].mxu0
    %v3830 = vadd.f32 %v3789, %v3829
    %v3831 = vpop.f32.mrb[0].mxu0
    %3832 = vdwg.mxu0
    %v3833 = vadd.f32 %v3827, %v3203
    %v3834 = vadd.f32 %v3830, %v3204
    %s3835 = scalar_lea.vmem [#allocation22], 1
    %v3836 = vld [vmem:[%s3835] sm:$0x1]
    %s3837 = scalar_lea.vmem [#allocation23], 1
    %v3838 = vld [vmem:[%s3837] sm:$0x1]
    %3839 = vadd.xlane.f32.xlu0 %v3833
    %v3840 = vpop.xlane.xlu0 %3839
    %3841 = vadd.xlane.f32.xlu0 %v3834
    %v3842 = vpop.xlane.xlu0 %3841
    %v3843 = vmul.f32 %v3840, %v286
    %v3844 = vmul.f32 %v3842, %v286
    %v3845 = vsub.f32 %v3833, %v3843
    %v3846 = vsub.f32 %v3834, %v3844
    %v3847 = vmul.f32 %v3845, %v3845
    %v3848 = vmul.f32 %v3846, %v3846
    %3849 = vadd.xlane.f32.xlu0 %v3847
    %v3850 = vpop.xlane.xlu0 %3849
    %3851 = vadd.xlane.f32.xlu0 %v3848
    %v3852 = vpop.xlane.xlu0 %3851
    %v3853 = vmul.f32 %v3850, %v286
    %v3854 = vmul.f32 %v3852, %v286
    %v3855 = vadd.f32 %v3853, 1e-12
    %v3856 = vadd.f32 %v3854, 1e-12
    %v3857 = vrsqrt.pop %v3855
    %v3858 = vrsqrt.pop %v3856
    %v3859 = vmul.f32 %v3845, %v3857
    %v3860 = vmul.f32 %v3846, %v3858
    %v3862 = vlaneseq
    %v3863 = vshrl.u32 %v3862, 7
    %v3864 = vsub.s32 0, %v3863
    %v3865 = vrot.slane %v3836, %v3864
    %v3867 = vmul.f32 %v3859, %v3865
    %v3868 = vmul.f32 %v3860, %v3865
    %v3870 = vlaneseq
    %v3871 = vshrl.u32 %v3870, 7
    %v3872 = vsub.s32 0, %v3871
    %v3873 = vrot.slane %v3838, %v3872
    %v3875 = vadd.f32 %v3867, %v3873
    %v3876 = vadd.f32 %v3868, %v3873
    %v3878 = vrot.slane %v3876, 7
    %vm3880 = vcmask 1040384
    %v3881 = vsel %vm3880, %v3875, %v3878
    %v3882 = vpack.c.bf16 %v3881, %v3881
    %v3883 = vld [vmem:[#allocation25] sm:$0xf]
    %v3884 = vld [vmem:[#allocation25 + $0x4] sm:$0xf]
    %v3885 = vld [vmem:[#allocation25 + $0x8] sm:$0xf]
    %v3886 = vld [vmem:[#allocation25 + $0xc] sm:$0xf]
    %v3887 = vld [vmem:[#allocation25 + $0x10] sm:$0xf]
    %v3888 = vld [vmem:[#allocation25 + $0x14] sm:$0xf]
    %v3889 = vld [vmem:[#allocation25 + $0x18] sm:$0xf]
    %v3890 = vld [vmem:[#allocation25 + $0x1c] sm:$0xf]
    %v3891 = vld [vmem:[#allocation25 + $0x20] sm:$0xf]
    %v3892 = vld [vmem:[#allocation25 + $0x24] sm:$0xf]
    %v3893 = vld [vmem:[#allocation25 + $0x28] sm:$0xf]
    %v3894 = vld [vmem:[#allocation25 + $0x2c] sm:$0xf]
    %v3895 = vld [vmem:[#allocation25 + $0x30] sm:$0xf]
    %v3896 = vld [vmem:[#allocation25 + $0x34] sm:$0xf]
    %v3897 = vld [vmem:[#allocation25 + $0x38] sm:$0xf]
    %v3898 = vld [vmem:[#allocation25 + $0x3c] sm:$0xf]
    %v3899 = vld [vmem:[#allocation26] sm:$0x1]
    %v3901 = vlaneseq
    %v3902 = vshrl.u32 %v3901, 7
    %v3903 = vsub.s32 0, %v3902
    %v3904 = vrot.slane %v3899, %v3903
    %v3922 = vunpack.c.l.b16 %v3883
    %v3923 = vunpack.c.l.b16 %v3884
    %v3924 = vunpack.c.l.b16 %v3885
    %v3925 = vunpack.c.l.b16 %v3886
    %v3926 = vunpack.c.l.b16 %v3887
    %v3927 = vunpack.c.l.b16 %v3888
    %v3928 = vunpack.c.l.b16 %v3889
    %v3929 = vunpack.c.l.b16 %v3890
    %v3930 = vunpack.c.l.b16 %v3891
    %v3931 = vunpack.c.l.b16 %v3892
    %v3932 = vunpack.c.l.b16 %v3893
    %v3933 = vunpack.c.l.b16 %v3894
    %v3934 = vunpack.c.l.b16 %v3895
    %v3935 = vunpack.c.l.b16 %v3896
    %v3936 = vunpack.c.l.b16 %v3897
    %v3937 = vunpack.c.l.b16 %v3898
    %v3938 = vpack.c.b16 %v3923, %v3922
    %v3939 = vpack.c.b16 %v3925, %v3924
    %v3940 = vpack.c.b16 %v3927, %v3926
    %v3941 = vpack.c.b16 %v3929, %v3928
    %v3942 = vpack.c.b16 %v3931, %v3930
    %v3943 = vpack.c.b16 %v3933, %v3932
    %v3944 = vpack.c.b16 %v3935, %v3934
    %v3945 = vpack.c.b16 %v3937, %v3936
    %3954 = vmatprep.subr.bf16.mxu0 0
    %3955 = vmatpush1.bf16.msra.mxu0 %v3938
    %3956 = vmatprep.subr.bf16.mxu0 0
    %3957 = vmatpush1.bf16.msra.mxu0 %v3939
    %3958 = vmatprep.subr.bf16.mxu0 0
    %3959 = vmatpush1.bf16.msra.mxu0 %v3940
    %3960 = vmatprep.subr.bf16.mxu0 0
    %3961 = vmatpush1.bf16.msra.mxu0 %v3941
    %3962 = vmatprep.subr.bf16.mxu0 0
    %3963 = vmatpush1.bf16.msra.mxu0 %v3942
    %3964 = vmatprep.subr.bf16.mxu0 0
    %3965 = vmatpush1.bf16.msra.mxu0 %v3943
    %3966 = vmatprep.subr.bf16.mxu0 0
    %3967 = vmatpush1.bf16.msra.mxu0 %v3944
    %3968 = vmatprep.subr.bf16.mxu0 0
    %3969 = vmatpush1.bf16.msra.mxu0 %v3945
    %3970 = vmatprep.subr.bf16.mxu0 0
    %3971 = vmatpush1.bf16.msra.mxu0 0
    %3972 = vmatprep.subr.bf16.mxu0 0
    %3973 = vmatpush1.bf16.msra.mxu0 0
    %3974 = vmatprep.subr.bf16.mxu0 0
    %3975 = vmatpush1.bf16.msra.mxu0 0
    %3976 = vmatprep.subr.bf16.mxu0 0
    %3977 = vmatpush1.bf16.msra.mxu0 0
    %3978 = vmatprep.subr.bf16.mxu0 0
    %3979 = vmatpush1.bf16.msra.mxu0 0
    %3980 = vmatprep.subr.bf16.mxu0 0
    %3981 = vmatpush1.bf16.msra.mxu0 0
    %3982 = vmatprep.subr.bf16.mxu0 0
    %3983 = vmatpush1.bf16.msra.mxu0 0
    %3984 = vmatprep.subr.bf16.mxu0 0
    %3985 = vmatpush1.bf16.msra.mxu0 0
    %3986 = vmatprep.mubr.bf16.mxu0 0
    %3987 = vmatmul.mubr.bf16.gmra.mrb[0].mxu0 %v3882
    %v3988 = vpop.f32.mrb[0].mxu0
    %v3989 = vadd.f32 %v3904, %v3988
    %v3990 = vpop.f32.mrb[0].mxu0
    %v3991 = vpop.f32.mrb[0].mxu0
    %v3992 = vpop.f32.mrb[0].mxu0
    %3993 = vdwg.mxu0
    %v3994 = vtanh.pop %v3989
    %v3995 = vpack.c.bf16 %v3994, %v3994
    %v3996 = vld [vmem:[%s18] sm:$0xf]
    %v3997 = vld [vmem:[%s18 + $0x4] sm:$0xf]
    %v3998 = vld [vmem:[%s18 + $0x8] sm:$0xf]
    %v3999 = vld [vmem:[%s18 + $0xc] sm:$0xf]
    %v4000 = vld [vmem:[%s18 + $0x10] sm:$0xf]
    %v4001 = vld [vmem:[%s18 + $0x14] sm:$0xf]
    %v4002 = vld [vmem:[%s18 + $0x18] sm:$0xf]
    %v4003 = vld [vmem:[%s18 + $0x1c] sm:$0xf]
    %v4004 = vld [vmem:[%s18 + $0x20] sm:$0xf]
    %v4005 = vld [vmem:[%s18 + $0x24] sm:$0xf]
    %v4006 = vld [vmem:[%s18 + $0x28] sm:$0xf]
    %v4007 = vld [vmem:[%s18 + $0x2c] sm:$0xf]
    %v4008 = vld [vmem:[%s18 + $0x30] sm:$0xf]
    %v4009 = vld [vmem:[%s18 + $0x34] sm:$0xf]
    %v4010 = vld [vmem:[%s18 + $0x38] sm:$0xf]
    %v4011 = vld [vmem:[%s18 + $0x3c] sm:$0xf]
    %v4012 = vld [vmem:[%s19] sm:$0x1]
    %v4014 = vlaneseq
    %v4015 = vshrl.u32 %v4014, 7
    %v4016 = vsub.s32 0, %v4015
    %v4017 = vrot.slane %v4012, %v4016
    %v4035 = vunpack.c.l.b16 %v3996
    %v4036 = vunpack.c.l.b16 %v3997
    %v4037 = vunpack.c.l.b16 %v3998
    %v4038 = vunpack.c.l.b16 %v3999
    %v4039 = vunpack.c.l.b16 %v4000
    %v4040 = vunpack.c.l.b16 %v4001
    %v4041 = vunpack.c.l.b16 %v4002
    %v4042 = vunpack.c.l.b16 %v4003
    %v4043 = vunpack.c.l.b16 %v4004
    %v4044 = vunpack.c.l.b16 %v4005
    %v4045 = vunpack.c.l.b16 %v4006
    %v4046 = vunpack.c.l.b16 %v4007
    %v4047 = vunpack.c.l.b16 %v4008
    %v4048 = vunpack.c.l.b16 %v4009
    %v4049 = vunpack.c.l.b16 %v4010
    %v4050 = vunpack.c.l.b16 %v4011
    %v4051 = vpack.c.b16 %v4036, %v4035
    %v4052 = vpack.c.b16 %v4038, %v4037
    %v4053 = vpack.c.b16 %v4040, %v4039
    %v4054 = vpack.c.b16 %v4042, %v4041
    %v4055 = vpack.c.b16 %v4044, %v4043
    %v4056 = vpack.c.b16 %v4046, %v4045
    %v4057 = vpack.c.b16 %v4048, %v4047
    %v4058 = vpack.c.b16 %v4050, %v4049
    %4067 = vmatprep.subr.bf16.mxu0 0
    %4068 = vmatpush1.bf16.msra.mxu0 %v4051
    %4069 = vmatprep.subr.bf16.mxu0 0
    %4070 = vmatpush1.bf16.msra.mxu0 %v4052
    %4071 = vmatprep.subr.bf16.mxu0 0
    %4072 = vmatpush1.bf16.msra.mxu0 %v4053
    %4073 = vmatprep.subr.bf16.mxu0 0
    %4074 = vmatpush1.bf16.msra.mxu0 %v4054
    %4075 = vmatprep.subr.bf16.mxu0 0
    %4076 = vmatpush1.bf16.msra.mxu0 %v4055
    %4077 = vmatprep.subr.bf16.mxu0 0
    %4078 = vmatpush1.bf16.msra.mxu0 %v4056
    %4079 = vmatprep.subr.bf16.mxu0 0
    %4080 = vmatpush1.bf16.msra.mxu0 %v4057
    %4081 = vmatprep.subr.bf16.mxu0 0
    %4082 = vmatpush1.bf16.msra.mxu0 %v4058
    %4083 = vmatprep.subr.bf16.mxu0 0
    %4084 = vmatpush1.bf16.msra.mxu0 0
    %4085 = vmatprep.subr.bf16.mxu0 0
    %4086 = vmatpush1.bf16.msra.mxu0 0
    %4087 = vmatprep.subr.bf16.mxu0 0
    %4088 = vmatpush1.bf16.msra.mxu0 0
    %4089 = vmatprep.subr.bf16.mxu0 0
    %4090 = vmatpush1.bf16.msra.mxu0 0
    %4091 = vmatprep.subr.bf16.mxu0 0
    %4092 = vmatpush1.bf16.msra.mxu0 0
    %4093 = vmatprep.subr.bf16.mxu0 0
    %4094 = vmatpush1.bf16.msra.mxu0 0
    %4095 = vmatprep.subr.bf16.mxu0 0
    %4096 = vmatpush1.bf16.msra.mxu0 0
    %4097 = vmatprep.subr.bf16.mxu0 0
    %4098 = vmatpush1.bf16.msra.mxu0 0
    %4099 = vmatprep.mubr.bf16.mxu0 0
    %4100 = vmatmul.mubr.bf16.gmra.mrb[0].mxu0 %v3995
    %v4101 = vpop.f32.mrb[0].mxu0
    %v4102 = vadd.f32 %v4017, %v4101
    %v4103 = vpop.f32.mrb[0].mxu0
    %v4104 = vpop.f32.mrb[0].mxu0
    %v4105 = vpop.f32.mrb[0].mxu0
    %4106 = vdwg.mxu0
    %4107 = vst [vmem:[#allocation28] sm:$0x3] %v4102
    // Predicated region
    $region146: #{tpu_custom_call.1} parent=1 // pred_check
      _
    $region147: #{tpu_custom_call.1} parent=1 // pred_check_branch
      %4109 = sbr.rel (0) target = $region149
    $region148: #{tpu_custom_call.1} parent=1 // pred_region
      %s4111 = ssub.s32 32, 32
      %4112 = vsyncadd [#allocation4], %s4111
      %s4114 = sshll.u32 [#allocation28], 4
      %s4115 = int_to_ptr.vmem [resolvable:$true] %s4114
      %4117 = dma.vmem_to_hbm [thread:$0]  %s4115, 32, %s20, [#allocation4]
    $region149: #{tpu_custom_call.1} parent=1 // pred_fallthru
      _
    // Predicated region
    $region150: #{tpu_custom_call.1} parent=1 // pred_check
      _
    $region151: #{tpu_custom_call.1} parent=1 // pred_check_branch
      %4119 = sbr.rel (0) target = $region153
    $region152: #{tpu_custom_call.1} parent=1 // pred_region
      %4120 = dma.done [#allocation4], 32
    $region153: #{tpu_custom_call.1} parent=1 // pred_fallthru
      _
    %4121 = vsyncpa [#allocation3], 1
    %4122 = vsyncpa [#allocation6], 1
    %4123 = vsyncpa [#allocation9], 1
    %4124 = vsyncpa [#allocation12], 1
    %4125 = vsyncpa [#allocation15], 1
    %4126 = vsyncpa [#allocation18], 1
    %4127 = vsyncpa [#allocation21], 1
    %4128 = vsyncpa [#allocation24], 1
    %4129 = vsyncpa [#allocation27], 1
    %4130 = vsyncpa [#allocation4], 1

</llo_original>
